<compile_context>
chip_gen: v7x
topology: tpu7x:2x2x1
jax: 0.10.0
libtpu: 0.0.40
codegen_flags: <defaults>
</compile_context>

<pallas_src>
import functools
import math

import jax
import jax.numpy as jnp
from jax.experimental import pallas as pl
from jax.experimental.pallas import tpu as pltpu

LN_EPS = 1e-5  # PyTorch nn.LayerNorm default


def _layer_norm(x, gamma, beta):
    mu = jnp.mean(x, axis=-1, keepdims=True)
    var = jnp.mean((x - mu) * (x - mu), axis=-1, keepdims=True)
    return (x - mu) * jax.lax.rsqrt(var + LN_EPS) * gamma + beta


def encoder_layer_kernel(src_ref, pos_ref,
                         wq_ref, wk_ref, wv_ref,
                         bq_ref, bk_ref, bv_ref,
                         wo_ref, bo_ref,
                         g1_ref, be1_ref,
                         w1_ref, b1_ref,
                         w2_ref, b2_ref,
                         g2_ref, be2_ref,
                         out_ref, *, n_heads, seq):
    f32 = jnp.float32
    m, d_model = src_ref.shape          # m = batch_tile * seq
    bt = m // seq
    head_dim = d_model // n_heads
    cd = wq_ref.dtype                   # matmul compute dtype (bf16 or f32)

    # Residual / LayerNorm math in f32.
    x = src_ref[...].astype(f32)                      # (M, D)
    qk = x + pos_ref[...].astype(f32)                 # with_pos_embed: q = k

    x_lp = x.astype(cd)
    qk_lp = qk.astype(cd)

    # ---- multi-head self-attention -------------------------------------
    # Per-head weights are indexed on the leading (head) axis of the refs;
    # per-head outputs are folded directly into the out-projection sum, so
    # there is no activation lane-slicing / concat / transpose.
    attn = jnp.zeros((m, d_model), f32)
    for h in range(n_heads):                          # static, unrolled
        q = jnp.dot(qk_lp, wq_ref[h], preferred_element_type=f32) + bq_ref[h]
        k = jnp.dot(qk_lp, wk_ref[h], preferred_element_type=f32) + bk_ref[h]
        v = jnp.dot(x_lp, wv_ref[h], preferred_element_type=f32) + bv_ref[h]
        q3 = q.reshape(bt, seq, head_dim)             # tile-aligned reshape
        k3 = k.reshape(bt, seq, head_dim)
        v3 = v.reshape(bt, seq, head_dim)
        # scale (1/sqrt(hd)) already folded into wq/bq at prep time
        s = jnp.einsum("bqd,bkd->bqk", q3, k3, preferred_element_type=f32)
        s = s - jnp.max(s, axis=-1, keepdims=True)
        p = jnp.exp(s)
        p = p * pl.reciprocal(jnp.sum(p, axis=-1, keepdims=True), approx=True)
        o = jnp.einsum("bqk,bkd->bqd", p, v3, preferred_element_type=f32)
        attn = attn + jnp.dot(o.reshape(m, head_dim).astype(cd), wo_ref[h],
                              preferred_element_type=f32)
    attn = attn + bo_ref[...]

    # ---- residual + LayerNorm1 ------------------------------------------
    x1 = _layer_norm(x + attn, g1_ref[...], be1_ref[...])

    # ---- FFN: linear1 -> relu -> linear2, residual + LayerNorm2 ---------
    h1 = jnp.dot(x1.astype(cd), w1_ref[...], preferred_element_type=f32) + b1_ref[...]
    h1 = jnp.maximum(h1, 0.0)                          # activation='relu'
    h2 = jnp.dot(h1.astype(cd), w2_ref[...], preferred_element_type=f32) + b2_ref[...]
    x2 = _layer_norm(x1 + h2, g2_ref[...], be2_ref[...])

    out_ref[...] = x2.astype(out_ref.dtype)


def prepare_params(raw, *, n_heads, compute_dtype=jnp.bfloat16):
    """One-time host-side weight prep: head-blocked layouts, 1/sqrt(hd) folded
    into the query projection, matmul weights cast to `compute_dtype`."""
    D = raw["wq"].shape[0]
    hd = D // n_heads
    scale = 1.0 / math.sqrt(hd)
    f32 = jnp.float32

    def heads_cols(w):    # (D, D) -> (H, D, hd)
        return jnp.transpose(w.reshape(D, n_heads, hd), (1, 0, 2))

    def heads_bias(b):    # (1, D) -> (H, 1, hd)
        return jnp.transpose(b.reshape(1, n_heads, hd), (1, 0, 2))

    return {
        "wq": heads_cols(raw["wq"] * scale).astype(compute_dtype),
        "wk": heads_cols(raw["wk"]).astype(compute_dtype),
        "wv": heads_cols(raw["wv"]).astype(compute_dtype),
        "bq": (heads_bias(raw["bq"]) * scale).astype(f32),
        "bk": heads_bias(raw["bk"]).astype(f32),
        "bv": heads_bias(raw["bv"]).astype(f32),
        "wo": raw["wo"].reshape(n_heads, hd, D).astype(compute_dtype),
        "bo": raw["bo"].astype(f32),
        "g1": raw["g1"].astype(f32), "be1": raw["be1"].astype(f32),
        "w1": raw["w1"].astype(compute_dtype), "b1": raw["b1"].astype(f32),
        "w2": raw["w2"].astype(compute_dtype), "b2": raw["b2"].astype(f32),
        "g2": raw["g2"].astype(f32), "be2": raw["be2"].astype(f32),
    }


def _pick_batch_tile(batch, seq, target_rows=256):
    """Batch elements per grid step: fill ~target_rows MXU rows, keep >=2 steps."""
    bt = max(1, min(batch, target_rows // max(seq, 1)))
    while batch % bt:
        bt -= 1
    if bt == batch and batch > 1:          # keep >=2 parallel steps (v7x: 2 TCs)
        for cand in range(batch // 2, 0, -1):
            if batch % cand == 0:
                bt = cand
                break
    return bt


def transformer_encoder_layer(src, pos, params, *, n_heads,
                              batch_tile=None, vmem_limit_bytes=None):
    B, S, D = src.shape
    assert pos.shape == src.shape
    assert D % n_heads == 0
    H = n_heads
    hd = D // H
    F = params["w1"].shape[1]

    if batch_tile is None:
        batch_tile = _pick_batch_tile(B, S)
    assert B % batch_tile == 0, "batch must be divisible by batch_tile"
    tile_m = batch_tile * S
    n_tiles = (B * S) // tile_m

    # Flatten (B, S, D) -> (B*S, D) so each grid step packs batch_tile batch
    # elements into one big-M slab; the wrapper-side reshapes are free.
    src2d = src.reshape(B * S, D)
    pos2d = pos.reshape(B * S, D)

    kernel = functools.partial(encoder_layer_kernel, n_heads=n_heads, seq=S)

    def full(shape):
        # whole-array block, constant index_map -> stays VMEM-resident
        return pl.BlockSpec(shape, lambda i: (0,) * len(shape))

    row = pl.BlockSpec((tile_m, D), lambda i: (i, 0))

    in_specs = [
        row, row,                                               # src, pos
        full((H, D, hd)), full((H, D, hd)), full((H, D, hd)),   # wq, wk, wv
        full((H, 1, hd)), full((H, 1, hd)), full((H, 1, hd)),   # bq, bk, bv
        full((H, hd, D)), full((1, D)),                         # wo, bo
        full((1, D)), full((1, D)),                             # ln1 gamma/beta
        full((D, F)), full((1, F)),                             # w1, b1
        full((F, D)), full((1, D)),                             # w2, b2
        full((1, D)), full((1, D)),                             # ln2 gamma/beta
    ]

    cp_kwargs = dict(dimension_semantics=("parallel",))
    if vmem_limit_bytes is not None:
        cp_kwargs["vmem_limit_bytes"] = vmem_limit_bytes

    out2d = pl.pallas_call(
        kernel,
        out_shape=jax.ShapeDtypeStruct((B * S, D), src.dtype),
        grid=(n_tiles,),
        in_specs=in_specs,
        out_specs=pl.BlockSpec((tile_m, D), lambda i: (i, 0)),
        compiler_params=pltpu.CompilerParams(**cp_kwargs),
    )(src2d, pos2d,
      params["wq"], params["wk"], params["wv"],
      params["bq"], params["bk"], params["bv"],
      params["wo"], params["bo"],
      params["g1"], params["be1"],
      params["w1"], params["b1"],
      params["w2"], params["b2"],
      params["g2"], params["be2"])
    return out2d.reshape(B, S, D)


def ref_forward(src, pos, raw, *, n_heads, compute_dtype=jnp.bfloat16):
    """Pure-JAX reference of the PyTorch eval-mode forward, mirroring the
    kernel's mixed-precision policy (compute_dtype matmul inputs, f32 acc)."""
    f32 = jnp.float32
    cd = compute_dtype
    B, S, D = src.shape
    hd = D // n_heads
    scale = 1.0 / math.sqrt(hd)

    def mm(a, w):
        return jnp.dot(a.astype(cd), w.astype(cd), preferred_element_type=f32)

    x = src.astype(f32).reshape(B * S, D)
    qk = x + pos.astype(f32).reshape(B * S, D)
    q = mm(qk, raw["wq"] * scale) + raw["bq"] * scale
    k = mm(qk, raw["wk"]) + raw["bk"]
    v = mm(x, raw["wv"]) + raw["bv"]
    qh = q.reshape(B, S, n_heads, hd).transpose(0, 2, 1, 3)
    kh = k.reshape(B, S, n_heads, hd).transpose(0, 2, 1, 3)
    vh = v.reshape(B, S, n_heads, hd).transpose(0, 2, 1, 3)
    s = jnp.einsum("bhqd,bhkd->bhqk", qh, kh)
    a = jax.nn.softmax(s, axis=-1)
    o = jnp.einsum("bhqk,bhkd->bhqd", a, vh)
    o = o.transpose(0, 2, 1, 3).reshape(B * S, D)
    o = mm(o, raw["wo"]) + raw["bo"]
    x1 = _layer_norm(x + o, raw["g1"], raw["be1"])
    h1 = jnp.maximum(mm(x1, raw["w1"]) + raw["b1"], 0.0)
    x2 = _layer_norm(x1 + mm(h1, raw["w2"]) + raw["b2"], raw["g2"], raw["be2"])
    return x2.reshape(B, S, D)


if __name__ == "__main__":
    # Small shapes consistent with the module: d_model=32, d_ffn=64, n_heads=4.
    B, S, D, F, H = 8, 8, 32, 64, 4

    key = jax.random.PRNGKey(0)
    ks = jax.random.split(key, 20)

    def nrm(k, shape, scale=0.05):
        return jax.random.normal(k, shape, dtype=jnp.float32) * scale

    raw_params = {
        # attention in-proj (stored pre-transposed so the math is x @ W)
        "wq": nrm(ks[0], (D, D)), "wk": nrm(ks[1], (D, D)), "wv": nrm(ks[2], (D, D)),
        "bq": nrm(ks[3], (1, D), 0.02), "bk": nrm(ks[4], (1, D), 0.02), "bv": nrm(ks[5], (1, D), 0.02),
        # attention out-proj
        "wo": nrm(ks[6], (D, D)), "bo": nrm(ks[7], (1, D), 0.02),
        # norm1
        "g1": jnp.ones((1, D), jnp.float32) + nrm(ks[8], (1, D), 0.01),
        "be1": nrm(ks[9], (1, D), 0.01),
        # ffn
        "w1": nrm(ks[10], (D, F)), "b1": nrm(ks[11], (1, F), 0.02),
        "w2": nrm(ks[12], (F, D)), "b2": nrm(ks[13], (1, D), 0.02),
        # norm2
        "g2": jnp.ones((1, D), jnp.float32) + nrm(ks[14], (1, D), 0.01),
        "be2": nrm(ks[15], (1, D), 0.01),
    }

    src = jax.random.normal(ks[16], (B, S, D), dtype=jnp.float32)
    pos = jax.random.normal(ks[17], (B, S, D), dtype=jnp.float32)

    compute_dtype = jnp.bfloat16   # MXU-friendly weights (v6e/v7x); f32 acc kept
    params = prepare_params(raw_params, n_heads=H, compute_dtype=compute_dtype)

    out = transformer_encoder_layer(src, pos, params, n_heads=H)
    out = jax.block_until_ready(out)

    ref = jax.block_until_ready(
        ref_forward(src, pos, raw_params, n_heads=H, compute_dtype=compute_dtype))
    assert out.shape == (B, S, D)
    assert bool(jnp.allclose(out, ref, rtol=1e-2, atol=1e-2)), "mismatch vs reference"

    print("KERNEL_OK")
</pallas_src>

<mosaic_0001>
module attributes {stable_mosaic.version = 11 : i64} {
  func.func @encoder_layer_kernel(%arg0: i32, %arg1: memref<32x32xf32, #tpu.memory_space<vmem>>, %arg2: memref<32x32xf32, #tpu.memory_space<vmem>>, %arg3: memref<4x32x8xbf16, #tpu.memory_space<vmem>>, %arg4: memref<4x32x8xbf16, #tpu.memory_space<vmem>>, %arg5: memref<4x32x8xbf16, #tpu.memory_space<vmem>>, %arg6: memref<4x1x8xf32, #tpu.memory_space<vmem>>, %arg7: memref<4x1x8xf32, #tpu.memory_space<vmem>>, %arg8: memref<4x1x8xf32, #tpu.memory_space<vmem>>, %arg9: memref<4x8x32xbf16, #tpu.memory_space<vmem>>, %arg10: memref<1x32xf32, #tpu.memory_space<vmem>>, %arg11: memref<1x32xf32, #tpu.memory_space<vmem>>, %arg12: memref<1x32xf32, #tpu.memory_space<vmem>>, %arg13: memref<32x64xbf16, #tpu.memory_space<vmem>>, %arg14: memref<1x64xf32, #tpu.memory_space<vmem>>, %arg15: memref<64x32xbf16, #tpu.memory_space<vmem>>, %arg16: memref<1x32xf32, #tpu.memory_space<vmem>>, %arg17: memref<1x32xf32, #tpu.memory_space<vmem>>, %arg18: memref<1x32xf32, #tpu.memory_space<vmem>>, %arg19: memref<32x32xf32, #tpu.memory_space<vmem>>) attributes {dimension_semantics = [#tpu.dimension_semantics<parallel>], iteration_bounds = array<i64: 2>, scalar_prefetch = 0 : i64, scratch_operands = 0 : i64, tpu.core_type = #tpu.core_type<tc>, window_params = [{transform_indices = @transform_0, window_bounds = array<i64: 32, 32>}, {transform_indices = @transform_1, window_bounds = array<i64: 32, 32>}, {pipeline_mode = #tpu.pipeline_mode<synchronous>, transform_indices = @transform_2, window_bounds = array<i64: 4, 32, 8>}, {pipeline_mode = #tpu.pipeline_mode<synchronous>, transform_indices = @transform_3, window_bounds = array<i64: 4, 32, 8>}, {pipeline_mode = #tpu.pipeline_mode<synchronous>, transform_indices = @transform_4, window_bounds = array<i64: 4, 32, 8>}, {pipeline_mode = #tpu.pipeline_mode<synchronous>, transform_indices = @transform_5, window_bounds = array<i64: 4, 1, 8>}, {pipeline_mode = #tpu.pipeline_mode<synchronous>, transform_indices = @transform_6, window_bounds = array<i64: 4, 1, 8>}, {pipeline_mode = #tpu.pipeline_mode<synchronous>, transform_indices = @transform_7, window_bounds = array<i64: 4, 1, 8>}, {pipeline_mode = #tpu.pipeline_mode<synchronous>, transform_indices = @transform_8, window_bounds = array<i64: 4, 8, 32>}, {pipeline_mode = #tpu.pipeline_mode<synchronous>, transform_indices = @transform_9, window_bounds = array<i64: 1, 32>}, {pipeline_mode = #tpu.pipeline_mode<synchronous>, transform_indices = @transform_10, window_bounds = array<i64: 1, 32>}, {pipeline_mode = #tpu.pipeline_mode<synchronous>, transform_indices = @transform_11, window_bounds = array<i64: 1, 32>}, {pipeline_mode = #tpu.pipeline_mode<synchronous>, transform_indices = @transform_12, window_bounds = array<i64: 32, 64>}, {pipeline_mode = #tpu.pipeline_mode<synchronous>, transform_indices = @transform_13, window_bounds = array<i64: 1, 64>}, {pipeline_mode = #tpu.pipeline_mode<synchronous>, transform_indices = @transform_14, window_bounds = array<i64: 64, 32>}, {pipeline_mode = #tpu.pipeline_mode<synchronous>, transform_indices = @transform_15, window_bounds = array<i64: 1, 32>}, {pipeline_mode = #tpu.pipeline_mode<synchronous>, transform_indices = @transform_16, window_bounds = array<i64: 1, 32>}, {pipeline_mode = #tpu.pipeline_mode<synchronous>, transform_indices = @transform_17, window_bounds = array<i64: 1, 32>}, {transform_indices = @transform_18, window_bounds = array<i64: 32, 32>}]} {
    %c0 = arith.constant 0 : index
    %c0_0 = arith.constant 0 : index
    %0 = vector.load %arg1[%c0, %c0_0] : memref<32x32xf32, #tpu.memory_space<vmem>>, vector<32x32xf32>
    %c0_1 = arith.constant 0 : index
    %c0_2 = arith.constant 0 : index
    %1 = vector.load %arg2[%c0_1, %c0_2] : memref<32x32xf32, #tpu.memory_space<vmem>>, vector<32x32xf32>
    %2 = arith.addf %0, %1 : vector<32x32xf32>
    %3 = arith.truncf %0 : vector<32x32xf32> to vector<32x32xbf16>
    %4 = arith.truncf %2 : vector<32x32xf32> to vector<32x32xbf16>
    %cst = arith.constant 0.000000e+00 : f32
    %5 = vector.broadcast %cst : f32 to vector<32x32xf32>
    %c0_3 = arith.constant 0 : index
    %c0_4 = arith.constant 0 : index
    %c0_5 = arith.constant 0 : index
    %6 = vector.load %arg3[%c0_3, %c0_4, %c0_5] : memref<4x32x8xbf16, #tpu.memory_space<vmem>>, vector<1x32x8xbf16>
    %7 = vector.shape_cast %6 : vector<1x32x8xbf16> to vector<32x8xbf16>
    %cst_6 = arith.constant dense<0.000000e+00> : vector<32x8xf32>
    %8 = tpu.matmul %4, %7, %cst_6 {dimension_numbers = #tpu.dot_dimension_numbers<[1], [0], [0], [1], [0, 0, 1, 1], [], []>} : vector<32x32xbf16>, vector<32x8xbf16>, vector<32x8xf32> -> vector<32x8xf32>
    %c0_7 = arith.constant 0 : index
    %c0_8 = arith.constant 0 : index
    %c0_9 = arith.constant 0 : index
    %9 = vector.load %arg6[%c0_7, %c0_8, %c0_9] : memref<4x1x8xf32, #tpu.memory_space<vmem>>, vector<1x1x8xf32>
    %10 = vector.shape_cast %9 : vector<1x1x8xf32> to vector<1x8xf32>
    %11 = vector.broadcast %10 : vector<1x8xf32> to vector<32x8xf32>
    %12 = arith.addf %8, %11 : vector<32x8xf32>
    %c0_10 = arith.constant 0 : index
    %c0_11 = arith.constant 0 : index
    %c0_12 = arith.constant 0 : index
    %13 = vector.load %arg4[%c0_10, %c0_11, %c0_12] : memref<4x32x8xbf16, #tpu.memory_space<vmem>>, vector<1x32x8xbf16>
    %14 = vector.shape_cast %13 : vector<1x32x8xbf16> to vector<32x8xbf16>
    %cst_13 = arith.constant dense<0.000000e+00> : vector<32x8xf32>
    %15 = tpu.matmul %4, %14, %cst_13 {dimension_numbers = #tpu.dot_dimension_numbers<[1], [0], [0], [1], [0, 0, 1, 1], [], []>} : vector<32x32xbf16>, vector<32x8xbf16>, vector<32x8xf32> -> vector<32x8xf32>
    %c0_14 = arith.constant 0 : index
    %c0_15 = arith.constant 0 : index
    %c0_16 = arith.constant 0 : index
    %16 = vector.load %arg7[%c0_14, %c0_15, %c0_16] : memref<4x1x8xf32, #tpu.memory_space<vmem>>, vector<1x1x8xf32>
    %17 = vector.shape_cast %16 : vector<1x1x8xf32> to vector<1x8xf32>
    %18 = vector.broadcast %17 : vector<1x8xf32> to vector<32x8xf32>
    %19 = arith.addf %15, %18 : vector<32x8xf32>
    %c0_17 = arith.constant 0 : index
    %c0_18 = arith.constant 0 : index
    %c0_19 = arith.constant 0 : index
    %20 = vector.load %arg5[%c0_17, %c0_18, %c0_19] : memref<4x32x8xbf16, #tpu.memory_space<vmem>>, vector<1x32x8xbf16>
    %21 = vector.shape_cast %20 : vector<1x32x8xbf16> to vector<32x8xbf16>
    %cst_20 = arith.constant dense<0.000000e+00> : vector<32x8xf32>
    %22 = tpu.matmul %3, %21, %cst_20 {dimension_numbers = #tpu.dot_dimension_numbers<[1], [0], [0], [1], [0, 0, 1, 1], [], []>} : vector<32x32xbf16>, vector<32x8xbf16>, vector<32x8xf32> -> vector<32x8xf32>
    %c0_21 = arith.constant 0 : index
    %c0_22 = arith.constant 0 : index
    %c0_23 = arith.constant 0 : index
    %23 = vector.load %arg8[%c0_21, %c0_22, %c0_23] : memref<4x1x8xf32, #tpu.memory_space<vmem>>, vector<1x1x8xf32>
    %24 = vector.shape_cast %23 : vector<1x1x8xf32> to vector<1x8xf32>
    %25 = vector.broadcast %24 : vector<1x8xf32> to vector<32x8xf32>
    %26 = arith.addf %22, %25 : vector<32x8xf32>
    %27 = vector.shape_cast %12 : vector<32x8xf32> to vector<4x8x8xf32>
    %28 = vector.shape_cast %19 : vector<32x8xf32> to vector<4x8x8xf32>
    %29 = vector.shape_cast %26 : vector<32x8xf32> to vector<4x8x8xf32>
    "tpu.trace_start"() <{level = 10 : i32, message = "bqd,bkd->bqk"}> : () -> ()
    %cst_24 = arith.constant dense<0.000000e+00> : vector<4x8x8xf32>
    %30 = tpu.matmul %27, %28, %cst_24 {dimension_numbers = #tpu.dot_dimension_numbers<[2], [2], [1], [1], [0, 0, 0, 1, 1, 1], [0], [0]>} : vector<4x8x8xf32>, vector<4x8x8xf32>, vector<4x8x8xf32> -> vector<4x8x8xf32>
    "tpu.trace_stop"() : () -> ()
    %cst_25 = arith.constant dense<0xFF800000> : vector<4x8xf32>
    %31 = vector.multi_reduction <maximumf>, %30, %cst_25 [2] : vector<4x8x8xf32> to vector<4x8xf32>
    %32 = vector.shape_cast %31 : vector<4x8xf32> to vector<4x8x1xf32>
    %33 = vector.broadcast %32 : vector<4x8x1xf32> to vector<4x8x8xf32>
    %34 = arith.subf %30, %33 : vector<4x8x8xf32>
    %35 = math.exp %34 : vector<4x8x8xf32>
    %cst_26 = arith.constant dense<0.000000e+00> : vector<4x8xf32>
    %36 = vector.multi_reduction <add>, %35, %cst_26 [2] : vector<4x8x8xf32> to vector<4x8xf32>
    %37 = vector.shape_cast %36 : vector<4x8xf32> to vector<4x8x1xf32>
    %38 = tpu.reciprocal %37 {approx = true} : vector<4x8x1xf32> -> vector<4x8x1xf32>
    %39 = vector.broadcast %38 : vector<4x8x1xf32> to vector<4x8x8xf32>
    %40 = arith.mulf %35, %39 : vector<4x8x8xf32>
    "tpu.trace_start"() <{level = 10 : i32, message = "bqk,bkd->bqd"}> : () -> ()
    %cst_27 = arith.constant dense<0.000000e+00> : vector<4x8x8xf32>
    %41 = tpu.matmul %40, %29, %cst_27 {dimension_numbers = #tpu.dot_dimension_numbers<[2], [1], [1], [2], [0, 0, 0, 1, 1, 2], [0], [0]>} : vector<4x8x8xf32>, vector<4x8x8xf32>, vector<4x8x8xf32> -> vector<4x8x8xf32>
    "tpu.trace_stop"() : () -> ()
    %42 = vector.shape_cast %41 : vector<4x8x8xf32> to vector<32x8xf32>
    %43 = arith.truncf %42 : vector<32x8xf32> to vector<32x8xbf16>
    %c0_28 = arith.constant 0 : index
    %c0_29 = arith.constant 0 : index
    %c0_30 = arith.constant 0 : index
    %44 = vector.load %arg9[%c0_28, %c0_29, %c0_30] : memref<4x8x32xbf16, #tpu.memory_space<vmem>>, vector<1x8x32xbf16>
    %45 = vector.shape_cast %44 : vector<1x8x32xbf16> to vector<8x32xbf16>
    %cst_31 = arith.constant dense<0.000000e+00> : vector<32x32xf32>
    %46 = tpu.matmul %43, %45, %cst_31 {dimension_numbers = #tpu.dot_dimension_numbers<[1], [0], [0], [1], [0, 0, 1, 1], [], []>} : vector<32x8xbf16>, vector<8x32xbf16>, vector<32x32xf32> -> vector<32x32xf32>
    %47 = arith.addf %5, %46 : vector<32x32xf32>
    %c1 = arith.constant 1 : index
    %c0_32 = arith.constant 0 : index
    %c0_33 = arith.constant 0 : index
    %48 = vector.load %arg3[%c1, %c0_32, %c0_33] : memref<4x32x8xbf16, #tpu.memory_space<vmem>>, vector<1x32x8xbf16>
    %49 = vector.shape_cast %48 : vector<1x32x8xbf16> to vector<32x8xbf16>
    %cst_34 = arith.constant dense<0.000000e+00> : vector<32x8xf32>
    %50 = tpu.matmul %4, %49, %cst_34 {dimension_numbers = #tpu.dot_dimension_numbers<[1], [0], [0], [1], [0, 0, 1, 1], [], []>} : vector<32x32xbf16>, vector<32x8xbf16>, vector<32x8xf32> -> vector<32x8xf32>
    %c1_35 = arith.constant 1 : index
    %c0_36 = arith.constant 0 : index
    %c0_37 = arith.constant 0 : index
    %51 = vector.load %arg6[%c1_35, %c0_36, %c0_37] : memref<4x1x8xf32, #tpu.memory_space<vmem>>, vector<1x1x8xf32>
    %52 = vector.shape_cast %51 : vector<1x1x8xf32> to vector<1x8xf32>
    %53 = vector.broadcast %52 : vector<1x8xf32> to vector<32x8xf32>
    %54 = arith.addf %50, %53 : vector<32x8xf32>
    %c1_38 = arith.constant 1 : index
    %c0_39 = arith.constant 0 : index
    %c0_40 = arith.constant 0 : index
    %55 = vector.load %arg4[%c1_38, %c0_39, %c0_40] : memref<4x32x8xbf16, #tpu.memory_space<vmem>>, vector<1x32x8xbf16>
    %56 = vector.shape_cast %55 : vector<1x32x8xbf16> to vector<32x8xbf16>
    %cst_41 = arith.constant dense<0.000000e+00> : vector<32x8xf32>
    %57 = tpu.matmul %4, %56, %cst_41 {dimension_numbers = #tpu.dot_dimension_numbers<[1], [0], [0], [1], [0, 0, 1, 1], [], []>} : vector<32x32xbf16>, vector<32x8xbf16>, vector<32x8xf32> -> vector<32x8xf32>
    %c1_42 = arith.constant 1 : index
    %c0_43 = arith.constant 0 : index
    %c0_44 = arith.constant 0 : index
    %58 = vector.load %arg7[%c1_42, %c0_43, %c0_44] : memref<4x1x8xf32, #tpu.memory_space<vmem>>, vector<1x1x8xf32>
    %59 = vector.shape_cast %58 : vector<1x1x8xf32> to vector<1x8xf32>
    %60 = vector.broadcast %59 : vector<1x8xf32> to vector<32x8xf32>
    %61 = arith.addf %57, %60 : vector<32x8xf32>
    %c1_45 = arith.constant 1 : index
    %c0_46 = arith.constant 0 : index
    %c0_47 = arith.constant 0 : index
    %62 = vector.load %arg5[%c1_45, %c0_46, %c0_47] : memref<4x32x8xbf16, #tpu.memory_space<vmem>>, vector<1x32x8xbf16>
    %63 = vector.shape_cast %62 : vector<1x32x8xbf16> to vector<32x8xbf16>
    %cst_48 = arith.constant dense<0.000000e+00> : vector<32x8xf32>
    %64 = tpu.matmul %3, %63, %cst_48 {dimension_numbers = #tpu.dot_dimension_numbers<[1], [0], [0], [1], [0, 0, 1, 1], [], []>} : vector<32x32xbf16>, vector<32x8xbf16>, vector<32x8xf32> -> vector<32x8xf32>
    %c1_49 = arith.constant 1 : index
    %c0_50 = arith.constant 0 : index
    %c0_51 = arith.constant 0 : index
    %65 = vector.load %arg8[%c1_49, %c0_50, %c0_51] : memref<4x1x8xf32, #tpu.memory_space<vmem>>, vector<1x1x8xf32>
    %66 = vector.shape_cast %65 : vector<1x1x8xf32> to vector<1x8xf32>
    %67 = vector.broadcast %66 : vector<1x8xf32> to vector<32x8xf32>
    %68 = arith.addf %64, %67 : vector<32x8xf32>
    %69 = vector.shape_cast %54 : vector<32x8xf32> to vector<4x8x8xf32>
    %70 = vector.shape_cast %61 : vector<32x8xf32> to vector<4x8x8xf32>
    %71 = vector.shape_cast %68 : vector<32x8xf32> to vector<4x8x8xf32>
    "tpu.trace_start"() <{level = 10 : i32, message = "bqd,bkd->bqk"}> : () -> ()
    %cst_52 = arith.constant dense<0.000000e+00> : vector<4x8x8xf32>
    %72 = tpu.matmul %69, %70, %cst_52 {dimension_numbers = #tpu.dot_dimension_numbers<[2], [2], [1], [1], [0, 0, 0, 1, 1, 1], [0], [0]>} : vector<4x8x8xf32>, vector<4x8x8xf32>, vector<4x8x8xf32> -> vector<4x8x8xf32>
    "tpu.trace_stop"() : () -> ()
    %cst_53 = arith.constant dense<0xFF800000> : vector<4x8xf32>
    %73 = vector.multi_reduction <maximumf>, %72, %cst_53 [2] : vector<4x8x8xf32> to vector<4x8xf32>
    %74 = vector.shape_cast %73 : vector<4x8xf32> to vector<4x8x1xf32>
    %75 = vector.broadcast %74 : vector<4x8x1xf32> to vector<4x8x8xf32>
    %76 = arith.subf %72, %75 : vector<4x8x8xf32>
    %77 = math.exp %76 : vector<4x8x8xf32>
    %cst_54 = arith.constant dense<0.000000e+00> : vector<4x8xf32>
    %78 = vector.multi_reduction <add>, %77, %cst_54 [2] : vector<4x8x8xf32> to vector<4x8xf32>
    %79 = vector.shape_cast %78 : vector<4x8xf32> to vector<4x8x1xf32>
    %80 = tpu.reciprocal %79 {approx = true} : vector<4x8x1xf32> -> vector<4x8x1xf32>
    %81 = vector.broadcast %80 : vector<4x8x1xf32> to vector<4x8x8xf32>
    %82 = arith.mulf %77, %81 : vector<4x8x8xf32>
    "tpu.trace_start"() <{level = 10 : i32, message = "bqk,bkd->bqd"}> : () -> ()
    %cst_55 = arith.constant dense<0.000000e+00> : vector<4x8x8xf32>
    %83 = tpu.matmul %82, %71, %cst_55 {dimension_numbers = #tpu.dot_dimension_numbers<[2], [1], [1], [2], [0, 0, 0, 1, 1, 2], [0], [0]>} : vector<4x8x8xf32>, vector<4x8x8xf32>, vector<4x8x8xf32> -> vector<4x8x8xf32>
    "tpu.trace_stop"() : () -> ()
    %84 = vector.shape_cast %83 : vector<4x8x8xf32> to vector<32x8xf32>
    %85 = arith.truncf %84 : vector<32x8xf32> to vector<32x8xbf16>
    %c1_56 = arith.constant 1 : index
    %c0_57 = arith.constant 0 : index
    %c0_58 = arith.constant 0 : index
    %86 = vector.load %arg9[%c1_56, %c0_57, %c0_58] : memref<4x8x32xbf16, #tpu.memory_space<vmem>>, vector<1x8x32xbf16>
    %87 = vector.shape_cast %86 : vector<1x8x32xbf16> to vector<8x32xbf16>
    %cst_59 = arith.constant dense<0.000000e+00> : vector<32x32xf32>
    %88 = tpu.matmul %85, %87, %cst_59 {dimension_numbers = #tpu.dot_dimension_numbers<[1], [0], [0], [1], [0, 0, 1, 1], [], []>} : vector<32x8xbf16>, vector<8x32xbf16>, vector<32x32xf32> -> vector<32x32xf32>
    %89 = arith.addf %47, %88 : vector<32x32xf32>
    %c2 = arith.constant 2 : index
    %c0_60 = arith.constant 0 : index
    %c0_61 = arith.constant 0 : index
    %90 = vector.load %arg3[%c2, %c0_60, %c0_61] : memref<4x32x8xbf16, #tpu.memory_space<vmem>>, vector<1x32x8xbf16>
    %91 = vector.shape_cast %90 : vector<1x32x8xbf16> to vector<32x8xbf16>
    %cst_62 = arith.constant dense<0.000000e+00> : vector<32x8xf32>
    %92 = tpu.matmul %4, %91, %cst_62 {dimension_numbers = #tpu.dot_dimension_numbers<[1], [0], [0], [1], [0, 0, 1, 1], [], []>} : vector<32x32xbf16>, vector<32x8xbf16>, vector<32x8xf32> -> vector<32x8xf32>
    %c2_63 = arith.constant 2 : index
    %c0_64 = arith.constant 0 : index
    %c0_65 = arith.constant 0 : index
    %93 = vector.load %arg6[%c2_63, %c0_64, %c0_65] : memref<4x1x8xf32, #tpu.memory_space<vmem>>, vector<1x1x8xf32>
    %94 = vector.shape_cast %93 : vector<1x1x8xf32> to vector<1x8xf32>
    %95 = vector.broadcast %94 : vector<1x8xf32> to vector<32x8xf32>
    %96 = arith.addf %92, %95 : vector<32x8xf32>
    %c2_66 = arith.constant 2 : index
    %c0_67 = arith.constant 0 : index
    %c0_68 = arith.constant 0 : index
    %97 = vector.load %arg4[%c2_66, %c0_67, %c0_68] : memref<4x32x8xbf16, #tpu.memory_space<vmem>>, vector<1x32x8xbf16>
    %98 = vector.shape_cast %97 : vector<1x32x8xbf16> to vector<32x8xbf16>
    %cst_69 = arith.constant dense<0.000000e+00> : vector<32x8xf32>
    %99 = tpu.matmul %4, %98, %cst_69 {dimension_numbers = #tpu.dot_dimension_numbers<[1], [0], [0], [1], [0, 0, 1, 1], [], []>} : vector<32x32xbf16>, vector<32x8xbf16>, vector<32x8xf32> -> vector<32x8xf32>
    %c2_70 = arith.constant 2 : index
    %c0_71 = arith.constant 0 : index
    %c0_72 = arith.constant 0 : index
    %100 = vector.load %arg7[%c2_70, %c0_71, %c0_72] : memref<4x1x8xf32, #tpu.memory_space<vmem>>, vector<1x1x8xf32>
    %101 = vector.shape_cast %100 : vector<1x1x8xf32> to vector<1x8xf32>
    %102 = vector.broadcast %101 : vector<1x8xf32> to vector<32x8xf32>
    %103 = arith.addf %99, %102 : vector<32x8xf32>
    %c2_73 = arith.constant 2 : index
    %c0_74 = arith.constant 0 : index
    %c0_75 = arith.constant 0 : index
    %104 = vector.load %arg5[%c2_73, %c0_74, %c0_75] : memref<4x32x8xbf16, #tpu.memory_space<vmem>>, vector<1x32x8xbf16>
    %105 = vector.shape_cast %104 : vector<1x32x8xbf16> to vector<32x8xbf16>
    %cst_76 = arith.constant dense<0.000000e+00> : vector<32x8xf32>
    %106 = tpu.matmul %3, %105, %cst_76 {dimension_numbers = #tpu.dot_dimension_numbers<[1], [0], [0], [1], [0, 0, 1, 1], [], []>} : vector<32x32xbf16>, vector<32x8xbf16>, vector<32x8xf32> -> vector<32x8xf32>
    %c2_77 = arith.constant 2 : index
    %c0_78 = arith.constant 0 : index
    %c0_79 = arith.constant 0 : index
    %107 = vector.load %arg8[%c2_77, %c0_78, %c0_79] : memref<4x1x8xf32, #tpu.memory_space<vmem>>, vector<1x1x8xf32>
    %108 = vector.shape_cast %107 : vector<1x1x8xf32> to vector<1x8xf32>
    %109 = vector.broadcast %108 : vector<1x8xf32> to vector<32x8xf32>
    %110 = arith.addf %106, %109 : vector<32x8xf32>
    %111 = vector.shape_cast %96 : vector<32x8xf32> to vector<4x8x8xf32>
    %112 = vector.shape_cast %103 : vector<32x8xf32> to vector<4x8x8xf32>
    %113 = vector.shape_cast %110 : vector<32x8xf32> to vector<4x8x8xf32>
    "tpu.trace_start"() <{level = 10 : i32, message = "bqd,bkd->bqk"}> : () -> ()
    %cst_80 = arith.constant dense<0.000000e+00> : vector<4x8x8xf32>
    %114 = tpu.matmul %111, %112, %cst_80 {dimension_numbers = #tpu.dot_dimension_numbers<[2], [2], [1], [1], [0, 0, 0, 1, 1, 1], [0], [0]>} : vector<4x8x8xf32>, vector<4x8x8xf32>, vector<4x8x8xf32> -> vector<4x8x8xf32>
    "tpu.trace_stop"() : () -> ()
    %cst_81 = arith.constant dense<0xFF800000> : vector<4x8xf32>
    %115 = vector.multi_reduction <maximumf>, %114, %cst_81 [2] : vector<4x8x8xf32> to vector<4x8xf32>
    %116 = vector.shape_cast %115 : vector<4x8xf32> to vector<4x8x1xf32>
    %117 = vector.broadcast %116 : vector<4x8x1xf32> to vector<4x8x8xf32>
    %118 = arith.subf %114, %117 : vector<4x8x8xf32>
    %119 = math.exp %118 : vector<4x8x8xf32>
    %cst_82 = arith.constant dense<0.000000e+00> : vector<4x8xf32>
    %120 = vector.multi_reduction <add>, %119, %cst_82 [2] : vector<4x8x8xf32> to vector<4x8xf32>
    %121 = vector.shape_cast %120 : vector<4x8xf32> to vector<4x8x1xf32>
    %122 = tpu.reciprocal %121 {approx = true} : vector<4x8x1xf32> -> vector<4x8x1xf32>
    %123 = vector.broadcast %122 : vector<4x8x1xf32> to vector<4x8x8xf32>
    %124 = arith.mulf %119, %123 : vector<4x8x8xf32>
    "tpu.trace_start"() <{level = 10 : i32, message = "bqk,bkd->bqd"}> : () -> ()
    %cst_83 = arith.constant dense<0.000000e+00> : vector<4x8x8xf32>
    %125 = tpu.matmul %124, %113, %cst_83 {dimension_numbers = #tpu.dot_dimension_numbers<[2], [1], [1], [2], [0, 0, 0, 1, 1, 2], [0], [0]>} : vector<4x8x8xf32>, vector<4x8x8xf32>, vector<4x8x8xf32> -> vector<4x8x8xf32>
    "tpu.trace_stop"() : () -> ()
    %126 = vector.shape_cast %125 : vector<4x8x8xf32> to vector<32x8xf32>
    %127 = arith.truncf %126 : vector<32x8xf32> to vector<32x8xbf16>
    %c2_84 = arith.constant 2 : index
    %c0_85 = arith.constant 0 : index
    %c0_86 = arith.constant 0 : index
    %128 = vector.load %arg9[%c2_84, %c0_85, %c0_86] : memref<4x8x32xbf16, #tpu.memory_space<vmem>>, vector<1x8x32xbf16>
    %129 = vector.shape_cast %128 : vector<1x8x32xbf16> to vector<8x32xbf16>
    %cst_87 = arith.constant dense<0.000000e+00> : vector<32x32xf32>
    %130 = tpu.matmul %127, %129, %cst_87 {dimension_numbers = #tpu.dot_dimension_numbers<[1], [0], [0], [1], [0, 0, 1, 1], [], []>} : vector<32x8xbf16>, vector<8x32xbf16>, vector<32x32xf32> -> vector<32x32xf32>
    %131 = arith.addf %89, %130 : vector<32x32xf32>
    %c3 = arith.constant 3 : index
    %c0_88 = arith.constant 0 : index
    %c0_89 = arith.constant 0 : index
    %132 = vector.load %arg3[%c3, %c0_88, %c0_89] : memref<4x32x8xbf16, #tpu.memory_space<vmem>>, vector<1x32x8xbf16>
    %133 = vector.shape_cast %132 : vector<1x32x8xbf16> to vector<32x8xbf16>
    %cst_90 = arith.constant dense<0.000000e+00> : vector<32x8xf32>
    %134 = tpu.matmul %4, %133, %cst_90 {dimension_numbers = #tpu.dot_dimension_numbers<[1], [0], [0], [1], [0, 0, 1, 1], [], []>} : vector<32x32xbf16>, vector<32x8xbf16>, vector<32x8xf32> -> vector<32x8xf32>
    %c3_91 = arith.constant 3 : index
    %c0_92 = arith.constant 0 : index
    %c0_93 = arith.constant 0 : index
    %135 = vector.load %arg6[%c3_91, %c0_92, %c0_93] : memref<4x1x8xf32, #tpu.memory_space<vmem>>, vector<1x1x8xf32>
    %136 = vector.shape_cast %135 : vector<1x1x8xf32> to vector<1x8xf32>
    %137 = vector.broadcast %136 : vector<1x8xf32> to vector<32x8xf32>
    %138 = arith.addf %134, %137 : vector<32x8xf32>
    %c3_94 = arith.constant 3 : index
    %c0_95 = arith.constant 0 : index
    %c0_96 = arith.constant 0 : index
    %139 = vector.load %arg4[%c3_94, %c0_95, %c0_96] : memref<4x32x8xbf16, #tpu.memory_space<vmem>>, vector<1x32x8xbf16>
    %140 = vector.shape_cast %139 : vector<1x32x8xbf16> to vector<32x8xbf16>
    %cst_97 = arith.constant dense<0.000000e+00> : vector<32x8xf32>
    %141 = tpu.matmul %4, %140, %cst_97 {dimension_numbers = #tpu.dot_dimension_numbers<[1], [0], [0], [1], [0, 0, 1, 1], [], []>} : vector<32x32xbf16>, vector<32x8xbf16>, vector<32x8xf32> -> vector<32x8xf32>
    %c3_98 = arith.constant 3 : index
    %c0_99 = arith.constant 0 : index
    %c0_100 = arith.constant 0 : index
    %142 = vector.load %arg7[%c3_98, %c0_99, %c0_100] : memref<4x1x8xf32, #tpu.memory_space<vmem>>, vector<1x1x8xf32>
    %143 = vector.shape_cast %142 : vector<1x1x8xf32> to vector<1x8xf32>
    %144 = vector.broadcast %143 : vector<1x8xf32> to vector<32x8xf32>
    %145 = arith.addf %141, %144 : vector<32x8xf32>
    %c3_101 = arith.constant 3 : index
    %c0_102 = arith.constant 0 : index
    %c0_103 = arith.constant 0 : index
    %146 = vector.load %arg5[%c3_101, %c0_102, %c0_103] : memref<4x32x8xbf16, #tpu.memory_space<vmem>>, vector<1x32x8xbf16>
    %147 = vector.shape_cast %146 : vector<1x32x8xbf16> to vector<32x8xbf16>
    %cst_104 = arith.constant dense<0.000000e+00> : vector<32x8xf32>
    %148 = tpu.matmul %3, %147, %cst_104 {dimension_numbers = #tpu.dot_dimension_numbers<[1], [0], [0], [1], [0, 0, 1, 1], [], []>} : vector<32x32xbf16>, vector<32x8xbf16>, vector<32x8xf32> -> vector<32x8xf32>
    %c3_105 = arith.constant 3 : index
    %c0_106 = arith.constant 0 : index
    %c0_107 = arith.constant 0 : index
    %149 = vector.load %arg8[%c3_105, %c0_106, %c0_107] : memref<4x1x8xf32, #tpu.memory_space<vmem>>, vector<1x1x8xf32>
    %150 = vector.shape_cast %149 : vector<1x1x8xf32> to vector<1x8xf32>
    %151 = vector.broadcast %150 : vector<1x8xf32> to vector<32x8xf32>
    %152 = arith.addf %148, %151 : vector<32x8xf32>
    %153 = vector.shape_cast %138 : vector<32x8xf32> to vector<4x8x8xf32>
    %154 = vector.shape_cast %145 : vector<32x8xf32> to vector<4x8x8xf32>
    %155 = vector.shape_cast %152 : vector<32x8xf32> to vector<4x8x8xf32>
    "tpu.trace_start"() <{level = 10 : i32, message = "bqd,bkd->bqk"}> : () -> ()
    %cst_108 = arith.constant dense<0.000000e+00> : vector<4x8x8xf32>
    %156 = tpu.matmul %153, %154, %cst_108 {dimension_numbers = #tpu.dot_dimension_numbers<[2], [2], [1], [1], [0, 0, 0, 1, 1, 1], [0], [0]>} : vector<4x8x8xf32>, vector<4x8x8xf32>, vector<4x8x8xf32> -> vector<4x8x8xf32>
    "tpu.trace_stop"() : () -> ()
    %cst_109 = arith.constant dense<0xFF800000> : vector<4x8xf32>
    %157 = vector.multi_reduction <maximumf>, %156, %cst_109 [2] : vector<4x8x8xf32> to vector<4x8xf32>
    %158 = vector.shape_cast %157 : vector<4x8xf32> to vector<4x8x1xf32>
    %159 = vector.broadcast %158 : vector<4x8x1xf32> to vector<4x8x8xf32>
    %160 = arith.subf %156, %159 : vector<4x8x8xf32>
    %161 = math.exp %160 : vector<4x8x8xf32>
    %cst_110 = arith.constant dense<0.000000e+00> : vector<4x8xf32>
    %162 = vector.multi_reduction <add>, %161, %cst_110 [2] : vector<4x8x8xf32> to vector<4x8xf32>
    %163 = vector.shape_cast %162 : vector<4x8xf32> to vector<4x8x1xf32>
    %164 = tpu.reciprocal %163 {approx = true} : vector<4x8x1xf32> -> vector<4x8x1xf32>
    %165 = vector.broadcast %164 : vector<4x8x1xf32> to vector<4x8x8xf32>
    %166 = arith.mulf %161, %165 : vector<4x8x8xf32>
    "tpu.trace_start"() <{level = 10 : i32, message = "bqk,bkd->bqd"}> : () -> ()
    %cst_111 = arith.constant dense<0.000000e+00> : vector<4x8x8xf32>
    %167 = tpu.matmul %166, %155, %cst_111 {dimension_numbers = #tpu.dot_dimension_numbers<[2], [1], [1], [2], [0, 0, 0, 1, 1, 2], [0], [0]>} : vector<4x8x8xf32>, vector<4x8x8xf32>, vector<4x8x8xf32> -> vector<4x8x8xf32>
    "tpu.trace_stop"() : () -> ()
    %168 = vector.shape_cast %167 : vector<4x8x8xf32> to vector<32x8xf32>
    %169 = arith.truncf %168 : vector<32x8xf32> to vector<32x8xbf16>
    %c3_112 = arith.constant 3 : index
    %c0_113 = arith.constant 0 : index
    %c0_114 = arith.constant 0 : index
    %170 = vector.load %arg9[%c3_112, %c0_113, %c0_114] : memref<4x8x32xbf16, #tpu.memory_space<vmem>>, vector<1x8x32xbf16>
    %171 = vector.shape_cast %170 : vector<1x8x32xbf16> to vector<8x32xbf16>
    %cst_115 = arith.constant dense<0.000000e+00> : vector<32x32xf32>
    %172 = tpu.matmul %169, %171, %cst_115 {dimension_numbers = #tpu.dot_dimension_numbers<[1], [0], [0], [1], [0, 0, 1, 1], [], []>} : vector<32x8xbf16>, vector<8x32xbf16>, vector<32x32xf32> -> vector<32x32xf32>
    %173 = arith.addf %131, %172 : vector<32x32xf32>
    %c0_116 = arith.constant 0 : index
    %c0_117 = arith.constant 0 : index
    %174 = vector.load %arg10[%c0_116, %c0_117] : memref<1x32xf32, #tpu.memory_space<vmem>>, vector<1x32xf32>
    %175 = vector.broadcast %174 : vector<1x32xf32> to vector<32x32xf32>
    %176 = arith.addf %173, %175 : vector<32x32xf32>
    %177 = arith.addf %0, %176 : vector<32x32xf32>
    %c0_118 = arith.constant 0 : index
    %c0_119 = arith.constant 0 : index
    %178 = vector.load %arg11[%c0_118, %c0_119] : memref<1x32xf32, #tpu.memory_space<vmem>>, vector<1x32xf32>
    %c0_120 = arith.constant 0 : index
    %c0_121 = arith.constant 0 : index
    %179 = vector.load %arg12[%c0_120, %c0_121] : memref<1x32xf32, #tpu.memory_space<vmem>>, vector<1x32xf32>
    %cst_122 = arith.constant dense<0.000000e+00> : vector<32xf32>
    %180 = vector.multi_reduction <add>, %177, %cst_122 [1] : vector<32x32xf32> to vector<32xf32>
    %181 = vector.shape_cast %180 : vector<32xf32> to vector<32x1xf32>
    %cst_123 = arith.constant 3.200000e+01 : f32
    %182 = vector.broadcast %cst_123 : f32 to vector<32x1xf32>
    %183 = arith.divf %181, %182 : vector<32x1xf32>
    %184 = vector.broadcast %183 : vector<32x1xf32> to vector<32x32xf32>
    %185 = arith.subf %177, %184 : vector<32x32xf32>
    %186 = vector.broadcast %183 : vector<32x1xf32> to vector<32x32xf32>
    %187 = arith.subf %177, %186 : vector<32x32xf32>
    %188 = arith.mulf %185, %187 : vector<32x32xf32>
    %cst_124 = arith.constant dense<0.000000e+00> : vector<32xf32>
    %189 = vector.multi_reduction <add>, %188, %cst_124 [1] : vector<32x32xf32> to vector<32xf32>
    %190 = vector.shape_cast %189 : vector<32xf32> to vector<32x1xf32>
    %cst_125 = arith.constant 3.200000e+01 : f32
    %191 = vector.broadcast %cst_125 : f32 to vector<32x1xf32>
    %192 = arith.divf %190, %191 : vector<32x1xf32>
    %193 = vector.broadcast %183 : vector<32x1xf32> to vector<32x32xf32>
    %194 = arith.subf %177, %193 : vector<32x32xf32>
    %cst_126 = arith.constant 9.99999974E-6 : f32
    %195 = vector.broadcast %cst_126 : f32 to vector<32x1xf32>
    %196 = arith.addf %192, %195 : vector<32x1xf32>
    %197 = math.rsqrt %196 : vector<32x1xf32>
    %198 = vector.broadcast %197 : vector<32x1xf32> to vector<32x32xf32>
    %199 = arith.mulf %194, %198 : vector<32x32xf32>
    %200 = vector.broadcast %178 : vector<1x32xf32> to vector<32x32xf32>
    %201 = arith.mulf %199, %200 : vector<32x32xf32>
    %202 = vector.broadcast %179 : vector<1x32xf32> to vector<32x32xf32>
    %203 = arith.addf %201, %202 : vector<32x32xf32>
    %204 = arith.truncf %203 : vector<32x32xf32> to vector<32x32xbf16>
    %c0_127 = arith.constant 0 : index
    %c0_128 = arith.constant 0 : index
    %205 = vector.load %arg13[%c0_127, %c0_128] : memref<32x64xbf16, #tpu.memory_space<vmem>>, vector<32x64xbf16>
    %cst_129 = arith.constant dense<0.000000e+00> : vector<32x64xf32>
    %206 = tpu.matmul %204, %205, %cst_129 {dimension_numbers = #tpu.dot_dimension_numbers<[1], [0], [0], [1], [0, 0, 1, 1], [], []>} : vector<32x32xbf16>, vector<32x64xbf16>, vector<32x64xf32> -> vector<32x64xf32>
    %c0_130 = arith.constant 0 : index
    %c0_131 = arith.constant 0 : index
    %207 = vector.load %arg14[%c0_130, %c0_131] : memref<1x64xf32, #tpu.memory_space<vmem>>, vector<1x64xf32>
    %208 = vector.broadcast %207 : vector<1x64xf32> to vector<32x64xf32>
    %209 = arith.addf %206, %208 : vector<32x64xf32>
    %cst_132 = arith.constant 0.000000e+00 : f32
    %210 = vector.broadcast %cst_132 : f32 to vector<32x64xf32>
    %211 = arith.maximumf %209, %210 : vector<32x64xf32>
    %212 = arith.truncf %211 : vector<32x64xf32> to vector<32x64xbf16>
    %c0_133 = arith.constant 0 : index
    %c0_134 = arith.constant 0 : index
    %213 = vector.load %arg15[%c0_133, %c0_134] : memref<64x32xbf16, #tpu.memory_space<vmem>>, vector<64x32xbf16>
    %cst_135 = arith.constant dense<0.000000e+00> : vector<32x32xf32>
    %214 = tpu.matmul %212, %213, %cst_135 {dimension_numbers = #tpu.dot_dimension_numbers<[1], [0], [0], [1], [0, 0, 1, 1], [], []>} : vector<32x64xbf16>, vector<64x32xbf16>, vector<32x32xf32> -> vector<32x32xf32>
    %c0_136 = arith.constant 0 : index
    %c0_137 = arith.constant 0 : index
    %215 = vector.load %arg16[%c0_136, %c0_137] : memref<1x32xf32, #tpu.memory_space<vmem>>, vector<1x32xf32>
    %216 = vector.broadcast %215 : vector<1x32xf32> to vector<32x32xf32>
    %217 = arith.addf %214, %216 : vector<32x32xf32>
    %218 = arith.addf %203, %217 : vector<32x32xf32>
    %c0_138 = arith.constant 0 : index
    %c0_139 = arith.constant 0 : index
    %219 = vector.load %arg17[%c0_138, %c0_139] : memref<1x32xf32, #tpu.memory_space<vmem>>, vector<1x32xf32>
    %c0_140 = arith.constant 0 : index
    %c0_141 = arith.constant 0 : index
    %220 = vector.load %arg18[%c0_140, %c0_141] : memref<1x32xf32, #tpu.memory_space<vmem>>, vector<1x32xf32>
    %cst_142 = arith.constant dense<0.000000e+00> : vector<32xf32>
    %221 = vector.multi_reduction <add>, %218, %cst_142 [1] : vector<32x32xf32> to vector<32xf32>
    %222 = vector.shape_cast %221 : vector<32xf32> to vector<32x1xf32>
    %cst_143 = arith.constant 3.200000e+01 : f32
    %223 = vector.broadcast %cst_143 : f32 to vector<32x1xf32>
    %224 = arith.divf %222, %223 : vector<32x1xf32>
    %225 = vector.broadcast %224 : vector<32x1xf32> to vector<32x32xf32>
    %226 = arith.subf %218, %225 : vector<32x32xf32>
    %227 = vector.broadcast %224 : vector<32x1xf32> to vector<32x32xf32>
    %228 = arith.subf %218, %227 : vector<32x32xf32>
    %229 = arith.mulf %226, %228 : vector<32x32xf32>
    %cst_144 = arith.constant dense<0.000000e+00> : vector<32xf32>
    %230 = vector.multi_reduction <add>, %229, %cst_144 [1] : vector<32x32xf32> to vector<32xf32>
    %231 = vector.shape_cast %230 : vector<32xf32> to vector<32x1xf32>
    %cst_145 = arith.constant 3.200000e+01 : f32
    %232 = vector.broadcast %cst_145 : f32 to vector<32x1xf32>
    %233 = arith.divf %231, %232 : vector<32x1xf32>
    %234 = vector.broadcast %224 : vector<32x1xf32> to vector<32x32xf32>
    %235 = arith.subf %218, %234 : vector<32x32xf32>
    %cst_146 = arith.constant 9.99999974E-6 : f32
    %236 = vector.broadcast %cst_146 : f32 to vector<32x1xf32>
    %237 = arith.addf %233, %236 : vector<32x1xf32>
    %238 = math.rsqrt %237 : vector<32x1xf32>
    %239 = vector.broadcast %238 : vector<32x1xf32> to vector<32x32xf32>
    %240 = arith.mulf %235, %239 : vector<32x32xf32>
    %241 = vector.broadcast %219 : vector<1x32xf32> to vector<32x32xf32>
    %242 = arith.mulf %240, %241 : vector<32x32xf32>
    %243 = vector.broadcast %220 : vector<1x32xf32> to vector<32x32xf32>
    %244 = arith.addf %242, %243 : vector<32x32xf32>
    %c0_147 = arith.constant 0 : index
    %c0_148 = arith.constant 0 : index
    %245 = vector.load %arg19[%c0_147, %c0_148] : memref<32x32xf32, #tpu.memory_space<vmem>>, vector<32x32xf32>
    tpu.vector_store %arg19[%c0_147, %c0_148], %244 {strides = array<i32>} : memref<32x32xf32, #tpu.memory_space<vmem>>, vector<32x32xf32>,
    return
  }
  func.func @transform_0(%arg0: i32) -> (i32, i32) {
    %c0_i32 = arith.constant 0 : i32
    %c0_i32_0 = arith.constant 0 : i32
    return %arg0, %c0_i32 : i32, i32
  }
  func.func @transform_1(%arg0: i32) -> (i32, i32) {
    %c0_i32 = arith.constant 0 : i32
    %c0_i32_0 = arith.constant 0 : i32
    return %arg0, %c0_i32 : i32, i32
  }
  func.func @transform_2(%arg0: i32) -> (i32, i32, i32) {
    %c0_i32 = arith.constant 0 : i32
    %c0_i32_0 = arith.constant 0 : i32
    %c0_i32_1 = arith.constant 0 : i32
    %c0_i32_2 = arith.constant 0 : i32
    return %c0_i32, %c0_i32_0, %c0_i32_1 : i32, i32, i32
  }
  func.func @transform_3(%arg0: i32) -> (i32, i32, i32) {
    %c0_i32 = arith.constant 0 : i32
    %c0_i32_0 = arith.constant 0 : i32
    %c0_i32_1 = arith.constant 0 : i32
    %c0_i32_2 = arith.constant 0 : i32
    return %c0_i32, %c0_i32_0, %c0_i32_1 : i32, i32, i32
  }
  func.func @transform_4(%arg0: i32) -> (i32, i32, i32) {
    %c0_i32 = arith.constant 0 : i32
    %c0_i32_0 = arith.constant 0 : i32
    %c0_i32_1 = arith.constant 0 : i32
    %c0_i32_2 = arith.constant 0 : i32
    return %c0_i32, %c0_i32_0, %c0_i32_1 : i32, i32, i32
  }
  func.func @transform_5(%arg0: i32) -> (i32, i32, i32) {
    %c0_i32 = arith.constant 0 : i32
    %c0_i32_0 = arith.constant 0 : i32
    %c0_i32_1 = arith.constant 0 : i32
    %c0_i32_2 = arith.constant 0 : i32
    return %c0_i32, %c0_i32_0, %c0_i32_1 : i32, i32, i32
  }
  func.func @transform_6(%arg0: i32) -> (i32, i32, i32) {
    %c0_i32 = arith.constant 0 : i32
    %c0_i32_0 = arith.constant 0 : i32
    %c0_i32_1 = arith.constant 0 : i32
    %c0_i32_2 = arith.constant 0 : i32
    return %c0_i32, %c0_i32_0, %c0_i32_1 : i32, i32, i32
  }
  func.func @transform_7(%arg0: i32) -> (i32, i32, i32) {
    %c0_i32 = arith.constant 0 : i32
    %c0_i32_0 = arith.constant 0 : i32
    %c0_i32_1 = arith.constant 0 : i32
    %c0_i32_2 = arith.constant 0 : i32
    return %c0_i32, %c0_i32_0, %c0_i32_1 : i32, i32, i32
  }
  func.func @transform_8(%arg0: i32) -> (i32, i32, i32) {
    %c0_i32 = arith.constant 0 : i32
    %c0_i32_0 = arith.constant 0 : i32
    %c0_i32_1 = arith.constant 0 : i32
    %c0_i32_2 = arith.constant 0 : i32
    return %c0_i32, %c0_i32_0, %c0_i32_1 : i32, i32, i32
  }
  func.func @transform_9(%arg0: i32) -> (i32, i32) {
    %c0_i32 = arith.constant 0 : i32
    %c0_i32_0 = arith.constant 0 : i32
    %c0_i32_1 = arith.constant 0 : i32
    return %c0_i32, %c0_i32_0 : i32, i32
  }
  func.func @transform_10(%arg0: i32) -> (i32, i32) {
    %c0_i32 = arith.constant 0 : i32
    %c0_i32_0 = arith.constant 0 : i32
    %c0_i32_1 = arith.constant 0 : i32
    return %c0_i32, %c0_i32_0 : i32, i32
  }
  func.func @transform_11(%arg0: i32) -> (i32, i32) {
    %c0_i32 = arith.constant 0 : i32
    %c0_i32_0 = arith.constant 0 : i32
    %c0_i32_1 = arith.constant 0 : i32
    return %c0_i32, %c0_i32_0 : i32, i32
  }
  func.func @transform_12(%arg0: i32) -> (i32, i32) {
    %c0_i32 = arith.constant 0 : i32
    %c0_i32_0 = arith.constant 0 : i32
    %c0_i32_1 = arith.constant 0 : i32
    return %c0_i32, %c0_i32_0 : i32, i32
  }
  func.func @transform_13(%arg0: i32) -> (i32, i32) {
    %c0_i32 = arith.constant 0 : i32
    %c0_i32_0 = arith.constant 0 : i32
    %c0_i32_1 = arith.constant 0 : i32
    return %c0_i32, %c0_i32_0 : i32, i32
  }
  func.func @transform_14(%arg0: i32) -> (i32, i32) {
    %c0_i32 = arith.constant 0 : i32
    %c0_i32_0 = arith.constant 0 : i32
    %c0_i32_1 = arith.constant 0 : i32
    return %c0_i32, %c0_i32_0 : i32, i32
  }
  func.func @transform_15(%arg0: i32) -> (i32, i32) {
    %c0_i32 = arith.constant 0 : i32
    %c0_i32_0 = arith.constant 0 : i32
    %c0_i32_1 = arith.constant 0 : i32
    return %c0_i32, %c0_i32_0 : i32, i32
  }
  func.func @transform_16(%arg0: i32) -> (i32, i32) {
    %c0_i32 = arith.constant 0 : i32
    %c0_i32_0 = arith.constant 0 : i32
    %c0_i32_1 = arith.constant 0 : i32
    return %c0_i32, %c0_i32_0 : i32, i32
  }
  func.func @transform_17(%arg0: i32) -> (i32, i32) {
    %c0_i32 = arith.constant 0 : i32
    %c0_i32_0 = arith.constant 0 : i32
    %c0_i32_1 = arith.constant 0 : i32
    return %c0_i32, %c0_i32_0 : i32, i32
  }
  func.func @transform_18(%arg0: i32) -> (i32, i32) {
    %c0_i32 = arith.constant 0 : i32
    %c0_i32_0 = arith.constant 0 : i32
    return %arg0, %c0_i32 : i32, i32
  }
}

</mosaic_0001>

<llo_original>
// kernel: tpu_custom_call.1
$region0: #{tpu_custom_call.1}
  #allocation0 [shape = 'u32[]', space=smem, size = 0x4, offset = 0x4, fixed_abs, tag = 'smem constant byte address 0x4 - core index']
  #allocation1 [shape = 'u32[144,128]{1,0:T(1,128)}', space=vmem, size = 0x12000, scoped, tag = 'internal scratch']
  %s0 = inlined_call_operand.vmem [shape: f32[64,32], index: 0, kind: input, shape index: {}]
  %s1 = inlined_call_operand.vmem [shape: f32[64,32], index: 1, kind: input, shape index: {}]
  %s2 = inlined_call_operand.vmem [shape: bf16[4,32,8], index: 2, kind: input, shape index: {}]
  %s3 = inlined_call_operand.vmem [shape: bf16[4,32,8], index: 3, kind: input, shape index: {}]
  %s4 = inlined_call_operand.vmem [shape: bf16[4,32,8], index: 4, kind: input, shape index: {}]
  %s5 = inlined_call_operand.vmem [shape: f32[4,1,8], index: 5, kind: input, shape index: {}]
  %s6 = inlined_call_operand.vmem [shape: f32[4,1,8], index: 6, kind: input, shape index: {}]
  %s7 = inlined_call_operand.vmem [shape: f32[4,1,8], index: 7, kind: input, shape index: {}]
  %s8 = inlined_call_operand.vmem [shape: bf16[4,8,32], index: 8, kind: input, shape index: {}]
  %s9 = inlined_call_operand.vmem [shape: f32[1,32], index: 9, kind: input, shape index: {}]
  %s10 = inlined_call_operand.vmem [shape: f32[1,32], index: 10, kind: input, shape index: {}]
  %s11 = inlined_call_operand.vmem [shape: f32[1,32], index: 11, kind: input, shape index: {}]
  %s12 = inlined_call_operand.vmem [shape: bf16[32,64], index: 12, kind: input, shape index: {}]
  %s13 = inlined_call_operand.vmem [shape: f32[1,64], index: 13, kind: input, shape index: {}]
  %s14 = inlined_call_operand.vmem [shape: bf16[64,32], index: 14, kind: input, shape index: {}]
  %s15 = inlined_call_operand.vmem [shape: f32[1,32], index: 15, kind: input, shape index: {}]
  %s16 = inlined_call_operand.vmem [shape: f32[1,32], index: 16, kind: input, shape index: {}]
  %s17 = inlined_call_operand.vmem [shape: f32[1,32], index: 17, kind: input, shape index: {}]
  %s18 = inlined_call_operand.vmem [shape: f32[64,32], index: 18, kind: output, shape index: {}]
  %s19 = sld [smem:[#allocation0]]
  $region105: #{tpu_custom_call.1} parent=0
    _
  %s21 = ssub.s32 1, %s19
  %s22 = scalar_select 0, %s21, %s19
  loop: start=0, step=1, limit=4
  $region2: #{tpu_custom_call.1} parent=0 // loop_pre_header
    _
  $region3: #{tpu_custom_call.1} parent=0 // loop_header
    %s24 = sphi 0, %s28
    %p25 = scmp.ge.s32.totalorder %s24, 4
    %s34 = sphi 0, %s36
    %s37 = sphi 0, %s34
    %s38 = sphi 0, %s37
    %s54 = sphi 0, %s38
    %s60 = sphi 0, %s62
    %s63 = sphi 0, %s60
    %s64 = sphi 0, %s63
    %s80 = sphi 0, %s64
    %s84 = sphi 0, %s84
    %s86 = sphi 0, %s84
    %s87 = sphi 0, %s86
    %s101 = sphi 0, %s87
    %s105 = sphi 0, %s105
    %s107 = sphi 0, %s105
    %s108 = sphi 0, %s107
    %s122 = sphi 0, %s108
    %s126 = sphi 0, %s126
    %s128 = sphi 0, %s126
    %s129 = sphi 0, %s128
    %s143 = sphi 0, %s129
    %s147 = sphi 0, %s147
    %s149 = sphi 0, %s147
    %s150 = sphi 0, %s149
    %s164 = sphi 0, %s150
    %s168 = sphi 0, %s168
    %s170 = sphi 0, %s168
    %s171 = sphi 0, %s170
    %s185 = sphi 0, %s171
    %s189 = sphi 0, %s189
    %s191 = sphi 0, %s189
    %s192 = sphi 0, %s191
    %s206 = sphi 0, %s192
    %s210 = sphi 0, %s210
    %s212 = sphi 0, %s210
    %s213 = sphi 0, %s212
    %s227 = sphi 0, %s213
    %s231 = sphi 0, %s231
    %s233 = sphi 0, %s231
    %s234 = sphi 0, %s233
    %s248 = sphi 0, %s234
    %s252 = sphi 0, %s252
    %s254 = sphi 0, %s252
    %s255 = sphi 0, %s254
    %s269 = sphi 0, %s255
    %s273 = sphi 0, %s273
    %s275 = sphi 0, %s273
    %s276 = sphi 0, %s275
    %s290 = sphi 0, %s276
    %s294 = sphi 0, %s294
    %s296 = sphi 0, %s294
    %s297 = sphi 0, %s296
    %s311 = sphi 0, %s297
    %s315 = sphi 0, %s315
    %s317 = sphi 0, %s315
    %s318 = sphi 0, %s317
    %s332 = sphi 0, %s318
    %s336 = sphi 0, %s336
    %s338 = sphi 0, %s336
    %s339 = sphi 0, %s338
    %s353 = sphi 0, %s339
    %s357 = sphi 0, %s357
    %s359 = sphi 0, %s357
    %s360 = sphi 0, %s359
    %s374 = sphi 0, %s360
    %s378 = sphi 0, %s378
    %s380 = sphi 0, %s378
    %s381 = sphi 0, %s380
    %s395 = sphi 0, %s381
    %s399 = sphi 0, %s399
    %s401 = sphi 0, %s399
    %s402 = sphi 0, %s401
    %s416 = sphi 0, %s402
    %s422 = sphi 0, %s424
    %s425 = sphi 0, %s422
    %s426 = sphi 0, %s425
    %s442 = sphi 0, %s426
  $region4: #{tpu_custom_call.1} parent=0 // loop_header_branch
    %27 = sbr.rel (%p25) target = $region8
  $region5: #{tpu_custom_call.1} parent=0 // loop_body
    %s29 = ssub.s32 %s24, 1
    %s30 = ssub.s32 %s24, 2
    %s31 = sadd.s32 %s24, 1
    %s32 = ssub.s32 %s24, %s31
    %p33 = scmp.eq.s32.totalorder %s32, 0
    %s35 = sadd.s32 %s34, 1
    %s36 = scalar_select %p33, %s34, %s35
    %p39 = pneg %p33
    %p40 = scmp.eq.s32.totalorder %s24, 1
    %p41 = por %p39, %p40
    %p42 = scmp.ne.s32.totalorder %s34, %s37
    %p43 = scmp.eq.s32.totalorder %s24, 0
    %p44 = por %p42, %p43
    %p45 = scmp.ne.s32.totalorder %s34, %s37
    %p46 = scmp.eq.s32.totalorder %s29, 1
    %p47 = por %p45, %p46
    %p48 = scmp.ne.s32.totalorder %s37, %s38
    %p49 = scmp.eq.s32.totalorder %s29, 0
    %p50 = por %p48, %p49
    %p51 = scmp.ne.s32.totalorder %s37, %s38
    %p52 = scmp.eq.s32.totalorder %s30, 1
    %p53 = por %p51, %p52
    %p55 = scmp.ne.s32.totalorder %s38, %s54
    %p56 = scmp.eq.s32.totalorder %s30, 0
    %p57 = por %p55, %p56
    %s58 = ssub.s32 %s24, %s31
    %p59 = scmp.eq.s32.totalorder %s58, 0
    %s61 = sadd.s32 %s60, 1
    %s62 = scalar_select %p59, %s60, %s61
    %p65 = pneg %p59
    %p66 = scmp.eq.s32.totalorder %s24, 1
    %p67 = por %p65, %p66
    %p68 = scmp.ne.s32.totalorder %s60, %s63
    %p69 = scmp.eq.s32.totalorder %s24, 0
    %p70 = por %p68, %p69
    %p71 = scmp.ne.s32.totalorder %s60, %s63
    %p72 = scmp.eq.s32.totalorder %s29, 1
    %p73 = por %p71, %p72
    %p74 = scmp.ne.s32.totalorder %s63, %s64
    %p75 = scmp.eq.s32.totalorder %s29, 0
    %p76 = por %p74, %p75
    %p77 = scmp.ne.s32.totalorder %s63, %s64
    %p78 = scmp.eq.s32.totalorder %s30, 1
    %p79 = por %p77, %p78
    %p81 = scmp.ne.s32.totalorder %s64, %s80
    %p82 = scmp.eq.s32.totalorder %s30, 0
    %p83 = por %p81, %p82
    %s85 = sadd.s32 %s84, 1
    %p88 = scmp.eq.s32.totalorder %s24, 1
    %p89 = scmp.ne.s32.totalorder %s84, %s86
    %p90 = scmp.eq.s32.totalorder %s24, 0
    %p91 = por %p89, %p90
    %p92 = scmp.ne.s32.totalorder %s84, %s86
    %p93 = scmp.eq.s32.totalorder %s29, 1
    %p94 = por %p92, %p93
    %p95 = scmp.ne.s32.totalorder %s86, %s87
    %p96 = scmp.eq.s32.totalorder %s29, 0
    %p97 = por %p95, %p96
    %p98 = scmp.ne.s32.totalorder %s86, %s87
    %p99 = scmp.eq.s32.totalorder %s30, 1
    %p100 = por %p98, %p99
    %p102 = scmp.ne.s32.totalorder %s87, %s101
    %p103 = scmp.eq.s32.totalorder %s30, 0
    %p104 = por %p102, %p103
    %s106 = sadd.s32 %s105, 1
    %p109 = scmp.eq.s32.totalorder %s24, 1
    %p110 = scmp.ne.s32.totalorder %s105, %s107
    %p111 = scmp.eq.s32.totalorder %s24, 0
    %p112 = por %p110, %p111
    %p113 = scmp.ne.s32.totalorder %s105, %s107
    %p114 = scmp.eq.s32.totalorder %s29, 1
    %p115 = por %p113, %p114
    %p116 = scmp.ne.s32.totalorder %s107, %s108
    %p117 = scmp.eq.s32.totalorder %s29, 0
    %p118 = por %p116, %p117
    %p119 = scmp.ne.s32.totalorder %s107, %s108
    %p120 = scmp.eq.s32.totalorder %s30, 1
    %p121 = por %p119, %p120
    %p123 = scmp.ne.s32.totalorder %s108, %s122
    %p124 = scmp.eq.s32.totalorder %s30, 0
    %p125 = por %p123, %p124
    %s127 = sadd.s32 %s126, 1
    %p130 = scmp.eq.s32.totalorder %s24, 1
    %p131 = scmp.ne.s32.totalorder %s126, %s128
    %p132 = scmp.eq.s32.totalorder %s24, 0
    %p133 = por %p131, %p132
    %p134 = scmp.ne.s32.totalorder %s126, %s128
    %p135 = scmp.eq.s32.totalorder %s29, 1
    %p136 = por %p134, %p135
    %p137 = scmp.ne.s32.totalorder %s128, %s129
    %p138 = scmp.eq.s32.totalorder %s29, 0
    %p139 = por %p137, %p138
    %p140 = scmp.ne.s32.totalorder %s128, %s129
    %p141 = scmp.eq.s32.totalorder %s30, 1
    %p142 = por %p140, %p141
    %p144 = scmp.ne.s32.totalorder %s129, %s143
    %p145 = scmp.eq.s32.totalorder %s30, 0
    %p146 = por %p144, %p145
    %s148 = sadd.s32 %s147, 1
    %p151 = scmp.eq.s32.totalorder %s24, 1
    %p152 = scmp.ne.s32.totalorder %s147, %s149
    %p153 = scmp.eq.s32.totalorder %s24, 0
    %p154 = por %p152, %p153
    %p155 = scmp.ne.s32.totalorder %s147, %s149
    %p156 = scmp.eq.s32.totalorder %s29, 1
    %p157 = por %p155, %p156
    %p158 = scmp.ne.s32.totalorder %s149, %s150
    %p159 = scmp.eq.s32.totalorder %s29, 0
    %p160 = por %p158, %p159
    %p161 = scmp.ne.s32.totalorder %s149, %s150
    %p162 = scmp.eq.s32.totalorder %s30, 1
    %p163 = por %p161, %p162
    %p165 = scmp.ne.s32.totalorder %s150, %s164
    %p166 = scmp.eq.s32.totalorder %s30, 0
    %p167 = por %p165, %p166
    %s169 = sadd.s32 %s168, 1
    %p172 = scmp.eq.s32.totalorder %s24, 1
    %p173 = scmp.ne.s32.totalorder %s168, %s170
    %p174 = scmp.eq.s32.totalorder %s24, 0
    %p175 = por %p173, %p174
    %p176 = scmp.ne.s32.totalorder %s168, %s170
    %p177 = scmp.eq.s32.totalorder %s29, 1
    %p178 = por %p176, %p177
    %p179 = scmp.ne.s32.totalorder %s170, %s171
    %p180 = scmp.eq.s32.totalorder %s29, 0
    %p181 = por %p179, %p180
    %p182 = scmp.ne.s32.totalorder %s170, %s171
    %p183 = scmp.eq.s32.totalorder %s30, 1
    %p184 = por %p182, %p183
    %p186 = scmp.ne.s32.totalorder %s171, %s185
    %p187 = scmp.eq.s32.totalorder %s30, 0
    %p188 = por %p186, %p187
    %s190 = sadd.s32 %s189, 1
    %p193 = scmp.eq.s32.totalorder %s24, 1
    %p194 = scmp.ne.s32.totalorder %s189, %s191
    %p195 = scmp.eq.s32.totalorder %s24, 0
    %p196 = por %p194, %p195
    %p197 = scmp.ne.s32.totalorder %s189, %s191
    %p198 = scmp.eq.s32.totalorder %s29, 1
    %p199 = por %p197, %p198
    %p200 = scmp.ne.s32.totalorder %s191, %s192
    %p201 = scmp.eq.s32.totalorder %s29, 0
    %p202 = por %p200, %p201
    %p203 = scmp.ne.s32.totalorder %s191, %s192
    %p204 = scmp.eq.s32.totalorder %s30, 1
    %p205 = por %p203, %p204
    %p207 = scmp.ne.s32.totalorder %s192, %s206
    %p208 = scmp.eq.s32.totalorder %s30, 0
    %p209 = por %p207, %p208
    %s211 = sadd.s32 %s210, 1
    %p214 = scmp.eq.s32.totalorder %s24, 1
    %p215 = scmp.ne.s32.totalorder %s210, %s212
    %p216 = scmp.eq.s32.totalorder %s24, 0
    %p217 = por %p215, %p216
    %p218 = scmp.ne.s32.totalorder %s210, %s212
    %p219 = scmp.eq.s32.totalorder %s29, 1
    %p220 = por %p218, %p219
    %p221 = scmp.ne.s32.totalorder %s212, %s213
    %p222 = scmp.eq.s32.totalorder %s29, 0
    %p223 = por %p221, %p222
    %p224 = scmp.ne.s32.totalorder %s212, %s213
    %p225 = scmp.eq.s32.totalorder %s30, 1
    %p226 = por %p224, %p225
    %p228 = scmp.ne.s32.totalorder %s213, %s227
    %p229 = scmp.eq.s32.totalorder %s30, 0
    %p230 = por %p228, %p229
    %s232 = sadd.s32 %s231, 1
    %p235 = scmp.eq.s32.totalorder %s24, 1
    %p236 = scmp.ne.s32.totalorder %s231, %s233
    %p237 = scmp.eq.s32.totalorder %s24, 0
    %p238 = por %p236, %p237
    %p239 = scmp.ne.s32.totalorder %s231, %s233
    %p240 = scmp.eq.s32.totalorder %s29, 1
    %p241 = por %p239, %p240
    %p242 = scmp.ne.s32.totalorder %s233, %s234
    %p243 = scmp.eq.s32.totalorder %s29, 0
    %p244 = por %p242, %p243
    %p245 = scmp.ne.s32.totalorder %s233, %s234
    %p246 = scmp.eq.s32.totalorder %s30, 1
    %p247 = por %p245, %p246
    %p249 = scmp.ne.s32.totalorder %s234, %s248
    %p250 = scmp.eq.s32.totalorder %s30, 0
    %p251 = por %p249, %p250
    %s253 = sadd.s32 %s252, 1
    %p256 = scmp.eq.s32.totalorder %s24, 1
    %p257 = scmp.ne.s32.totalorder %s252, %s254
    %p258 = scmp.eq.s32.totalorder %s24, 0
    %p259 = por %p257, %p258
    %p260 = scmp.ne.s32.totalorder %s252, %s254
    %p261 = scmp.eq.s32.totalorder %s29, 1
    %p262 = por %p260, %p261
    %p263 = scmp.ne.s32.totalorder %s254, %s255
    %p264 = scmp.eq.s32.totalorder %s29, 0
    %p265 = por %p263, %p264
    %p266 = scmp.ne.s32.totalorder %s254, %s255
    %p267 = scmp.eq.s32.totalorder %s30, 1
    %p268 = por %p266, %p267
    %p270 = scmp.ne.s32.totalorder %s255, %s269
    %p271 = scmp.eq.s32.totalorder %s30, 0
    %p272 = por %p270, %p271
    %s274 = sadd.s32 %s273, 1
    %p277 = scmp.eq.s32.totalorder %s24, 1
    %p278 = scmp.ne.s32.totalorder %s273, %s275
    %p279 = scmp.eq.s32.totalorder %s24, 0
    %p280 = por %p278, %p279
    %p281 = scmp.ne.s32.totalorder %s273, %s275
    %p282 = scmp.eq.s32.totalorder %s29, 1
    %p283 = por %p281, %p282
    %p284 = scmp.ne.s32.totalorder %s275, %s276
    %p285 = scmp.eq.s32.totalorder %s29, 0
    %p286 = por %p284, %p285
    %p287 = scmp.ne.s32.totalorder %s275, %s276
    %p288 = scmp.eq.s32.totalorder %s30, 1
    %p289 = por %p287, %p288
    %p291 = scmp.ne.s32.totalorder %s276, %s290
    %p292 = scmp.eq.s32.totalorder %s30, 0
    %p293 = por %p291, %p292
    %s295 = sadd.s32 %s294, 1
    %p298 = scmp.eq.s32.totalorder %s24, 1
    %p299 = scmp.ne.s32.totalorder %s294, %s296
    %p300 = scmp.eq.s32.totalorder %s24, 0
    %p301 = por %p299, %p300
    %p302 = scmp.ne.s32.totalorder %s294, %s296
    %p303 = scmp.eq.s32.totalorder %s29, 1
    %p304 = por %p302, %p303
    %p305 = scmp.ne.s32.totalorder %s296, %s297
    %p306 = scmp.eq.s32.totalorder %s29, 0
    %p307 = por %p305, %p306
    %p308 = scmp.ne.s32.totalorder %s296, %s297
    %p309 = scmp.eq.s32.totalorder %s30, 1
    %p310 = por %p308, %p309
    %p312 = scmp.ne.s32.totalorder %s297, %s311
    %p313 = scmp.eq.s32.totalorder %s30, 0
    %p314 = por %p312, %p313
    %s316 = sadd.s32 %s315, 1
    %p319 = scmp.eq.s32.totalorder %s24, 1
    %p320 = scmp.ne.s32.totalorder %s315, %s317
    %p321 = scmp.eq.s32.totalorder %s24, 0
    %p322 = por %p320, %p321
    %p323 = scmp.ne.s32.totalorder %s315, %s317
    %p324 = scmp.eq.s32.totalorder %s29, 1
    %p325 = por %p323, %p324
    %p326 = scmp.ne.s32.totalorder %s317, %s318
    %p327 = scmp.eq.s32.totalorder %s29, 0
    %p328 = por %p326, %p327
    %p329 = scmp.ne.s32.totalorder %s317, %s318
    %p330 = scmp.eq.s32.totalorder %s30, 1
    %p331 = por %p329, %p330
    %p333 = scmp.ne.s32.totalorder %s318, %s332
    %p334 = scmp.eq.s32.totalorder %s30, 0
    %p335 = por %p333, %p334
    %s337 = sadd.s32 %s336, 1
    %p340 = scmp.eq.s32.totalorder %s24, 1
    %p341 = scmp.ne.s32.totalorder %s336, %s338
    %p342 = scmp.eq.s32.totalorder %s24, 0
    %p343 = por %p341, %p342
    %p344 = scmp.ne.s32.totalorder %s336, %s338
    %p345 = scmp.eq.s32.totalorder %s29, 1
    %p346 = por %p344, %p345
    %p347 = scmp.ne.s32.totalorder %s338, %s339
    %p348 = scmp.eq.s32.totalorder %s29, 0
    %p349 = por %p347, %p348
    %p350 = scmp.ne.s32.totalorder %s338, %s339
    %p351 = scmp.eq.s32.totalorder %s30, 1
    %p352 = por %p350, %p351
    %p354 = scmp.ne.s32.totalorder %s339, %s353
    %p355 = scmp.eq.s32.totalorder %s30, 0
    %p356 = por %p354, %p355
    %s358 = sadd.s32 %s357, 1
    %p361 = scmp.eq.s32.totalorder %s24, 1
    %p362 = scmp.ne.s32.totalorder %s357, %s359
    %p363 = scmp.eq.s32.totalorder %s24, 0
    %p364 = por %p362, %p363
    %p365 = scmp.ne.s32.totalorder %s357, %s359
    %p366 = scmp.eq.s32.totalorder %s29, 1
    %p367 = por %p365, %p366
    %p368 = scmp.ne.s32.totalorder %s359, %s360
    %p369 = scmp.eq.s32.totalorder %s29, 0
    %p370 = por %p368, %p369
    %p371 = scmp.ne.s32.totalorder %s359, %s360
    %p372 = scmp.eq.s32.totalorder %s30, 1
    %p373 = por %p371, %p372
    %p375 = scmp.ne.s32.totalorder %s360, %s374
    %p376 = scmp.eq.s32.totalorder %s30, 0
    %p377 = por %p375, %p376
    %s379 = sadd.s32 %s378, 1
    %p382 = scmp.eq.s32.totalorder %s24, 1
    %p383 = scmp.ne.s32.totalorder %s378, %s380
    %p384 = scmp.eq.s32.totalorder %s24, 0
    %p385 = por %p383, %p384
    %p386 = scmp.ne.s32.totalorder %s378, %s380
    %p387 = scmp.eq.s32.totalorder %s29, 1
    %p388 = por %p386, %p387
    %p389 = scmp.ne.s32.totalorder %s380, %s381
    %p390 = scmp.eq.s32.totalorder %s29, 0
    %p391 = por %p389, %p390
    %p392 = scmp.ne.s32.totalorder %s380, %s381
    %p393 = scmp.eq.s32.totalorder %s30, 1
    %p394 = por %p392, %p393
    %p396 = scmp.ne.s32.totalorder %s381, %s395
    %p397 = scmp.eq.s32.totalorder %s30, 0
    %p398 = por %p396, %p397
    %s400 = sadd.s32 %s399, 1
    %p403 = scmp.eq.s32.totalorder %s24, 1
    %p404 = scmp.ne.s32.totalorder %s399, %s401
    %p405 = scmp.eq.s32.totalorder %s24, 0
    %p406 = por %p404, %p405
    %p407 = scmp.ne.s32.totalorder %s399, %s401
    %p408 = scmp.eq.s32.totalorder %s29, 1
    %p409 = por %p407, %p408
    %p410 = scmp.ne.s32.totalorder %s401, %s402
    %p411 = scmp.eq.s32.totalorder %s29, 0
    %p412 = por %p410, %p411
    %p413 = scmp.ne.s32.totalorder %s401, %s402
    %p414 = scmp.eq.s32.totalorder %s30, 1
    %p415 = por %p413, %p414
    %p417 = scmp.ne.s32.totalorder %s402, %s416
    %p418 = scmp.eq.s32.totalorder %s30, 0
    %p419 = por %p417, %p418
    %s420 = ssub.s32 %s24, %s31
    %p421 = scmp.eq.s32.totalorder %s420, 0
    %s423 = sadd.s32 %s422, 1
    %s424 = scalar_select %p421, %s422, %s423
    %p427 = pneg %p421
    %p428 = scmp.eq.s32.totalorder %s24, 1
    %p429 = por %p427, %p428
    %p430 = scmp.ne.s32.totalorder %s422, %s425
    %p431 = scmp.eq.s32.totalorder %s24, 0
    %p432 = por %p430, %p431
    %p433 = scmp.ne.s32.totalorder %s422, %s425
    %p434 = scmp.eq.s32.totalorder %s29, 1
    %p435 = por %p433, %p434
    %p436 = scmp.ne.s32.totalorder %s425, %s426
    %p437 = scmp.eq.s32.totalorder %s29, 0
    %p438 = por %p436, %p437
    %p439 = scmp.ne.s32.totalorder %s425, %s426
    %p440 = scmp.eq.s32.totalorder %s30, 1
    %p441 = por %p439, %p440
    %p443 = scmp.ne.s32.totalorder %s426, %s442
    %p444 = scmp.eq.s32.totalorder %s30, 0
    %p445 = por %p443, %p444
    %p446 = scmp.le.s32.totalorder 1, %s24
    %p447 = scmp.lt.s32.totalorder %s24, 3
    %p448 = pnand %p446, %p447
    %p449 = pneg %p448
    // Predicated region
    $region9: #{tpu_custom_call.1} parent=5 // pred_check
      _
    $region10: #{tpu_custom_call.1} parent=5 // pred_check_branch
      %451 = sbr.rel (%p448) target = $region12
    $region11: #{tpu_custom_call.1} parent=5 // pred_region
      %s452 = ssub.s32 %s24, 1
      // Predicated region
      $region13: #{tpu_custom_call.1} parent=11 // pred_check
        %p453 = pneg %p97
      $region14: #{tpu_custom_call.1} parent=11 // pred_check_branch
        %455 = sbr.rel (%p453) target = $region16
      $region15: #{tpu_custom_call.1} parent=11 // pred_region
        _
      $region16: #{tpu_custom_call.1} parent=11 // pred_fallthru
        _
      // Predicated region
      $region17: #{tpu_custom_call.1} parent=11 // pred_check
        %p456 = pneg %p118
      $region18: #{tpu_custom_call.1} parent=11 // pred_check_branch
        %458 = sbr.rel (%p456) target = $region20
      $region19: #{tpu_custom_call.1} parent=11 // pred_region
        _
      $region20: #{tpu_custom_call.1} parent=11 // pred_fallthru
        _
      // Predicated region
      $region21: #{tpu_custom_call.1} parent=11 // pred_check
        %p459 = pneg %p139
      $region22: #{tpu_custom_call.1} parent=11 // pred_check_branch
        %461 = sbr.rel (%p459) target = $region24
      $region23: #{tpu_custom_call.1} parent=11 // pred_region
        _
      $region24: #{tpu_custom_call.1} parent=11 // pred_fallthru
        _
      // Predicated region
      $region25: #{tpu_custom_call.1} parent=11 // pred_check
        %p462 = pneg %p160
      $region26: #{tpu_custom_call.1} parent=11 // pred_check_branch
        %464 = sbr.rel (%p462) target = $region28
      $region27: #{tpu_custom_call.1} parent=11 // pred_region
        _
      $region28: #{tpu_custom_call.1} parent=11 // pred_fallthru
        _
      // Predicated region
      $region29: #{tpu_custom_call.1} parent=11 // pred_check
        %p465 = pneg %p181
      $region30: #{tpu_custom_call.1} parent=11 // pred_check_branch
        %467 = sbr.rel (%p465) target = $region32
      $region31: #{tpu_custom_call.1} parent=11 // pred_region
        _
      $region32: #{tpu_custom_call.1} parent=11 // pred_fallthru
        _
      // Predicated region
      $region33: #{tpu_custom_call.1} parent=11 // pred_check
        %p468 = pneg %p202
      $region34: #{tpu_custom_call.1} parent=11 // pred_check_branch
        %470 = sbr.rel (%p468) target = $region36
      $region35: #{tpu_custom_call.1} parent=11 // pred_region
        _
      $region36: #{tpu_custom_call.1} parent=11 // pred_fallthru
        _
      // Predicated region
      $region37: #{tpu_custom_call.1} parent=11 // pred_check
        %p471 = pneg %p223
      $region38: #{tpu_custom_call.1} parent=11 // pred_check_branch
        %473 = sbr.rel (%p471) target = $region40
      $region39: #{tpu_custom_call.1} parent=11 // pred_region
        _
      $region40: #{tpu_custom_call.1} parent=11 // pred_fallthru
        _
      // Predicated region
      $region41: #{tpu_custom_call.1} parent=11 // pred_check
        %p474 = pneg %p244
      $region42: #{tpu_custom_call.1} parent=11 // pred_check_branch
        %476 = sbr.rel (%p474) target = $region44
      $region43: #{tpu_custom_call.1} parent=11 // pred_region
        _
      $region44: #{tpu_custom_call.1} parent=11 // pred_fallthru
        _
      // Predicated region
      $region45: #{tpu_custom_call.1} parent=11 // pred_check
        %p477 = pneg %p265
      $region46: #{tpu_custom_call.1} parent=11 // pred_check_branch
        %479 = sbr.rel (%p477) target = $region48
      $region47: #{tpu_custom_call.1} parent=11 // pred_region
        _
      $region48: #{tpu_custom_call.1} parent=11 // pred_fallthru
        _
      // Predicated region
      $region49: #{tpu_custom_call.1} parent=11 // pred_check
        %p480 = pneg %p286
      $region50: #{tpu_custom_call.1} parent=11 // pred_check_branch
        %482 = sbr.rel (%p480) target = $region52
      $region51: #{tpu_custom_call.1} parent=11 // pred_region
        _
      $region52: #{tpu_custom_call.1} parent=11 // pred_fallthru
        _
      // Predicated region
      $region53: #{tpu_custom_call.1} parent=11 // pred_check
        %p483 = pneg %p307
      $region54: #{tpu_custom_call.1} parent=11 // pred_check_branch
        %485 = sbr.rel (%p483) target = $region56
      $region55: #{tpu_custom_call.1} parent=11 // pred_region
        _
      $region56: #{tpu_custom_call.1} parent=11 // pred_fallthru
        _
      // Predicated region
      $region57: #{tpu_custom_call.1} parent=11 // pred_check
        %p486 = pneg %p328
      $region58: #{tpu_custom_call.1} parent=11 // pred_check_branch
        %488 = sbr.rel (%p486) target = $region60
      $region59: #{tpu_custom_call.1} parent=11 // pred_region
        _
      $region60: #{tpu_custom_call.1} parent=11 // pred_fallthru
        _
      // Predicated region
      $region61: #{tpu_custom_call.1} parent=11 // pred_check
        %p489 = pneg %p349
      $region62: #{tpu_custom_call.1} parent=11 // pred_check_branch
        %491 = sbr.rel (%p489) target = $region64
      $region63: #{tpu_custom_call.1} parent=11 // pred_region
        _
      $region64: #{tpu_custom_call.1} parent=11 // pred_fallthru
        _
      // Predicated region
      $region65: #{tpu_custom_call.1} parent=11 // pred_check
        %p492 = pneg %p370
      $region66: #{tpu_custom_call.1} parent=11 // pred_check_branch
        %494 = sbr.rel (%p492) target = $region68
      $region67: #{tpu_custom_call.1} parent=11 // pred_region
        _
      $region68: #{tpu_custom_call.1} parent=11 // pred_fallthru
        _
      // Predicated region
      $region69: #{tpu_custom_call.1} parent=11 // pred_check
        %p495 = pneg %p391
      $region70: #{tpu_custom_call.1} parent=11 // pred_check_branch
        %497 = sbr.rel (%p495) target = $region72
      $region71: #{tpu_custom_call.1} parent=11 // pred_region
        _
      $region72: #{tpu_custom_call.1} parent=11 // pred_fallthru
        _
      // Predicated region
      $region73: #{tpu_custom_call.1} parent=11 // pred_check
        %p498 = pneg %p412
      $region74: #{tpu_custom_call.1} parent=11 // pred_check_branch
        %500 = sbr.rel (%p498) target = $region76
      $region75: #{tpu_custom_call.1} parent=11 // pred_region
        _
      $region76: #{tpu_custom_call.1} parent=11 // pred_fallthru
        _
    $region12: #{tpu_custom_call.1} parent=5 // pred_fallthru
      _
    %p501 = scmp.lt.s32.totalorder %s24, 2
    // Predicated region
    $region77: #{tpu_custom_call.1} parent=5 // pred_check
      %p502 = pneg %p501
    $region78: #{tpu_custom_call.1} parent=5 // pred_check_branch
      %504 = sbr.rel (%p502) target = $region80
    $region79: #{tpu_custom_call.1} parent=5 // pred_region
      // Predicated region
      $region81: #{tpu_custom_call.1} parent=79 // pred_check
        %p505 = pneg %p44
      $region82: #{tpu_custom_call.1} parent=79 // pred_check_branch
        %507 = sbr.rel (%p505) target = $region84
      $region83: #{tpu_custom_call.1} parent=79 // pred_region
        %s508 = smul.u32 4, %s24
        %p509 = scmp.lt.s32.totalorder %s508, 7
        %s510 = scalar_select %p509, %s508, 7
        %s511 = smul.addr %s510, 8
        %s512 = scalar_lea.vmem %s0, %s511
        %s513 = smul.u32 4, %s24
      $region84: #{tpu_custom_call.1} parent=79 // pred_fallthru
        _
      // Predicated region
      $region85: #{tpu_custom_call.1} parent=79 // pred_check
        %p514 = pneg %p70
      $region86: #{tpu_custom_call.1} parent=79 // pred_check_branch
        %516 = sbr.rel (%p514) target = $region88
      $region87: #{tpu_custom_call.1} parent=79 // pred_region
        %s517 = smul.u32 4, %s24
        %p518 = scmp.lt.s32.totalorder %s517, 7
        %s519 = scalar_select %p518, %s517, 7
        %s520 = smul.addr %s519, 8
        %s521 = scalar_lea.vmem %s1, %s520
        %s522 = smul.u32 4, %s24
      $region88: #{tpu_custom_call.1} parent=79 // pred_fallthru
        _
    $region80: #{tpu_custom_call.1} parent=5 // pred_fallthru
      _
    %p523 = scmp.le.s32.totalorder 1, %s24
    %p524 = scmp.lt.s32.totalorder %s24, 3
    %p525 = pnand %p523, %p524
    %p526 = pneg %p525
    // Predicated region
    $region89: #{tpu_custom_call.1} parent=5 // pred_check
      _
    $region90: #{tpu_custom_call.1} parent=5 // pred_check_branch
      %528 = sbr.rel (%p525) target = $region92
    $region91: #{tpu_custom_call.1} parent=5 // pred_region
      %s529 = ssub.s32 %s24, 1
      %s530 = smul.u32 4, %s29
      %p531 = scmp.lt.s32.totalorder %s530, 7
      %s532 = scalar_select %p531, %s530, 7
      %s533 = smul.addr %s532, 8
      %s534 = scalar_lea.vmem %s0, %s533
      %p535 = pneg %p50
      %p536 = pneg %p47
      %s537 = smul.u32 4, %s29
      %p538 = scmp.lt.s32.totalorder %s537, 7
      %s539 = scalar_select %p538, %s537, 7
      %s540 = smul.addr %s539, 8
      %s541 = scalar_lea.vmem %s1, %s540
      %p542 = pneg %p76
      %p543 = pneg %p73
      %p544 = pneg %p97
      %p545 = pneg %p94
      %p546 = pneg %p118
      %p547 = pneg %p115
      %p548 = pneg %p139
      %p549 = pneg %p136
      %p550 = pneg %p160
      %p551 = pneg %p157
      %p552 = pneg %p181
      %p553 = pneg %p178
      %p554 = pneg %p202
      %p555 = pneg %p199
      %p556 = pneg %p223
      %p557 = pneg %p220
      %p558 = pneg %p244
      %p559 = pneg %p241
      %p560 = pneg %p265
      %p561 = pneg %p262
      %p562 = pneg %p286
      %p563 = pneg %p283
      %p564 = pneg %p307
      %p565 = pneg %p304
      %p566 = pneg %p328
      %p567 = pneg %p325
      %p568 = pneg %p349
      %p569 = pneg %p346
      %p570 = pneg %p370
      %p571 = pneg %p367
      %p572 = pneg %p391
      %p573 = pneg %p388
      %p574 = pneg %p412
      %p575 = pneg %p409
      %p576 = pneg %p438
      %p577 = pneg %p435
      %s578 = smul.u32 4, %s29
      %p579 = scmp.lt.s32.totalorder %s578, 7
      %s580 = scalar_select %p579, %s578, 7
      %s581 = smul.addr %s580, 8
      %s582 = scalar_lea.vmem %s18, %s581
      %s583 = smul.u32 4, %s29
      %p584 = scmp.lt.s32.totalorder %s583, 7
      %s585 = scalar_select %p584, %s583, 7
      %s586 = smul.addr %s585, 8
      %s587 = scalar_lea.vmem %s0, %s586
      %s588 = smul.u32 4, %s29
      %s589 = smul.u32 4, %s29
      %p590 = scmp.lt.s32.totalorder %s589, 7
      %s591 = scalar_select %p590, %s589, 7
      %s592 = smul.addr %s591, 8
      %s593 = scalar_lea.vmem %s1, %s592
      %s594 = smul.u32 4, %s29
      %s595 = smul.u32 4, %s29
      %p596 = scmp.lt.s32.totalorder %s595, 7
      %s597 = scalar_select %p596, %s595, 7
      %s598 = smul.addr %s597, 8
      %s599 = scalar_lea.vmem %s18, %s598
      %s600 = smul.u32 4, %s29
      %v602 = vld [vmem:[%s587] sm:$0xff]
      %v603 = vld [vmem:[%s587 + $0x8] sm:$0xff]
      %v604 = vld [vmem:[%s587 + $0x10] sm:$0xff]
      %v605 = vld [vmem:[%s587 + $0x18] sm:$0xff]
      %v606 = vld [vmem:[%s593] sm:$0xff]
      %v607 = vld [vmem:[%s593 + $0x8] sm:$0xff]
      %v608 = vld [vmem:[%s593 + $0x10] sm:$0xff]
      %v609 = vld [vmem:[%s593 + $0x18] sm:$0xff]
      %v610 = vadd.f32 %v602, %v606
      %v611 = vadd.f32 %v603, %v607
      %v612 = vadd.f32 %v604, %v608
      %v613 = vadd.f32 %v605, %v609
      %v614 = vpack.c.bf16 %v603, %v602
      %v615 = vpack.c.bf16 %v605, %v604
      %v616 = vpack.c.bf16 %v611, %v610
      %v617 = vpack.c.bf16 %v613, %v612
      %v618 = vld [vmem:[%s2] sm:$0xf]
      %v619 = vld [vmem:[%s2 + $0x4] sm:$0xf]
      %v620 = vld [vmem:[%s2 + $0x8] sm:$0xf]
      %v621 = vld [vmem:[%s2 + $0xc] sm:$0xf]
      %v622 = vld [vmem:[%s5] sm:$0x1]
      %v624 = vlaneseq
      %v625 = vshrl.u32 %v624, 7
      %v626 = vsub.s32 0, %v625
      %v627 = vrot.slane %v622, %v626
      %v633 = vunpack.c.l.b16 %v618
      %v634 = vunpack.c.l.b16 %v619
      %v635 = vunpack.c.l.b16 %v620
      %v636 = vunpack.c.l.b16 %v621
      %v637 = vpack.c.b16 %v634, %v633
      %v638 = vpack.c.b16 %v636, %v635
      %vm641 = vcmask 261120
      %v643 = vsel %vm641, %v616, 0
      %v646 = vsel %vm641, %v617, 0
      %648 = vmatprep.subr.bf16.mxu0 0
      %649 = vmatpush1.bf16.msra.mxu0 %v637
      %650 = vmatprep.subr.bf16.mxu0 0
      %651 = vmatpush1.bf16.msra.mxu0 %v638
      %652 = vmatprep.subr.bf16.mxu0 0
      %653 = vmatpush1.bf16.msra.mxu0 0
      %654 = vmatprep.subr.bf16.mxu0 0
      %655 = vmatpush1.bf16.msra.mxu0 0
      %656 = vmatprep.subr.bf16.mxu0 0
      %657 = vmatpush1.bf16.msra.mxu0 0
      %658 = vmatprep.subr.bf16.mxu0 0
      %659 = vmatpush1.bf16.msra.mxu0 0
      %660 = vmatprep.subr.bf16.mxu0 0
      %661 = vmatpush1.bf16.msra.mxu0 0
      %662 = vmatprep.subr.bf16.mxu0 0
      %663 = vmatpush1.bf16.msra.mxu0 0
      %664 = vmatprep.subr.bf16.mxu0 0
      %665 = vmatpush1.bf16.msra.mxu0 0
      %666 = vmatprep.subr.bf16.mxu0 0
      %667 = vmatpush1.bf16.msra.mxu0 0
      %668 = vmatprep.subr.bf16.mxu0 0
      %669 = vmatpush1.bf16.msra.mxu0 0
      %670 = vmatprep.subr.bf16.mxu0 0
      %671 = vmatpush1.bf16.msra.mxu0 0
      %672 = vmatprep.subr.bf16.mxu0 0
      %673 = vmatpush1.bf16.msra.mxu0 0
      %674 = vmatprep.subr.bf16.mxu0 0
      %675 = vmatpush1.bf16.msra.mxu0 0
      %676 = vmatprep.subr.bf16.mxu0 0
      %677 = vmatpush1.bf16.msra.mxu0 0
      %678 = vmatprep.subr.bf16.mxu0 0
      %679 = vmatpush1.bf16.msra.mxu0 0
      %680 = vmatprep.mubr.bf16.mxu0 0
      %681 = vmatmul.mubr.bf16.gmra.mrb[0].mxu0 %v643
      %v682 = vpop.f32.mrb[0].mxu0
      %v683 = vadd.f32 %v627, %v682
      %v684 = vpop.f32.mrb[0].mxu0
      %v685 = vpop.f32.mrb[0].mxu0
      %v686 = vadd.f32 %v627, %v685
      %v687 = vpop.f32.mrb[0].mxu0
      %688 = vmatprep.mubr.bf16.mxu0 0
      %689 = vmatmul.mubr.bf16.gmra.mrb[0].mxu0 %v646
      %v690 = vpop.f32.mrb[0].mxu0
      %v691 = vadd.f32 %v627, %v690
      %v692 = vpop.f32.mrb[0].mxu0
      %v693 = vpop.f32.mrb[0].mxu0
      %v694 = vadd.f32 %v627, %v693
      %v695 = vpop.f32.mrb[0].mxu0
      %696 = vdwg.mxu0
      %v697 = vld [vmem:[%s3] sm:$0xf]
      %v698 = vld [vmem:[%s3 + $0x4] sm:$0xf]
      %v699 = vld [vmem:[%s3 + $0x8] sm:$0xf]
      %v700 = vld [vmem:[%s3 + $0xc] sm:$0xf]
      %v701 = vld [vmem:[%s6] sm:$0x1]
      %v703 = vlaneseq
      %v704 = vshrl.u32 %v703, 7
      %v705 = vsub.s32 0, %v704
      %v706 = vrot.slane %v701, %v705
      %v712 = vunpack.c.l.b16 %v697
      %v713 = vunpack.c.l.b16 %v698
      %v714 = vunpack.c.l.b16 %v699
      %v715 = vunpack.c.l.b16 %v700
      %v716 = vpack.c.b16 %v713, %v712
      %v717 = vpack.c.b16 %v715, %v714
      %720 = vmatprep.subr.bf16.mxu0 0
      %721 = vmatpush1.bf16.msra.mxu0 %v716
      %722 = vmatprep.subr.bf16.mxu0 0
      %723 = vmatpush1.bf16.msra.mxu0 %v717
      %724 = vmatprep.subr.bf16.mxu0 0
      %725 = vmatpush1.bf16.msra.mxu0 0
      %726 = vmatprep.subr.bf16.mxu0 0
      %727 = vmatpush1.bf16.msra.mxu0 0
      %728 = vmatprep.subr.bf16.mxu0 0
      %729 = vmatpush1.bf16.msra.mxu0 0
      %730 = vmatprep.subr.bf16.mxu0 0
      %731 = vmatpush1.bf16.msra.mxu0 0
      %732 = vmatprep.subr.bf16.mxu0 0
      %733 = vmatpush1.bf16.msra.mxu0 0
      %734 = vmatprep.subr.bf16.mxu0 0
      %735 = vmatpush1.bf16.msra.mxu0 0
      %736 = vmatprep.subr.bf16.mxu0 0
      %737 = vmatpush1.bf16.msra.mxu0 0
      %738 = vmatprep.subr.bf16.mxu0 0
      %739 = vmatpush1.bf16.msra.mxu0 0
      %740 = vmatprep.subr.bf16.mxu0 0
      %741 = vmatpush1.bf16.msra.mxu0 0
      %742 = vmatprep.subr.bf16.mxu0 0
      %743 = vmatpush1.bf16.msra.mxu0 0
      %744 = vmatprep.subr.bf16.mxu0 0
      %745 = vmatpush1.bf16.msra.mxu0 0
      %746 = vmatprep.subr.bf16.mxu0 0
      %747 = vmatpush1.bf16.msra.mxu0 0
      %748 = vmatprep.subr.bf16.mxu0 0
      %749 = vmatpush1.bf16.msra.mxu0 0
      %750 = vmatprep.subr.bf16.mxu0 0
      %751 = vmatpush1.bf16.msra.mxu0 0
      %752 = vmatprep.mubr.bf16.mxu0 0
      %753 = vmatmul.mubr.bf16.gmra.mrb[0].mxu0 %v643
      %v754 = vpop.f32.mrb[0].mxu0
      %v755 = vadd.f32 %v706, %v754
      %v756 = vpop.f32.mrb[0].mxu0
      %v757 = vpop.f32.mrb[0].mxu0
      %v758 = vadd.f32 %v706, %v757
      %v759 = vpop.f32.mrb[0].mxu0
      %760 = vmatprep.mubr.bf16.mxu0 0
      %761 = vmatmul.mubr.bf16.gmra.mrb[0].mxu0 %v646
      %v762 = vpop.f32.mrb[0].mxu0
      %v763 = vadd.f32 %v706, %v762
      %v764 = vpop.f32.mrb[0].mxu0
      %v765 = vpop.f32.mrb[0].mxu0
      %v766 = vadd.f32 %v706, %v765
      %v767 = vpop.f32.mrb[0].mxu0
      %768 = vdwg.mxu0
      %v769 = vld [vmem:[%s4] sm:$0xf]
      %v770 = vld [vmem:[%s4 + $0x4] sm:$0xf]
      %v771 = vld [vmem:[%s4 + $0x8] sm:$0xf]
      %v772 = vld [vmem:[%s4 + $0xc] sm:$0xf]
      %v773 = vld [vmem:[%s7] sm:$0x1]
      %v775 = vlaneseq
      %v776 = vshrl.u32 %v775, 7
      %v777 = vsub.s32 0, %v776
      %v778 = vrot.slane %v773, %v777
      %v784 = vunpack.c.l.b16 %v769
      %v785 = vunpack.c.l.b16 %v770
      %v786 = vunpack.c.l.b16 %v771
      %v787 = vunpack.c.l.b16 %v772
      %v788 = vpack.c.b16 %v785, %v784
      %v789 = vpack.c.b16 %v787, %v786
      %v793 = vsel %vm641, %v614, 0
      %v796 = vsel %vm641, %v615, 0
      %798 = vmatprep.subr.bf16.mxu0 0
      %799 = vmatpush1.bf16.msra.mxu0 %v788
      %800 = vmatprep.subr.bf16.mxu0 0
      %801 = vmatpush1.bf16.msra.mxu0 %v789
      %802 = vmatprep.subr.bf16.mxu0 0
      %803 = vmatpush1.bf16.msra.mxu0 0
      %804 = vmatprep.subr.bf16.mxu0 0
      %805 = vmatpush1.bf16.msra.mxu0 0
      %806 = vmatprep.subr.bf16.mxu0 0
      %807 = vmatpush1.bf16.msra.mxu0 0
      %808 = vmatprep.subr.bf16.mxu0 0
      %809 = vmatpush1.bf16.msra.mxu0 0
      %810 = vmatprep.subr.bf16.mxu0 0
      %811 = vmatpush1.bf16.msra.mxu0 0
      %812 = vmatprep.subr.bf16.mxu0 0
      %813 = vmatpush1.bf16.msra.mxu0 0
      %814 = vmatprep.subr.bf16.mxu0 0
      %815 = vmatpush1.bf16.msra.mxu0 0
      %816 = vmatprep.subr.bf16.mxu0 0
      %817 = vmatpush1.bf16.msra.mxu0 0
      %818 = vmatprep.subr.bf16.mxu0 0
      %819 = vmatpush1.bf16.msra.mxu0 0
      %820 = vmatprep.subr.bf16.mxu0 0
      %821 = vmatpush1.bf16.msra.mxu0 0
      %822 = vmatprep.subr.bf16.mxu0 0
      %823 = vmatpush1.bf16.msra.mxu0 0
      %824 = vmatprep.subr.bf16.mxu0 0
      %825 = vmatpush1.bf16.msra.mxu0 0
      %826 = vmatprep.subr.bf16.mxu0 0
      %827 = vmatpush1.bf16.msra.mxu0 0
      %828 = vmatprep.subr.bf16.mxu0 0
      %829 = vmatpush1.bf16.msra.mxu0 0
      %830 = vmatprep.mubr.bf16.mxu0 0
      %831 = vmatmul.mubr.bf16.gmra.mrb[0].mxu0 %v793
      %v832 = vpop.f32.mrb[0].mxu0
      %v833 = vadd.f32 %v778, %v832
      %v834 = vpop.f32.mrb[0].mxu0
      %v835 = vpop.f32.mrb[0].mxu0
      %v836 = vadd.f32 %v778, %v835
      %v837 = vpop.f32.mrb[0].mxu0
      %838 = vmatprep.mubr.bf16.mxu0 0
      %839 = vmatmul.mubr.bf16.gmra.mrb[0].mxu0 %v796
      %v840 = vpop.f32.mrb[0].mxu0
      %v841 = vadd.f32 %v778, %v840
      %v842 = vpop.f32.mrb[0].mxu0
      %v843 = vpop.f32.mrb[0].mxu0
      %v844 = vadd.f32 %v778, %v843
      %v845 = vpop.f32.mrb[0].mxu0
      %846 = vdwg.mxu0
      %vm847 = vcmask 64512
      %v849 = vsel %vm847, %v683, 0
      %v852 = vsel %vm847, %v755, 0
      %854 = vmatprep.subr.mxu0 0.0
      %855 = vmatpush1.xpose.msra.mxu0 %v852
      %856 = vmatprep.subr.mxu0 0.0
      %857 = vmatpush1.xpose.msra.mxu0 0.0
      %858 = vmatprep.subr.mxu0 0.0
      %859 = vmatpush1.xpose.msra.mxu0 0.0
      %860 = vmatprep.subr.mxu0 0.0
      %861 = vmatpush1.xpose.msra.mxu0 0.0
      %862 = vmatprep.subr.mxu0 0.0
      %863 = vmatpush1.xpose.msra.mxu0 0.0
      %864 = vmatprep.subr.mxu0 0.0
      %865 = vmatpush1.xpose.msra.mxu0 0.0
      %866 = vmatprep.subr.mxu0 0.0
      %867 = vmatpush1.xpose.msra.mxu0 0.0
      %868 = vmatprep.subr.mxu0 0.0
      %869 = vmatpush1.xpose.msra.mxu0 0.0
      %870 = vmatprep.subr.mxu0 0.0
      %871 = vmatpush1.xpose.msra.mxu0 0.0
      %872 = vmatprep.subr.mxu0 0.0
      %873 = vmatpush1.xpose.msra.mxu0 0.0
      %874 = vmatprep.subr.mxu0 0.0
      %875 = vmatpush1.xpose.msra.mxu0 0.0
      %876 = vmatprep.subr.mxu0 0.0
      %877 = vmatpush1.xpose.msra.mxu0 0.0
      %878 = vmatprep.subr.mxu0 0.0
      %879 = vmatpush1.xpose.msra.mxu0 0.0
      %880 = vmatprep.subr.mxu0 0.0
      %881 = vmatpush1.xpose.msra.mxu0 0.0
      %882 = vmatprep.subr.mxu0 0.0
      %883 = vmatpush1.xpose.msra.mxu0 0.0
      %884 = vmatprep.subr.mxu0 0.0
      %885 = vmatpush1.xpose.msra.mxu0 0.0
      %886 = vmatprep.subr.mxu0 0.0
      %887 = vmatpush1.xpose.msra.mxu0 0.0
      %888 = vmatprep.subr.mxu0 0.0
      %889 = vmatpush1.xpose.msra.mxu0 0.0
      %890 = vmatprep.subr.mxu0 0.0
      %891 = vmatpush1.xpose.msra.mxu0 0.0
      %892 = vmatprep.subr.mxu0 0.0
      %893 = vmatpush1.xpose.msra.mxu0 0.0
      %894 = vmatprep.subr.mxu0 0.0
      %895 = vmatpush1.xpose.msra.mxu0 0.0
      %896 = vmatprep.subr.mxu0 0.0
      %897 = vmatpush1.xpose.msra.mxu0 0.0
      %898 = vmatprep.subr.mxu0 0.0
      %899 = vmatpush1.xpose.msra.mxu0 0.0
      %900 = vmatprep.subr.mxu0 0.0
      %901 = vmatpush1.xpose.msra.mxu0 0.0
      %902 = vmatprep.subr.mxu0 0.0
      %903 = vmatpush1.xpose.msra.mxu0 0.0
      %904 = vmatprep.subr.mxu0 0.0
      %905 = vmatpush1.xpose.msra.mxu0 0.0
      %906 = vmatprep.subr.mxu0 0.0
      %907 = vmatpush1.xpose.msra.mxu0 0.0
      %908 = vmatprep.subr.mxu0 0.0
      %909 = vmatpush1.xpose.msra.mxu0 0.0
      %910 = vmatprep.subr.mxu0 0.0
      %911 = vmatpush1.xpose.msra.mxu0 0.0
      %912 = vmatprep.subr.mxu0 0.0
      %913 = vmatpush1.xpose.msra.mxu0 0.0
      %914 = vmatprep.subr.mxu0 0.0
      %915 = vmatpush1.xpose.msra.mxu0 0.0
      %916 = vmatprep.subr.mxu0 0.0
      %917 = vmatpush1.xpose.msra.mxu0 0.0
      %918 = vmatprep.mubr.f32.mxu0 0.0
      %919 = vmatmul.mubr.f32.gmra.mrb[0].mxu0 %v849
      %v920 = vpop.f32.mrb[0].mxu0
      %v921 = vadd.f32 0.0, %v920
      %v922 = vpop.f32.mrb[0].mxu0
      %923 = vdwg.mxu0
      %v925 = vsel %vm847, %v686, 0
      %v928 = vsel %vm847, %v758, 0
      %930 = vmatprep.subr.mxu0 0.0
      %931 = vmatpush1.xpose.msra.mxu0 %v928
      %932 = vmatprep.subr.mxu0 0.0
      %933 = vmatpush1.xpose.msra.mxu0 0.0
      %934 = vmatprep.subr.mxu0 0.0
      %935 = vmatpush1.xpose.msra.mxu0 0.0
      %936 = vmatprep.subr.mxu0 0.0
      %937 = vmatpush1.xpose.msra.mxu0 0.0
      %938 = vmatprep.subr.mxu0 0.0
      %939 = vmatpush1.xpose.msra.mxu0 0.0
      %940 = vmatprep.subr.mxu0 0.0
      %941 = vmatpush1.xpose.msra.mxu0 0.0
      %942 = vmatprep.subr.mxu0 0.0
      %943 = vmatpush1.xpose.msra.mxu0 0.0
      %944 = vmatprep.subr.mxu0 0.0
      %945 = vmatpush1.xpose.msra.mxu0 0.0
      %946 = vmatprep.subr.mxu0 0.0
      %947 = vmatpush1.xpose.msra.mxu0 0.0
      %948 = vmatprep.subr.mxu0 0.0
      %949 = vmatpush1.xpose.msra.mxu0 0.0
      %950 = vmatprep.subr.mxu0 0.0
      %951 = vmatpush1.xpose.msra.mxu0 0.0
      %952 = vmatprep.subr.mxu0 0.0
      %953 = vmatpush1.xpose.msra.mxu0 0.0
      %954 = vmatprep.subr.mxu0 0.0
      %955 = vmatpush1.xpose.msra.mxu0 0.0
      %956 = vmatprep.subr.mxu0 0.0
      %957 = vmatpush1.xpose.msra.mxu0 0.0
      %958 = vmatprep.subr.mxu0 0.0
      %959 = vmatpush1.xpose.msra.mxu0 0.0
      %960 = vmatprep.subr.mxu0 0.0
      %961 = vmatpush1.xpose.msra.mxu0 0.0
      %962 = vmatprep.subr.mxu0 0.0
      %963 = vmatpush1.xpose.msra.mxu0 0.0
      %964 = vmatprep.subr.mxu0 0.0
      %965 = vmatpush1.xpose.msra.mxu0 0.0
      %966 = vmatprep.subr.mxu0 0.0
      %967 = vmatpush1.xpose.msra.mxu0 0.0
      %968 = vmatprep.subr.mxu0 0.0
      %969 = vmatpush1.xpose.msra.mxu0 0.0
      %970 = vmatprep.subr.mxu0 0.0
      %971 = vmatpush1.xpose.msra.mxu0 0.0
      %972 = vmatprep.subr.mxu0 0.0
      %973 = vmatpush1.xpose.msra.mxu0 0.0
      %974 = vmatprep.subr.mxu0 0.0
      %975 = vmatpush1.xpose.msra.mxu0 0.0
      %976 = vmatprep.subr.mxu0 0.0
      %977 = vmatpush1.xpose.msra.mxu0 0.0
      %978 = vmatprep.subr.mxu0 0.0
      %979 = vmatpush1.xpose.msra.mxu0 0.0
      %980 = vmatprep.subr.mxu0 0.0
      %981 = vmatpush1.xpose.msra.mxu0 0.0
      %982 = vmatprep.subr.mxu0 0.0
      %983 = vmatpush1.xpose.msra.mxu0 0.0
      %984 = vmatprep.subr.mxu0 0.0
      %985 = vmatpush1.xpose.msra.mxu0 0.0
      %986 = vmatprep.subr.mxu0 0.0
      %987 = vmatpush1.xpose.msra.mxu0 0.0
      %988 = vmatprep.subr.mxu0 0.0
      %989 = vmatpush1.xpose.msra.mxu0 0.0
      %990 = vmatprep.subr.mxu0 0.0
      %991 = vmatpush1.xpose.msra.mxu0 0.0
      %992 = vmatprep.subr.mxu0 0.0
      %993 = vmatpush1.xpose.msra.mxu0 0.0
      %994 = vmatprep.mubr.f32.mxu0 0.0
      %995 = vmatmul.mubr.f32.gmra.mrb[0].mxu0 %v925
      %v996 = vpop.f32.mrb[0].mxu0
      %v997 = vadd.f32 0.0, %v996
      %v998 = vpop.f32.mrb[0].mxu0
      %999 = vdwg.mxu0
      %v1001 = vsel %vm847, %v691, 0
      %v1004 = vsel %vm847, %v763, 0
      %1006 = vmatprep.subr.mxu0 0.0
      %1007 = vmatpush1.xpose.msra.mxu0 %v1004
      %1008 = vmatprep.subr.mxu0 0.0
      %1009 = vmatpush1.xpose.msra.mxu0 0.0
      %1010 = vmatprep.subr.mxu0 0.0
      %1011 = vmatpush1.xpose.msra.mxu0 0.0
      %1012 = vmatprep.subr.mxu0 0.0
      %1013 = vmatpush1.xpose.msra.mxu0 0.0
      %1014 = vmatprep.subr.mxu0 0.0
      %1015 = vmatpush1.xpose.msra.mxu0 0.0
      %1016 = vmatprep.subr.mxu0 0.0
      %1017 = vmatpush1.xpose.msra.mxu0 0.0
      %1018 = vmatprep.subr.mxu0 0.0
      %1019 = vmatpush1.xpose.msra.mxu0 0.0
      %1020 = vmatprep.subr.mxu0 0.0
      %1021 = vmatpush1.xpose.msra.mxu0 0.0
      %1022 = vmatprep.subr.mxu0 0.0
      %1023 = vmatpush1.xpose.msra.mxu0 0.0
      %1024 = vmatprep.subr.mxu0 0.0
      %1025 = vmatpush1.xpose.msra.mxu0 0.0
      %1026 = vmatprep.subr.mxu0 0.0
      %1027 = vmatpush1.xpose.msra.mxu0 0.0
      %1028 = vmatprep.subr.mxu0 0.0
      %1029 = vmatpush1.xpose.msra.mxu0 0.0
      %1030 = vmatprep.subr.mxu0 0.0
      %1031 = vmatpush1.xpose.msra.mxu0 0.0
      %1032 = vmatprep.subr.mxu0 0.0
      %1033 = vmatpush1.xpose.msra.mxu0 0.0
      %1034 = vmatprep.subr.mxu0 0.0
      %1035 = vmatpush1.xpose.msra.mxu0 0.0
      %1036 = vmatprep.subr.mxu0 0.0
      %1037 = vmatpush1.xpose.msra.mxu0 0.0
      %1038 = vmatprep.subr.mxu0 0.0
      %1039 = vmatpush1.xpose.msra.mxu0 0.0
      %1040 = vmatprep.subr.mxu0 0.0
      %1041 = vmatpush1.xpose.msra.mxu0 0.0
      %1042 = vmatprep.subr.mxu0 0.0
      %1043 = vmatpush1.xpose.msra.mxu0 0.0
      %1044 = vmatprep.subr.mxu0 0.0
      %1045 = vmatpush1.xpose.msra.mxu0 0.0
      %1046 = vmatprep.subr.mxu0 0.0
      %1047 = vmatpush1.xpose.msra.mxu0 0.0
      %1048 = vmatprep.subr.mxu0 0.0
      %1049 = vmatpush1.xpose.msra.mxu0 0.0
      %1050 = vmatprep.subr.mxu0 0.0
      %1051 = vmatpush1.xpose.msra.mxu0 0.0
      %1052 = vmatprep.subr.mxu0 0.0
      %1053 = vmatpush1.xpose.msra.mxu0 0.0
      %1054 = vmatprep.subr.mxu0 0.0
      %1055 = vmatpush1.xpose.msra.mxu0 0.0
      %1056 = vmatprep.subr.mxu0 0.0
      %1057 = vmatpush1.xpose.msra.mxu0 0.0
      %1058 = vmatprep.subr.mxu0 0.0
      %1059 = vmatpush1.xpose.msra.mxu0 0.0
      %1060 = vmatprep.subr.mxu0 0.0
      %1061 = vmatpush1.xpose.msra.mxu0 0.0
      %1062 = vmatprep.subr.mxu0 0.0
      %1063 = vmatpush1.xpose.msra.mxu0 0.0
      %1064 = vmatprep.subr.mxu0 0.0
      %1065 = vmatpush1.xpose.msra.mxu0 0.0
      %1066 = vmatprep.subr.mxu0 0.0
      %1067 = vmatpush1.xpose.msra.mxu0 0.0
      %1068 = vmatprep.subr.mxu0 0.0
      %1069 = vmatpush1.xpose.msra.mxu0 0.0
      %1070 = vmatprep.mubr.f32.mxu0 0.0
      %1071 = vmatmul.mubr.f32.gmra.mrb[0].mxu0 %v1001
      %v1072 = vpop.f32.mrb[0].mxu0
      %v1073 = vadd.f32 0.0, %v1072
      %v1074 = vpop.f32.mrb[0].mxu0
      %1075 = vdwg.mxu0
      %v1077 = vsel %vm847, %v694, 0
      %v1080 = vsel %vm847, %v766, 0
      %1082 = vmatprep.subr.mxu0 0.0
      %1083 = vmatpush1.xpose.msra.mxu0 %v1080
      %1084 = vmatprep.subr.mxu0 0.0
      %1085 = vmatpush1.xpose.msra.mxu0 0.0
      %1086 = vmatprep.subr.mxu0 0.0
      %1087 = vmatpush1.xpose.msra.mxu0 0.0
      %1088 = vmatprep.subr.mxu0 0.0
      %1089 = vmatpush1.xpose.msra.mxu0 0.0
      %1090 = vmatprep.subr.mxu0 0.0
      %1091 = vmatpush1.xpose.msra.mxu0 0.0
      %1092 = vmatprep.subr.mxu0 0.0
      %1093 = vmatpush1.xpose.msra.mxu0 0.0
      %1094 = vmatprep.subr.mxu0 0.0
      %1095 = vmatpush1.xpose.msra.mxu0 0.0
      %1096 = vmatprep.subr.mxu0 0.0
      %1097 = vmatpush1.xpose.msra.mxu0 0.0
      %1098 = vmatprep.subr.mxu0 0.0
      %1099 = vmatpush1.xpose.msra.mxu0 0.0
      %1100 = vmatprep.subr.mxu0 0.0
      %1101 = vmatpush1.xpose.msra.mxu0 0.0
      %1102 = vmatprep.subr.mxu0 0.0
      %1103 = vmatpush1.xpose.msra.mxu0 0.0
      %1104 = vmatprep.subr.mxu0 0.0
      %1105 = vmatpush1.xpose.msra.mxu0 0.0
      %1106 = vmatprep.subr.mxu0 0.0
      %1107 = vmatpush1.xpose.msra.mxu0 0.0
      %1108 = vmatprep.subr.mxu0 0.0
      %1109 = vmatpush1.xpose.msra.mxu0 0.0
      %1110 = vmatprep.subr.mxu0 0.0
      %1111 = vmatpush1.xpose.msra.mxu0 0.0
      %1112 = vmatprep.subr.mxu0 0.0
      %1113 = vmatpush1.xpose.msra.mxu0 0.0
      %1114 = vmatprep.subr.mxu0 0.0
      %1115 = vmatpush1.xpose.msra.mxu0 0.0
      %1116 = vmatprep.subr.mxu0 0.0
      %1117 = vmatpush1.xpose.msra.mxu0 0.0
      %1118 = vmatprep.subr.mxu0 0.0
      %1119 = vmatpush1.xpose.msra.mxu0 0.0
      %1120 = vmatprep.subr.mxu0 0.0
      %1121 = vmatpush1.xpose.msra.mxu0 0.0
      %1122 = vmatprep.subr.mxu0 0.0
      %1123 = vmatpush1.xpose.msra.mxu0 0.0
      %1124 = vmatprep.subr.mxu0 0.0
      %1125 = vmatpush1.xpose.msra.mxu0 0.0
      %1126 = vmatprep.subr.mxu0 0.0
      %1127 = vmatpush1.xpose.msra.mxu0 0.0
      %1128 = vmatprep.subr.mxu0 0.0
      %1129 = vmatpush1.xpose.msra.mxu0 0.0
      %1130 = vmatprep.subr.mxu0 0.0
      %1131 = vmatpush1.xpose.msra.mxu0 0.0
      %1132 = vmatprep.subr.mxu0 0.0
      %1133 = vmatpush1.xpose.msra.mxu0 0.0
      %1134 = vmatprep.subr.mxu0 0.0
      %1135 = vmatpush1.xpose.msra.mxu0 0.0
      %1136 = vmatprep.subr.mxu0 0.0
      %1137 = vmatpush1.xpose.msra.mxu0 0.0
      %1138 = vmatprep.subr.mxu0 0.0
      %1139 = vmatpush1.xpose.msra.mxu0 0.0
      %1140 = vmatprep.subr.mxu0 0.0
      %1141 = vmatpush1.xpose.msra.mxu0 0.0
      %1142 = vmatprep.subr.mxu0 0.0
      %1143 = vmatpush1.xpose.msra.mxu0 0.0
      %1144 = vmatprep.subr.mxu0 0.0
      %1145 = vmatpush1.xpose.msra.mxu0 0.0
      %1146 = vmatprep.mubr.f32.mxu0 0.0
      %1147 = vmatmul.mubr.f32.gmra.mrb[0].mxu0 %v1077
      %v1148 = vpop.f32.mrb[0].mxu0
      %v1149 = vadd.f32 0.0, %v1148
      %v1150 = vpop.f32.mrb[0].mxu0
      %1151 = vdwg.mxu0
      %v1152 = vsel %vm847, %v921, -inf
      %1153 = vmax.xlane.f32.xlu0 %v1152
      %v1154 = vpop.xlane.xlu0 %1153
      %v1155 = vsel %vm847, %v997, -inf
      %1156 = vmax.xlane.f32.xlu0 %v1155
      %v1157 = vpop.xlane.xlu0 %1156
      %v1158 = vsel %vm847, %v1073, -inf
      %1159 = vmax.xlane.f32.xlu0 %v1158
      %v1160 = vpop.xlane.xlu0 %1159
      %v1161 = vsel %vm847, %v1149, -inf
      %1162 = vmax.xlane.f32.xlu0 %v1161
      %v1163 = vpop.xlane.xlu0 %1162
      %v1164 = vsub.f32 %v921, %v1154
      %v1165 = vsub.f32 %v997, %v1157
      %v1166 = vsub.f32 %v1073, %v1160
      %v1167 = vsub.f32 %v1149, %v1163
      %v1168 = vmul.f32 %v1164, 1.442695
      %v1169 = vpow.pop %v1168
      %v1170 = vmul.f32 %v1165, 1.442695
      %v1171 = vpow.pop %v1170
      %v1172 = vmul.f32 %v1166, 1.442695
      %v1173 = vpow.pop %v1172
      %v1174 = vmul.f32 %v1167, 1.442695
      %v1175 = vpow.pop %v1174
      %v1176 = vsel %vm847, %v1169, 0.0
      %1177 = vadd.xlane.f32.xlu0 %v1176
      %v1178 = vpop.xlane.xlu0 %1177
      %v1179 = vsel %vm847, %v1171, 0.0
      %1180 = vadd.xlane.f32.xlu0 %v1179
      %v1181 = vpop.xlane.xlu0 %1180
      %v1182 = vsel %vm847, %v1173, 0.0
      %1183 = vadd.xlane.f32.xlu0 %v1182
      %v1184 = vpop.xlane.xlu0 %1183
      %v1185 = vsel %vm847, %v1175, 0.0
      %1186 = vadd.xlane.f32.xlu0 %v1185
      %v1187 = vpop.xlane.xlu0 %1186
      %v1188 = vrcp.pop %v1178
      %v1189 = vrcp.pop %v1181
      %v1190 = vrcp.pop %v1184
      %v1191 = vrcp.pop %v1187
      %v1192 = vmul.f32 %v1169, %v1188
      %v1193 = vmul.f32 %v1171, %v1189
      %v1194 = vmul.f32 %v1173, %v1190
      %v1195 = vmul.f32 %v1175, %v1191
      %v1197 = vsel %vm847, %v1192, 0
      %1199 = vmatprep.subr.mxu0 0.0
      %1200 = vmatpush1.msra.mxu0 %v833
      %1201 = vmatprep.subr.mxu0 0.0
      %1202 = vmatpush1.msra.mxu0 0.0
      %1203 = vmatprep.subr.mxu0 0.0
      %1204 = vmatpush1.msra.mxu0 0.0
      %1205 = vmatprep.subr.mxu0 0.0
      %1206 = vmatpush1.msra.mxu0 0.0
      %1207 = vmatprep.subr.mxu0 0.0
      %1208 = vmatpush1.msra.mxu0 0.0
      %1209 = vmatprep.subr.mxu0 0.0
      %1210 = vmatpush1.msra.mxu0 0.0
      %1211 = vmatprep.subr.mxu0 0.0
      %1212 = vmatpush1.msra.mxu0 0.0
      %1213 = vmatprep.subr.mxu0 0.0
      %1214 = vmatpush1.msra.mxu0 0.0
      %1215 = vmatprep.subr.mxu0 0.0
      %1216 = vmatpush1.msra.mxu0 0.0
      %1217 = vmatprep.subr.mxu0 0.0
      %1218 = vmatpush1.msra.mxu0 0.0
      %1219 = vmatprep.subr.mxu0 0.0
      %1220 = vmatpush1.msra.mxu0 0.0
      %1221 = vmatprep.subr.mxu0 0.0
      %1222 = vmatpush1.msra.mxu0 0.0
      %1223 = vmatprep.subr.mxu0 0.0
      %1224 = vmatpush1.msra.mxu0 0.0
      %1225 = vmatprep.subr.mxu0 0.0
      %1226 = vmatpush1.msra.mxu0 0.0
      %1227 = vmatprep.subr.mxu0 0.0
      %1228 = vmatpush1.msra.mxu0 0.0
      %1229 = vmatprep.subr.mxu0 0.0
      %1230 = vmatpush1.msra.mxu0 0.0
      %1231 = vmatprep.subr.mxu0 0.0
      %1232 = vmatpush1.msra.mxu0 0.0
      %1233 = vmatprep.subr.mxu0 0.0
      %1234 = vmatpush1.msra.mxu0 0.0
      %1235 = vmatprep.subr.mxu0 0.0
      %1236 = vmatpush1.msra.mxu0 0.0
      %1237 = vmatprep.subr.mxu0 0.0
      %1238 = vmatpush1.msra.mxu0 0.0
      %1239 = vmatprep.subr.mxu0 0.0
      %1240 = vmatpush1.msra.mxu0 0.0
      %1241 = vmatprep.subr.mxu0 0.0
      %1242 = vmatpush1.msra.mxu0 0.0
      %1243 = vmatprep.subr.mxu0 0.0
      %1244 = vmatpush1.msra.mxu0 0.0
      %1245 = vmatprep.subr.mxu0 0.0
      %1246 = vmatpush1.msra.mxu0 0.0
      %1247 = vmatprep.subr.mxu0 0.0
      %1248 = vmatpush1.msra.mxu0 0.0
      %1249 = vmatprep.subr.mxu0 0.0
      %1250 = vmatpush1.msra.mxu0 0.0
      %1251 = vmatprep.subr.mxu0 0.0
      %1252 = vmatpush1.msra.mxu0 0.0
      %1253 = vmatprep.subr.mxu0 0.0
      %1254 = vmatpush1.msra.mxu0 0.0
      %1255 = vmatprep.subr.mxu0 0.0
      %1256 = vmatpush1.msra.mxu0 0.0
      %1257 = vmatprep.subr.mxu0 0.0
      %1258 = vmatpush1.msra.mxu0 0.0
      %1259 = vmatprep.subr.mxu0 0.0
      %1260 = vmatpush1.msra.mxu0 0.0
      %1261 = vmatprep.subr.mxu0 0.0
      %1262 = vmatpush1.msra.mxu0 0.0
      %1263 = vmatprep.mubr.f32.mxu0 0.0
      %1264 = vmatmul.mubr.f32.gmra.mrb[0].mxu0 %v1197
      %v1265 = vpop.f32.mrb[0].mxu0
      %v1266 = vadd.f32 0.0, %v1265
      %v1267 = vpop.f32.mrb[0].mxu0
      %1268 = vdwg.mxu0
      %v1270 = vsel %vm847, %v1193, 0
      %1272 = vmatprep.subr.mxu0 0.0
      %1273 = vmatpush1.msra.mxu0 %v836
      %1274 = vmatprep.subr.mxu0 0.0
      %1275 = vmatpush1.msra.mxu0 0.0
      %1276 = vmatprep.subr.mxu0 0.0
      %1277 = vmatpush1.msra.mxu0 0.0
      %1278 = vmatprep.subr.mxu0 0.0
      %1279 = vmatpush1.msra.mxu0 0.0
      %1280 = vmatprep.subr.mxu0 0.0
      %1281 = vmatpush1.msra.mxu0 0.0
      %1282 = vmatprep.subr.mxu0 0.0
      %1283 = vmatpush1.msra.mxu0 0.0
      %1284 = vmatprep.subr.mxu0 0.0
      %1285 = vmatpush1.msra.mxu0 0.0
      %1286 = vmatprep.subr.mxu0 0.0
      %1287 = vmatpush1.msra.mxu0 0.0
      %1288 = vmatprep.subr.mxu0 0.0
      %1289 = vmatpush1.msra.mxu0 0.0
      %1290 = vmatprep.subr.mxu0 0.0
      %1291 = vmatpush1.msra.mxu0 0.0
      %1292 = vmatprep.subr.mxu0 0.0
      %1293 = vmatpush1.msra.mxu0 0.0
      %1294 = vmatprep.subr.mxu0 0.0
      %1295 = vmatpush1.msra.mxu0 0.0
      %1296 = vmatprep.subr.mxu0 0.0
      %1297 = vmatpush1.msra.mxu0 0.0
      %1298 = vmatprep.subr.mxu0 0.0
      %1299 = vmatpush1.msra.mxu0 0.0
      %1300 = vmatprep.subr.mxu0 0.0
      %1301 = vmatpush1.msra.mxu0 0.0
      %1302 = vmatprep.subr.mxu0 0.0
      %1303 = vmatpush1.msra.mxu0 0.0
      %1304 = vmatprep.subr.mxu0 0.0
      %1305 = vmatpush1.msra.mxu0 0.0
      %1306 = vmatprep.subr.mxu0 0.0
      %1307 = vmatpush1.msra.mxu0 0.0
      %1308 = vmatprep.subr.mxu0 0.0
      %1309 = vmatpush1.msra.mxu0 0.0
      %1310 = vmatprep.subr.mxu0 0.0
      %1311 = vmatpush1.msra.mxu0 0.0
      %1312 = vmatprep.subr.mxu0 0.0
      %1313 = vmatpush1.msra.mxu0 0.0
      %1314 = vmatprep.subr.mxu0 0.0
      %1315 = vmatpush1.msra.mxu0 0.0
      %1316 = vmatprep.subr.mxu0 0.0
      %1317 = vmatpush1.msra.mxu0 0.0
      %1318 = vmatprep.subr.mxu0 0.0
      %1319 = vmatpush1.msra.mxu0 0.0
      %1320 = vmatprep.subr.mxu0 0.0
      %1321 = vmatpush1.msra.mxu0 0.0
      %1322 = vmatprep.subr.mxu0 0.0
      %1323 = vmatpush1.msra.mxu0 0.0
      %1324 = vmatprep.subr.mxu0 0.0
      %1325 = vmatpush1.msra.mxu0 0.0
      %1326 = vmatprep.subr.mxu0 0.0
      %1327 = vmatpush1.msra.mxu0 0.0
      %1328 = vmatprep.subr.mxu0 0.0
      %1329 = vmatpush1.msra.mxu0 0.0
      %1330 = vmatprep.subr.mxu0 0.0
      %1331 = vmatpush1.msra.mxu0 0.0
      %1332 = vmatprep.subr.mxu0 0.0
      %1333 = vmatpush1.msra.mxu0 0.0
      %1334 = vmatprep.subr.mxu0 0.0
      %1335 = vmatpush1.msra.mxu0 0.0
      %1336 = vmatprep.mubr.f32.mxu0 0.0
      %1337 = vmatmul.mubr.f32.gmra.mrb[0].mxu0 %v1270
      %v1338 = vpop.f32.mrb[0].mxu0
      %v1339 = vadd.f32 0.0, %v1338
      %v1340 = vpop.f32.mrb[0].mxu0
      %1341 = vdwg.mxu0
      %v1343 = vsel %vm847, %v1194, 0
      %1345 = vmatprep.subr.mxu0 0.0
      %1346 = vmatpush1.msra.mxu0 %v841
      %1347 = vmatprep.subr.mxu0 0.0
      %1348 = vmatpush1.msra.mxu0 0.0
      %1349 = vmatprep.subr.mxu0 0.0
      %1350 = vmatpush1.msra.mxu0 0.0
      %1351 = vmatprep.subr.mxu0 0.0
      %1352 = vmatpush1.msra.mxu0 0.0
      %1353 = vmatprep.subr.mxu0 0.0
      %1354 = vmatpush1.msra.mxu0 0.0
      %1355 = vmatprep.subr.mxu0 0.0
      %1356 = vmatpush1.msra.mxu0 0.0
      %1357 = vmatprep.subr.mxu0 0.0
      %1358 = vmatpush1.msra.mxu0 0.0
      %1359 = vmatprep.subr.mxu0 0.0
      %1360 = vmatpush1.msra.mxu0 0.0
      %1361 = vmatprep.subr.mxu0 0.0
      %1362 = vmatpush1.msra.mxu0 0.0
      %1363 = vmatprep.subr.mxu0 0.0
      %1364 = vmatpush1.msra.mxu0 0.0
      %1365 = vmatprep.subr.mxu0 0.0
      %1366 = vmatpush1.msra.mxu0 0.0
      %1367 = vmatprep.subr.mxu0 0.0
      %1368 = vmatpush1.msra.mxu0 0.0
      %1369 = vmatprep.subr.mxu0 0.0
      %1370 = vmatpush1.msra.mxu0 0.0
      %1371 = vmatprep.subr.mxu0 0.0
      %1372 = vmatpush1.msra.mxu0 0.0
      %1373 = vmatprep.subr.mxu0 0.0
      %1374 = vmatpush1.msra.mxu0 0.0
      %1375 = vmatprep.subr.mxu0 0.0
      %1376 = vmatpush1.msra.mxu0 0.0
      %1377 = vmatprep.subr.mxu0 0.0
      %1378 = vmatpush1.msra.mxu0 0.0
      %1379 = vmatprep.subr.mxu0 0.0
      %1380 = vmatpush1.msra.mxu0 0.0
      %1381 = vmatprep.subr.mxu0 0.0
      %1382 = vmatpush1.msra.mxu0 0.0
      %1383 = vmatprep.subr.mxu0 0.0
      %1384 = vmatpush1.msra.mxu0 0.0
      %1385 = vmatprep.subr.mxu0 0.0
      %1386 = vmatpush1.msra.mxu0 0.0
      %1387 = vmatprep.subr.mxu0 0.0
      %1388 = vmatpush1.msra.mxu0 0.0
      %1389 = vmatprep.subr.mxu0 0.0
      %1390 = vmatpush1.msra.mxu0 0.0
      %1391 = vmatprep.subr.mxu0 0.0
      %1392 = vmatpush1.msra.mxu0 0.0
      %1393 = vmatprep.subr.mxu0 0.0
      %1394 = vmatpush1.msra.mxu0 0.0
      %1395 = vmatprep.subr.mxu0 0.0
      %1396 = vmatpush1.msra.mxu0 0.0
      %1397 = vmatprep.subr.mxu0 0.0
      %1398 = vmatpush1.msra.mxu0 0.0
      %1399 = vmatprep.subr.mxu0 0.0
      %1400 = vmatpush1.msra.mxu0 0.0
      %1401 = vmatprep.subr.mxu0 0.0
      %1402 = vmatpush1.msra.mxu0 0.0
      %1403 = vmatprep.subr.mxu0 0.0
      %1404 = vmatpush1.msra.mxu0 0.0
      %1405 = vmatprep.subr.mxu0 0.0
      %1406 = vmatpush1.msra.mxu0 0.0
      %1407 = vmatprep.subr.mxu0 0.0
      %1408 = vmatpush1.msra.mxu0 0.0
      %1409 = vmatprep.mubr.f32.mxu0 0.0
      %1410 = vmatmul.mubr.f32.gmra.mrb[0].mxu0 %v1343
      %v1411 = vpop.f32.mrb[0].mxu0
      %v1412 = vadd.f32 0.0, %v1411
      %v1413 = vpop.f32.mrb[0].mxu0
      %1414 = vdwg.mxu0
      %v1416 = vsel %vm847, %v1195, 0
      %1418 = vmatprep.subr.mxu0 0.0
      %1419 = vmatpush1.msra.mxu0 %v844
      %1420 = vmatprep.subr.mxu0 0.0
      %1421 = vmatpush1.msra.mxu0 0.0
      %1422 = vmatprep.subr.mxu0 0.0
      %1423 = vmatpush1.msra.mxu0 0.0
      %1424 = vmatprep.subr.mxu0 0.0
      %1425 = vmatpush1.msra.mxu0 0.0
      %1426 = vmatprep.subr.mxu0 0.0
      %1427 = vmatpush1.msra.mxu0 0.0
      %1428 = vmatprep.subr.mxu0 0.0
      %1429 = vmatpush1.msra.mxu0 0.0
      %1430 = vmatprep.subr.mxu0 0.0
      %1431 = vmatpush1.msra.mxu0 0.0
      %1432 = vmatprep.subr.mxu0 0.0
      %1433 = vmatpush1.msra.mxu0 0.0
      %1434 = vmatprep.subr.mxu0 0.0
      %1435 = vmatpush1.msra.mxu0 0.0
      %1436 = vmatprep.subr.mxu0 0.0
      %1437 = vmatpush1.msra.mxu0 0.0
      %1438 = vmatprep.subr.mxu0 0.0
      %1439 = vmatpush1.msra.mxu0 0.0
      %1440 = vmatprep.subr.mxu0 0.0
      %1441 = vmatpush1.msra.mxu0 0.0
      %1442 = vmatprep.subr.mxu0 0.0
      %1443 = vmatpush1.msra.mxu0 0.0
      %1444 = vmatprep.subr.mxu0 0.0
      %1445 = vmatpush1.msra.mxu0 0.0
      %1446 = vmatprep.subr.mxu0 0.0
      %1447 = vmatpush1.msra.mxu0 0.0
      %1448 = vmatprep.subr.mxu0 0.0
      %1449 = vmatpush1.msra.mxu0 0.0
      %1450 = vmatprep.subr.mxu0 0.0
      %1451 = vmatpush1.msra.mxu0 0.0
      %1452 = vmatprep.subr.mxu0 0.0
      %1453 = vmatpush1.msra.mxu0 0.0
      %1454 = vmatprep.subr.mxu0 0.0
      %1455 = vmatpush1.msra.mxu0 0.0
      %1456 = vmatprep.subr.mxu0 0.0
      %1457 = vmatpush1.msra.mxu0 0.0
      %1458 = vmatprep.subr.mxu0 0.0
      %1459 = vmatpush1.msra.mxu0 0.0
      %1460 = vmatprep.subr.mxu0 0.0
      %1461 = vmatpush1.msra.mxu0 0.0
      %1462 = vmatprep.subr.mxu0 0.0
      %1463 = vmatpush1.msra.mxu0 0.0
      %1464 = vmatprep.subr.mxu0 0.0
      %1465 = vmatpush1.msra.mxu0 0.0
      %1466 = vmatprep.subr.mxu0 0.0
      %1467 = vmatpush1.msra.mxu0 0.0
      %1468 = vmatprep.subr.mxu0 0.0
      %1469 = vmatpush1.msra.mxu0 0.0
      %1470 = vmatprep.subr.mxu0 0.0
      %1471 = vmatpush1.msra.mxu0 0.0
      %1472 = vmatprep.subr.mxu0 0.0
      %1473 = vmatpush1.msra.mxu0 0.0
      %1474 = vmatprep.subr.mxu0 0.0
      %1475 = vmatpush1.msra.mxu0 0.0
      %1476 = vmatprep.subr.mxu0 0.0
      %1477 = vmatpush1.msra.mxu0 0.0
      %1478 = vmatprep.subr.mxu0 0.0
      %1479 = vmatpush1.msra.mxu0 0.0
      %1480 = vmatprep.subr.mxu0 0.0
      %1481 = vmatpush1.msra.mxu0 0.0
      %1482 = vmatprep.mubr.f32.mxu0 0.0
      %1483 = vmatmul.mubr.f32.gmra.mrb[0].mxu0 %v1416
      %v1484 = vpop.f32.mrb[0].mxu0
      %v1485 = vadd.f32 0.0, %v1484
      %v1486 = vpop.f32.mrb[0].mxu0
      %1487 = vdwg.mxu0
      %v1488 = vpack.c.bf16 %v1339, %v1266
      %v1489 = vpack.c.bf16 %v1485, %v1412
      %v1490 = vld [vmem:[%s8] sm:$0xf]
      %s1491 = scalar_lea.vmem %s2, 16
      %v1492 = vld [vmem:[%s1491] sm:$0xf]
      %v1493 = vld [vmem:[%s1491 + $0x4] sm:$0xf]
      %v1494 = vld [vmem:[%s1491 + $0x8] sm:$0xf]
      %v1495 = vld [vmem:[%s1491 + $0xc] sm:$0xf]
      %s1496 = scalar_lea.vmem %s5, 1
      %v1497 = vld [vmem:[%s1496] sm:$0x1]
      %v1499 = vlaneseq
      %v1500 = vshrl.u32 %v1499, 7
      %v1501 = vsub.s32 0, %v1500
      %v1502 = vrot.slane %v1497, %v1501
      %v1508 = vunpack.c.l.b16 %v1492
      %v1509 = vunpack.c.l.b16 %v1493
      %v1510 = vunpack.c.l.b16 %v1494
      %v1511 = vunpack.c.l.b16 %v1495
      %v1512 = vpack.c.b16 %v1509, %v1508
      %v1513 = vpack.c.b16 %v1511, %v1510
      %1516 = vmatprep.subr.bf16.mxu0 0
      %1517 = vmatpush1.bf16.msra.mxu0 %v1512
      %1518 = vmatprep.subr.bf16.mxu0 0
      %1519 = vmatpush1.bf16.msra.mxu0 %v1513
      %1520 = vmatprep.subr.bf16.mxu0 0
      %1521 = vmatpush1.bf16.msra.mxu0 0
      %1522 = vmatprep.subr.bf16.mxu0 0
      %1523 = vmatpush1.bf16.msra.mxu0 0
      %1524 = vmatprep.subr.bf16.mxu0 0
      %1525 = vmatpush1.bf16.msra.mxu0 0
      %1526 = vmatprep.subr.bf16.mxu0 0
      %1527 = vmatpush1.bf16.msra.mxu0 0
      %1528 = vmatprep.subr.bf16.mxu0 0
      %1529 = vmatpush1.bf16.msra.mxu0 0
      %1530 = vmatprep.subr.bf16.mxu0 0
      %1531 = vmatpush1.bf16.msra.mxu0 0
      %1532 = vmatprep.subr.bf16.mxu0 0
      %1533 = vmatpush1.bf16.msra.mxu0 0
      %1534 = vmatprep.subr.bf16.mxu0 0
      %1535 = vmatpush1.bf16.msra.mxu0 0
      %1536 = vmatprep.subr.bf16.mxu0 0
      %1537 = vmatpush1.bf16.msra.mxu0 0
      %1538 = vmatprep.subr.bf16.mxu0 0
      %1539 = vmatpush1.bf16.msra.mxu0 0
      %1540 = vmatprep.subr.bf16.mxu0 0
      %1541 = vmatpush1.bf16.msra.mxu0 0
      %1542 = vmatprep.subr.bf16.mxu0 0
      %1543 = vmatpush1.bf16.msra.mxu0 0
      %1544 = vmatprep.subr.bf16.mxu0 0
      %1545 = vmatpush1.bf16.msra.mxu0 0
      %1546 = vmatprep.subr.bf16.mxu0 0
      %1547 = vmatpush1.bf16.msra.mxu0 0
      %1548 = vmatprep.mubr.bf16.mxu0 0
      %1549 = vmatmul.mubr.bf16.gmra.mrb[0].mxu0 %v643
      %v1550 = vpop.f32.mrb[0].mxu0
      %v1551 = vadd.f32 %v1502, %v1550
      %v1552 = vpop.f32.mrb[0].mxu0
      %v1553 = vpop.f32.mrb[0].mxu0
      %v1554 = vadd.f32 %v1502, %v1553
      %v1555 = vpop.f32.mrb[0].mxu0
      %1556 = vmatprep.mubr.bf16.mxu0 0
      %1557 = vmatmul.mubr.bf16.gmra.mrb[0].mxu0 %v646
      %v1558 = vpop.f32.mrb[0].mxu0
      %v1559 = vadd.f32 %v1502, %v1558
      %v1560 = vpop.f32.mrb[0].mxu0
      %v1561 = vpop.f32.mrb[0].mxu0
      %v1562 = vadd.f32 %v1502, %v1561
      %v1563 = vpop.f32.mrb[0].mxu0
      %1564 = vdwg.mxu0
      %s1565 = scalar_lea.vmem %s3, 16
      %v1566 = vld [vmem:[%s1565] sm:$0xf]
      %v1567 = vld [vmem:[%s1565 + $0x4] sm:$0xf]
      %v1568 = vld [vmem:[%s1565 + $0x8] sm:$0xf]
      %v1569 = vld [vmem:[%s1565 + $0xc] sm:$0xf]
      %s1570 = scalar_lea.vmem %s6, 1
      %v1571 = vld [vmem:[%s1570] sm:$0x1]
      %v1573 = vlaneseq
      %v1574 = vshrl.u32 %v1573, 7
      %v1575 = vsub.s32 0, %v1574
      %v1576 = vrot.slane %v1571, %v1575
      %v1582 = vunpack.c.l.b16 %v1566
      %v1583 = vunpack.c.l.b16 %v1567
      %v1584 = vunpack.c.l.b16 %v1568
      %v1585 = vunpack.c.l.b16 %v1569
      %v1586 = vpack.c.b16 %v1583, %v1582
      %v1587 = vpack.c.b16 %v1585, %v1584
      %1590 = vmatprep.subr.bf16.mxu0 0
      %1591 = vmatpush1.bf16.msra.mxu0 %v1586
      %1592 = vmatprep.subr.bf16.mxu0 0
      %1593 = vmatpush1.bf16.msra.mxu0 %v1587
      %1594 = vmatprep.subr.bf16.mxu0 0
      %1595 = vmatpush1.bf16.msra.mxu0 0
      %1596 = vmatprep.subr.bf16.mxu0 0
      %1597 = vmatpush1.bf16.msra.mxu0 0
      %1598 = vmatprep.subr.bf16.mxu0 0
      %1599 = vmatpush1.bf16.msra.mxu0 0
      %1600 = vmatprep.subr.bf16.mxu0 0
      %1601 = vmatpush1.bf16.msra.mxu0 0
      %1602 = vmatprep.subr.bf16.mxu0 0
      %1603 = vmatpush1.bf16.msra.mxu0 0
      %1604 = vmatprep.subr.bf16.mxu0 0
      %1605 = vmatpush1.bf16.msra.mxu0 0
      %1606 = vmatprep.subr.bf16.mxu0 0
      %1607 = vmatpush1.bf16.msra.mxu0 0
      %1608 = vmatprep.subr.bf16.mxu0 0
      %1609 = vmatpush1.bf16.msra.mxu0 0
      %1610 = vmatprep.subr.bf16.mxu0 0
      %1611 = vmatpush1.bf16.msra.mxu0 0
      %1612 = vmatprep.subr.bf16.mxu0 0
      %1613 = vmatpush1.bf16.msra.mxu0 0
      %1614 = vmatprep.subr.bf16.mxu0 0
      %1615 = vmatpush1.bf16.msra.mxu0 0
      %1616 = vmatprep.subr.bf16.mxu0 0
      %1617 = vmatpush1.bf16.msra.mxu0 0
      %1618 = vmatprep.subr.bf16.mxu0 0
      %1619 = vmatpush1.bf16.msra.mxu0 0
      %1620 = vmatprep.subr.bf16.mxu0 0
      %1621 = vmatpush1.bf16.msra.mxu0 0
      %1622 = vmatprep.mubr.bf16.mxu0 0
      %1623 = vmatmul.mubr.bf16.gmra.mrb[0].mxu0 %v643
      %v1624 = vpop.f32.mrb[0].mxu0
      %v1625 = vadd.f32 %v1576, %v1624
      %v1626 = vpop.f32.mrb[0].mxu0
      %v1627 = vpop.f32.mrb[0].mxu0
      %v1628 = vadd.f32 %v1576, %v1627
      %v1629 = vpop.f32.mrb[0].mxu0
      %1630 = vmatprep.mubr.bf16.mxu0 0
      %1631 = vmatmul.mubr.bf16.gmra.mrb[0].mxu0 %v646
      %v1632 = vpop.f32.mrb[0].mxu0
      %v1633 = vadd.f32 %v1576, %v1632
      %v1634 = vpop.f32.mrb[0].mxu0
      %v1635 = vpop.f32.mrb[0].mxu0
      %v1636 = vadd.f32 %v1576, %v1635
      %v1637 = vpop.f32.mrb[0].mxu0
      %1638 = vdwg.mxu0
      %s1639 = scalar_lea.vmem %s4, 16
      %v1640 = vld [vmem:[%s1639] sm:$0xf]
      %v1641 = vld [vmem:[%s1639 + $0x4] sm:$0xf]
      %v1642 = vld [vmem:[%s1639 + $0x8] sm:$0xf]
      %v1643 = vld [vmem:[%s1639 + $0xc] sm:$0xf]
      %s1644 = scalar_lea.vmem %s7, 1
      %v1645 = vld [vmem:[%s1644] sm:$0x1]
      %v1647 = vlaneseq
      %v1648 = vshrl.u32 %v1647, 7
      %v1649 = vsub.s32 0, %v1648
      %v1650 = vrot.slane %v1645, %v1649
      %v1656 = vunpack.c.l.b16 %v1640
      %v1657 = vunpack.c.l.b16 %v1641
      %v1658 = vunpack.c.l.b16 %v1642
      %v1659 = vunpack.c.l.b16 %v1643
      %v1660 = vpack.c.b16 %v1657, %v1656
      %v1661 = vpack.c.b16 %v1659, %v1658
      %1664 = vmatprep.subr.bf16.mxu0 0
      %1665 = vmatpush1.bf16.msra.mxu0 %v1660
      %1666 = vmatprep.subr.bf16.mxu0 0
      %1667 = vmatpush1.bf16.msra.mxu0 %v1661
      %1668 = vmatprep.subr.bf16.mxu0 0
      %1669 = vmatpush1.bf16.msra.mxu0 0
      %1670 = vmatprep.subr.bf16.mxu0 0
      %1671 = vmatpush1.bf16.msra.mxu0 0
      %1672 = vmatprep.subr.bf16.mxu0 0
      %1673 = vmatpush1.bf16.msra.mxu0 0
      %1674 = vmatprep.subr.bf16.mxu0 0
      %1675 = vmatpush1.bf16.msra.mxu0 0
      %1676 = vmatprep.subr.bf16.mxu0 0
      %1677 = vmatpush1.bf16.msra.mxu0 0
      %1678 = vmatprep.subr.bf16.mxu0 0
      %1679 = vmatpush1.bf16.msra.mxu0 0
      %1680 = vmatprep.subr.bf16.mxu0 0
      %1681 = vmatpush1.bf16.msra.mxu0 0
      %1682 = vmatprep.subr.bf16.mxu0 0
      %1683 = vmatpush1.bf16.msra.mxu0 0
      %1684 = vmatprep.subr.bf16.mxu0 0
      %1685 = vmatpush1.bf16.msra.mxu0 0
      %1686 = vmatprep.subr.bf16.mxu0 0
      %1687 = vmatpush1.bf16.msra.mxu0 0
      %1688 = vmatprep.subr.bf16.mxu0 0
      %1689 = vmatpush1.bf16.msra.mxu0 0
      %1690 = vmatprep.subr.bf16.mxu0 0
      %1691 = vmatpush1.bf16.msra.mxu0 0
      %1692 = vmatprep.subr.bf16.mxu0 0
      %1693 = vmatpush1.bf16.msra.mxu0 0
      %1694 = vmatprep.subr.bf16.mxu0 0
      %1695 = vmatpush1.bf16.msra.mxu0 0
      %1696 = vmatprep.mubr.bf16.mxu0 0
      %1697 = vmatmul.mubr.bf16.gmra.mrb[0].mxu0 %v793
      %v1698 = vpop.f32.mrb[0].mxu0
      %v1699 = vadd.f32 %v1650, %v1698
      %v1700 = vpop.f32.mrb[0].mxu0
      %v1701 = vpop.f32.mrb[0].mxu0
      %v1702 = vadd.f32 %v1650, %v1701
      %v1703 = vpop.f32.mrb[0].mxu0
      %1704 = vmatprep.mubr.bf16.mxu0 0
      %1705 = vmatmul.mubr.bf16.gmra.mrb[0].mxu0 %v796
      %v1706 = vpop.f32.mrb[0].mxu0
      %v1707 = vadd.f32 %v1650, %v1706
      %v1708 = vpop.f32.mrb[0].mxu0
      %v1709 = vpop.f32.mrb[0].mxu0
      %v1710 = vadd.f32 %v1650, %v1709
      %v1711 = vpop.f32.mrb[0].mxu0
      %1712 = vdwg.mxu0
      %v1714 = vsel %vm847, %v1551, 0
      %v1717 = vsel %vm847, %v1625, 0
      %1719 = vmatprep.subr.mxu0 0.0
      %1720 = vmatpush1.xpose.msra.mxu0 %v1717
      %1721 = vmatprep.subr.mxu0 0.0
      %1722 = vmatpush1.xpose.msra.mxu0 0.0
      %1723 = vmatprep.subr.mxu0 0.0
      %1724 = vmatpush1.xpose.msra.mxu0 0.0
      %1725 = vmatprep.subr.mxu0 0.0
      %1726 = vmatpush1.xpose.msra.mxu0 0.0
      %1727 = vmatprep.subr.mxu0 0.0
      %1728 = vmatpush1.xpose.msra.mxu0 0.0
      %1729 = vmatprep.subr.mxu0 0.0
      %1730 = vmatpush1.xpose.msra.mxu0 0.0
      %1731 = vmatprep.subr.mxu0 0.0
      %1732 = vmatpush1.xpose.msra.mxu0 0.0
      %1733 = vmatprep.subr.mxu0 0.0
      %1734 = vmatpush1.xpose.msra.mxu0 0.0
      %1735 = vmatprep.subr.mxu0 0.0
      %1736 = vmatpush1.xpose.msra.mxu0 0.0
      %1737 = vmatprep.subr.mxu0 0.0
      %1738 = vmatpush1.xpose.msra.mxu0 0.0
      %1739 = vmatprep.subr.mxu0 0.0
      %1740 = vmatpush1.xpose.msra.mxu0 0.0
      %1741 = vmatprep.subr.mxu0 0.0
      %1742 = vmatpush1.xpose.msra.mxu0 0.0
      %1743 = vmatprep.subr.mxu0 0.0
      %1744 = vmatpush1.xpose.msra.mxu0 0.0
      %1745 = vmatprep.subr.mxu0 0.0
      %1746 = vmatpush1.xpose.msra.mxu0 0.0
      %1747 = vmatprep.subr.mxu0 0.0
      %1748 = vmatpush1.xpose.msra.mxu0 0.0
      %1749 = vmatprep.subr.mxu0 0.0
      %1750 = vmatpush1.xpose.msra.mxu0 0.0
      %1751 = vmatprep.subr.mxu0 0.0
      %1752 = vmatpush1.xpose.msra.mxu0 0.0
      %1753 = vmatprep.subr.mxu0 0.0
      %1754 = vmatpush1.xpose.msra.mxu0 0.0
      %1755 = vmatprep.subr.mxu0 0.0
      %1756 = vmatpush1.xpose.msra.mxu0 0.0
      %1757 = vmatprep.subr.mxu0 0.0
      %1758 = vmatpush1.xpose.msra.mxu0 0.0
      %1759 = vmatprep.subr.mxu0 0.0
      %1760 = vmatpush1.xpose.msra.mxu0 0.0
      %1761 = vmatprep.subr.mxu0 0.0
      %1762 = vmatpush1.xpose.msra.mxu0 0.0
      %1763 = vmatprep.subr.mxu0 0.0
      %1764 = vmatpush1.xpose.msra.mxu0 0.0
      %1765 = vmatprep.subr.mxu0 0.0
      %1766 = vmatpush1.xpose.msra.mxu0 0.0
      %1767 = vmatprep.subr.mxu0 0.0
      %1768 = vmatpush1.xpose.msra.mxu0 0.0
      %1769 = vmatprep.subr.mxu0 0.0
      %1770 = vmatpush1.xpose.msra.mxu0 0.0
      %1771 = vmatprep.subr.mxu0 0.0
      %1772 = vmatpush1.xpose.msra.mxu0 0.0
      %1773 = vmatprep.subr.mxu0 0.0
      %1774 = vmatpush1.xpose.msra.mxu0 0.0
      %1775 = vmatprep.subr.mxu0 0.0
      %1776 = vmatpush1.xpose.msra.mxu0 0.0
      %1777 = vmatprep.subr.mxu0 0.0
      %1778 = vmatpush1.xpose.msra.mxu0 0.0
      %1779 = vmatprep.subr.mxu0 0.0
      %1780 = vmatpush1.xpose.msra.mxu0 0.0
      %1781 = vmatprep.subr.mxu0 0.0
      %1782 = vmatpush1.xpose.msra.mxu0 0.0
      %1783 = vmatprep.mubr.f32.mxu0 0.0
      %1784 = vmatmul.mubr.f32.gmra.mrb[0].mxu0 %v1714
      %v1785 = vpop.f32.mrb[0].mxu0
      %v1786 = vadd.f32 0.0, %v1785
      %v1787 = vpop.f32.mrb[0].mxu0
      %1788 = vdwg.mxu0
      %v1790 = vsel %vm847, %v1554, 0
      %v1793 = vsel %vm847, %v1628, 0
      %1795 = vmatprep.subr.mxu0 0.0
      %1796 = vmatpush1.xpose.msra.mxu0 %v1793
      %1797 = vmatprep.subr.mxu0 0.0
      %1798 = vmatpush1.xpose.msra.mxu0 0.0
      %1799 = vmatprep.subr.mxu0 0.0
      %1800 = vmatpush1.xpose.msra.mxu0 0.0
      %1801 = vmatprep.subr.mxu0 0.0
      %1802 = vmatpush1.xpose.msra.mxu0 0.0
      %1803 = vmatprep.subr.mxu0 0.0
      %1804 = vmatpush1.xpose.msra.mxu0 0.0
      %1805 = vmatprep.subr.mxu0 0.0
      %1806 = vmatpush1.xpose.msra.mxu0 0.0
      %1807 = vmatprep.subr.mxu0 0.0
      %1808 = vmatpush1.xpose.msra.mxu0 0.0
      %1809 = vmatprep.subr.mxu0 0.0
      %1810 = vmatpush1.xpose.msra.mxu0 0.0
      %1811 = vmatprep.subr.mxu0 0.0
      %1812 = vmatpush1.xpose.msra.mxu0 0.0
      %1813 = vmatprep.subr.mxu0 0.0
      %1814 = vmatpush1.xpose.msra.mxu0 0.0
      %1815 = vmatprep.subr.mxu0 0.0
      %1816 = vmatpush1.xpose.msra.mxu0 0.0
      %1817 = vmatprep.subr.mxu0 0.0
      %1818 = vmatpush1.xpose.msra.mxu0 0.0
      %1819 = vmatprep.subr.mxu0 0.0
      %1820 = vmatpush1.xpose.msra.mxu0 0.0
      %1821 = vmatprep.subr.mxu0 0.0
      %1822 = vmatpush1.xpose.msra.mxu0 0.0
      %1823 = vmatprep.subr.mxu0 0.0
      %1824 = vmatpush1.xpose.msra.mxu0 0.0
      %1825 = vmatprep.subr.mxu0 0.0
      %1826 = vmatpush1.xpose.msra.mxu0 0.0
      %1827 = vmatprep.subr.mxu0 0.0
      %1828 = vmatpush1.xpose.msra.mxu0 0.0
      %1829 = vmatprep.subr.mxu0 0.0
      %1830 = vmatpush1.xpose.msra.mxu0 0.0
      %1831 = vmatprep.subr.mxu0 0.0
      %1832 = vmatpush1.xpose.msra.mxu0 0.0
      %1833 = vmatprep.subr.mxu0 0.0
      %1834 = vmatpush1.xpose.msra.mxu0 0.0
      %1835 = vmatprep.subr.mxu0 0.0
      %1836 = vmatpush1.xpose.msra.mxu0 0.0
      %1837 = vmatprep.subr.mxu0 0.0
      %1838 = vmatpush1.xpose.msra.mxu0 0.0
      %1839 = vmatprep.subr.mxu0 0.0
      %1840 = vmatpush1.xpose.msra.mxu0 0.0
      %1841 = vmatprep.subr.mxu0 0.0
      %1842 = vmatpush1.xpose.msra.mxu0 0.0
      %1843 = vmatprep.subr.mxu0 0.0
      %1844 = vmatpush1.xpose.msra.mxu0 0.0
      %1845 = vmatprep.subr.mxu0 0.0
      %1846 = vmatpush1.xpose.msra.mxu0 0.0
      %1847 = vmatprep.subr.mxu0 0.0
      %1848 = vmatpush1.xpose.msra.mxu0 0.0
      %1849 = vmatprep.subr.mxu0 0.0
      %1850 = vmatpush1.xpose.msra.mxu0 0.0
      %1851 = vmatprep.subr.mxu0 0.0
      %1852 = vmatpush1.xpose.msra.mxu0 0.0
      %1853 = vmatprep.subr.mxu0 0.0
      %1854 = vmatpush1.xpose.msra.mxu0 0.0
      %1855 = vmatprep.subr.mxu0 0.0
      %1856 = vmatpush1.xpose.msra.mxu0 0.0
      %1857 = vmatprep.subr.mxu0 0.0
      %1858 = vmatpush1.xpose.msra.mxu0 0.0
      %1859 = vmatprep.mubr.f32.mxu0 0.0
      %1860 = vmatmul.mubr.f32.gmra.mrb[0].mxu0 %v1790
      %v1861 = vpop.f32.mrb[0].mxu0
      %v1862 = vadd.f32 0.0, %v1861
      %v1863 = vpop.f32.mrb[0].mxu0
      %1864 = vdwg.mxu0
      %v1866 = vsel %vm847, %v1559, 0
      %v1869 = vsel %vm847, %v1633, 0
      %1871 = vmatprep.subr.mxu0 0.0
      %1872 = vmatpush1.xpose.msra.mxu0 %v1869
      %1873 = vmatprep.subr.mxu0 0.0
      %1874 = vmatpush1.xpose.msra.mxu0 0.0
      %1875 = vmatprep.subr.mxu0 0.0
      %1876 = vmatpush1.xpose.msra.mxu0 0.0
      %1877 = vmatprep.subr.mxu0 0.0
      %1878 = vmatpush1.xpose.msra.mxu0 0.0
      %1879 = vmatprep.subr.mxu0 0.0
      %1880 = vmatpush1.xpose.msra.mxu0 0.0
      %1881 = vmatprep.subr.mxu0 0.0
      %1882 = vmatpush1.xpose.msra.mxu0 0.0
      %1883 = vmatprep.subr.mxu0 0.0
      %1884 = vmatpush1.xpose.msra.mxu0 0.0
      %1885 = vmatprep.subr.mxu0 0.0
      %1886 = vmatpush1.xpose.msra.mxu0 0.0
      %1887 = vmatprep.subr.mxu0 0.0
      %1888 = vmatpush1.xpose.msra.mxu0 0.0
      %1889 = vmatprep.subr.mxu0 0.0
      %1890 = vmatpush1.xpose.msra.mxu0 0.0
      %1891 = vmatprep.subr.mxu0 0.0
      %1892 = vmatpush1.xpose.msra.mxu0 0.0
      %1893 = vmatprep.subr.mxu0 0.0
      %1894 = vmatpush1.xpose.msra.mxu0 0.0
      %1895 = vmatprep.subr.mxu0 0.0
      %1896 = vmatpush1.xpose.msra.mxu0 0.0
      %1897 = vmatprep.subr.mxu0 0.0
      %1898 = vmatpush1.xpose.msra.mxu0 0.0
      %1899 = vmatprep.subr.mxu0 0.0
      %1900 = vmatpush1.xpose.msra.mxu0 0.0
      %1901 = vmatprep.subr.mxu0 0.0
      %1902 = vmatpush1.xpose.msra.mxu0 0.0
      %1903 = vmatprep.subr.mxu0 0.0
      %1904 = vmatpush1.xpose.msra.mxu0 0.0
      %1905 = vmatprep.subr.mxu0 0.0
      %1906 = vmatpush1.xpose.msra.mxu0 0.0
      %1907 = vmatprep.subr.mxu0 0.0
      %1908 = vmatpush1.xpose.msra.mxu0 0.0
      %1909 = vmatprep.subr.mxu0 0.0
      %1910 = vmatpush1.xpose.msra.mxu0 0.0
      %1911 = vmatprep.subr.mxu0 0.0
      %1912 = vmatpush1.xpose.msra.mxu0 0.0
      %1913 = vmatprep.subr.mxu0 0.0
      %1914 = vmatpush1.xpose.msra.mxu0 0.0
      %1915 = vmatprep.subr.mxu0 0.0
      %1916 = vmatpush1.xpose.msra.mxu0 0.0
      %1917 = vmatprep.subr.mxu0 0.0
      %1918 = vmatpush1.xpose.msra.mxu0 0.0
      %1919 = vmatprep.subr.mxu0 0.0
      %1920 = vmatpush1.xpose.msra.mxu0 0.0
      %1921 = vmatprep.subr.mxu0 0.0
      %1922 = vmatpush1.xpose.msra.mxu0 0.0
      %1923 = vmatprep.subr.mxu0 0.0
      %1924 = vmatpush1.xpose.msra.mxu0 0.0
      %1925 = vmatprep.subr.mxu0 0.0
      %1926 = vmatpush1.xpose.msra.mxu0 0.0
      %1927 = vmatprep.subr.mxu0 0.0
      %1928 = vmatpush1.xpose.msra.mxu0 0.0
      %1929 = vmatprep.subr.mxu0 0.0
      %1930 = vmatpush1.xpose.msra.mxu0 0.0
      %1931 = vmatprep.subr.mxu0 0.0
      %1932 = vmatpush1.xpose.msra.mxu0 0.0
      %1933 = vmatprep.subr.mxu0 0.0
      %1934 = vmatpush1.xpose.msra.mxu0 0.0
      %1935 = vmatprep.mubr.f32.mxu0 0.0
      %1936 = vmatmul.mubr.f32.gmra.mrb[0].mxu0 %v1866
      %v1937 = vpop.f32.mrb[0].mxu0
      %v1938 = vadd.f32 0.0, %v1937
      %v1939 = vpop.f32.mrb[0].mxu0
      %1940 = vdwg.mxu0
      %v1942 = vsel %vm847, %v1562, 0
      %v1945 = vsel %vm847, %v1636, 0
      %1947 = vmatprep.subr.mxu0 0.0
      %1948 = vmatpush1.xpose.msra.mxu0 %v1945
      %1949 = vmatprep.subr.mxu0 0.0
      %1950 = vmatpush1.xpose.msra.mxu0 0.0
      %1951 = vmatprep.subr.mxu0 0.0
      %1952 = vmatpush1.xpose.msra.mxu0 0.0
      %1953 = vmatprep.subr.mxu0 0.0
      %1954 = vmatpush1.xpose.msra.mxu0 0.0
      %1955 = vmatprep.subr.mxu0 0.0
      %1956 = vmatpush1.xpose.msra.mxu0 0.0
      %1957 = vmatprep.subr.mxu0 0.0
      %1958 = vmatpush1.xpose.msra.mxu0 0.0
      %1959 = vmatprep.subr.mxu0 0.0
      %1960 = vmatpush1.xpose.msra.mxu0 0.0
      %1961 = vmatprep.subr.mxu0 0.0
      %1962 = vmatpush1.xpose.msra.mxu0 0.0
      %1963 = vmatprep.subr.mxu0 0.0
      %1964 = vmatpush1.xpose.msra.mxu0 0.0
      %1965 = vmatprep.subr.mxu0 0.0
      %1966 = vmatpush1.xpose.msra.mxu0 0.0
      %1967 = vmatprep.subr.mxu0 0.0
      %1968 = vmatpush1.xpose.msra.mxu0 0.0
      %1969 = vmatprep.subr.mxu0 0.0
      %1970 = vmatpush1.xpose.msra.mxu0 0.0
      %1971 = vmatprep.subr.mxu0 0.0
      %1972 = vmatpush1.xpose.msra.mxu0 0.0
      %1973 = vmatprep.subr.mxu0 0.0
      %1974 = vmatpush1.xpose.msra.mxu0 0.0
      %1975 = vmatprep.subr.mxu0 0.0
      %1976 = vmatpush1.xpose.msra.mxu0 0.0
      %1977 = vmatprep.subr.mxu0 0.0
      %1978 = vmatpush1.xpose.msra.mxu0 0.0
      %1979 = vmatprep.subr.mxu0 0.0
      %1980 = vmatpush1.xpose.msra.mxu0 0.0
      %1981 = vmatprep.subr.mxu0 0.0
      %1982 = vmatpush1.xpose.msra.mxu0 0.0
      %1983 = vmatprep.subr.mxu0 0.0
      %1984 = vmatpush1.xpose.msra.mxu0 0.0
      %1985 = vmatprep.subr.mxu0 0.0
      %1986 = vmatpush1.xpose.msra.mxu0 0.0
      %1987 = vmatprep.subr.mxu0 0.0
      %1988 = vmatpush1.xpose.msra.mxu0 0.0
      %1989 = vmatprep.subr.mxu0 0.0
      %1990 = vmatpush1.xpose.msra.mxu0 0.0
      %1991 = vmatprep.subr.mxu0 0.0
      %1992 = vmatpush1.xpose.msra.mxu0 0.0
      %1993 = vmatprep.subr.mxu0 0.0
      %1994 = vmatpush1.xpose.msra.mxu0 0.0
      %1995 = vmatprep.subr.mxu0 0.0
      %1996 = vmatpush1.xpose.msra.mxu0 0.0
      %1997 = vmatprep.subr.mxu0 0.0
      %1998 = vmatpush1.xpose.msra.mxu0 0.0
      %1999 = vmatprep.subr.mxu0 0.0
      %2000 = vmatpush1.xpose.msra.mxu0 0.0
      %2001 = vmatprep.subr.mxu0 0.0
      %2002 = vmatpush1.xpose.msra.mxu0 0.0
      %2003 = vmatprep.subr.mxu0 0.0
      %2004 = vmatpush1.xpose.msra.mxu0 0.0
      %2005 = vmatprep.subr.mxu0 0.0
      %2006 = vmatpush1.xpose.msra.mxu0 0.0
      %2007 = vmatprep.subr.mxu0 0.0
      %2008 = vmatpush1.xpose.msra.mxu0 0.0
      %2009 = vmatprep.subr.mxu0 0.0
      %2010 = vmatpush1.xpose.msra.mxu0 0.0
      %2011 = vmatprep.mubr.f32.mxu0 0.0
      %2012 = vmatmul.mubr.f32.gmra.mrb[0].mxu0 %v1942
      %v2013 = vpop.f32.mrb[0].mxu0
      %v2014 = vadd.f32 0.0, %v2013
      %v2015 = vpop.f32.mrb[0].mxu0
      %2016 = vdwg.mxu0
      %v2017 = vsel %vm847, %v1786, -inf
      %2018 = vmax.xlane.f32.xlu0 %v2017
      %v2019 = vpop.xlane.xlu0 %2018
      %v2020 = vsel %vm847, %v1862, -inf
      %2021 = vmax.xlane.f32.xlu0 %v2020
      %v2022 = vpop.xlane.xlu0 %2021
      %v2023 = vsel %vm847, %v1938, -inf
      %2024 = vmax.xlane.f32.xlu0 %v2023
      %v2025 = vpop.xlane.xlu0 %2024
      %v2026 = vsel %vm847, %v2014, -inf
      %2027 = vmax.xlane.f32.xlu0 %v2026
      %v2028 = vpop.xlane.xlu0 %2027
      %v2029 = vsub.f32 %v1786, %v2019
      %v2030 = vsub.f32 %v1862, %v2022
      %v2031 = vsub.f32 %v1938, %v2025
      %v2032 = vsub.f32 %v2014, %v2028
      %v2033 = vmul.f32 %v2029, 1.442695
      %v2034 = vpow.pop %v2033
      %v2035 = vmul.f32 %v2030, 1.442695
      %v2036 = vpow.pop %v2035
      %v2037 = vmul.f32 %v2031, 1.442695
      %v2038 = vpow.pop %v2037
      %v2039 = vmul.f32 %v2032, 1.442695
      %v2040 = vpow.pop %v2039
      %v2041 = vsel %vm847, %v2034, 0.0
      %2042 = vadd.xlane.f32.xlu0 %v2041
      %v2043 = vpop.xlane.xlu0 %2042
      %v2044 = vsel %vm847, %v2036, 0.0
      %2045 = vadd.xlane.f32.xlu0 %v2044
      %v2046 = vpop.xlane.xlu0 %2045
      %v2047 = vsel %vm847, %v2038, 0.0
      %2048 = vadd.xlane.f32.xlu0 %v2047
      %v2049 = vpop.xlane.xlu0 %2048
      %v2050 = vsel %vm847, %v2040, 0.0
      %2051 = vadd.xlane.f32.xlu0 %v2050
      %v2052 = vpop.xlane.xlu0 %2051
      %v2053 = vrcp.pop %v2043
      %v2054 = vrcp.pop %v2046
      %v2055 = vrcp.pop %v2049
      %v2056 = vrcp.pop %v2052
      %v2057 = vmul.f32 %v2034, %v2053
      %v2058 = vmul.f32 %v2036, %v2054
      %v2059 = vmul.f32 %v2038, %v2055
      %v2060 = vmul.f32 %v2040, %v2056
      %v2062 = vsel %vm847, %v2057, 0
      %2064 = vmatprep.subr.mxu0 0.0
      %2065 = vmatpush1.msra.mxu0 %v1699
      %2066 = vmatprep.subr.mxu0 0.0
      %2067 = vmatpush1.msra.mxu0 0.0
      %2068 = vmatprep.subr.mxu0 0.0
      %2069 = vmatpush1.msra.mxu0 0.0
      %2070 = vmatprep.subr.mxu0 0.0
      %2071 = vmatpush1.msra.mxu0 0.0
      %2072 = vmatprep.subr.mxu0 0.0
      %2073 = vmatpush1.msra.mxu0 0.0
      %2074 = vmatprep.subr.mxu0 0.0
      %2075 = vmatpush1.msra.mxu0 0.0
      %2076 = vmatprep.subr.mxu0 0.0
      %2077 = vmatpush1.msra.mxu0 0.0
      %2078 = vmatprep.subr.mxu0 0.0
      %2079 = vmatpush1.msra.mxu0 0.0
      %2080 = vmatprep.subr.mxu0 0.0
      %2081 = vmatpush1.msra.mxu0 0.0
      %2082 = vmatprep.subr.mxu0 0.0
      %2083 = vmatpush1.msra.mxu0 0.0
      %2084 = vmatprep.subr.mxu0 0.0
      %2085 = vmatpush1.msra.mxu0 0.0
      %2086 = vmatprep.subr.mxu0 0.0
      %2087 = vmatpush1.msra.mxu0 0.0
      %2088 = vmatprep.subr.mxu0 0.0
      %2089 = vmatpush1.msra.mxu0 0.0
      %2090 = vmatprep.subr.mxu0 0.0
      %2091 = vmatpush1.msra.mxu0 0.0
      %2092 = vmatprep.subr.mxu0 0.0
      %2093 = vmatpush1.msra.mxu0 0.0
      %2094 = vmatprep.subr.mxu0 0.0
      %2095 = vmatpush1.msra.mxu0 0.0
      %2096 = vmatprep.subr.mxu0 0.0
      %2097 = vmatpush1.msra.mxu0 0.0
      %2098 = vmatprep.subr.mxu0 0.0
      %2099 = vmatpush1.msra.mxu0 0.0
      %2100 = vmatprep.subr.mxu0 0.0
      %2101 = vmatpush1.msra.mxu0 0.0
      %2102 = vmatprep.subr.mxu0 0.0
      %2103 = vmatpush1.msra.mxu0 0.0
      %2104 = vmatprep.subr.mxu0 0.0
      %2105 = vmatpush1.msra.mxu0 0.0
      %2106 = vmatprep.subr.mxu0 0.0
      %2107 = vmatpush1.msra.mxu0 0.0
      %2108 = vmatprep.subr.mxu0 0.0
      %2109 = vmatpush1.msra.mxu0 0.0
      %2110 = vmatprep.subr.mxu0 0.0
      %2111 = vmatpush1.msra.mxu0 0.0
      %2112 = vmatprep.subr.mxu0 0.0
      %2113 = vmatpush1.msra.mxu0 0.0
      %2114 = vmatprep.subr.mxu0 0.0
      %2115 = vmatpush1.msra.mxu0 0.0
      %2116 = vmatprep.subr.mxu0 0.0
      %2117 = vmatpush1.msra.mxu0 0.0
      %2118 = vmatprep.subr.mxu0 0.0
      %2119 = vmatpush1.msra.mxu0 0.0
      %2120 = vmatprep.subr.mxu0 0.0
      %2121 = vmatpush1.msra.mxu0 0.0
      %2122 = vmatprep.subr.mxu0 0.0
      %2123 = vmatpush1.msra.mxu0 0.0
      %2124 = vmatprep.subr.mxu0 0.0
      %2125 = vmatpush1.msra.mxu0 0.0
      %2126 = vmatprep.subr.mxu0 0.0
      %2127 = vmatpush1.msra.mxu0 0.0
      %2128 = vmatprep.mubr.f32.mxu0 0.0
      %2129 = vmatmul.mubr.f32.gmra.mrb[0].mxu0 %v2062
      %v2130 = vpop.f32.mrb[0].mxu0
      %v2131 = vadd.f32 0.0, %v2130
      %v2132 = vpop.f32.mrb[0].mxu0
      %2133 = vdwg.mxu0
      %v2135 = vsel %vm847, %v2058, 0
      %2137 = vmatprep.subr.mxu0 0.0
      %2138 = vmatpush1.msra.mxu0 %v1702
      %2139 = vmatprep.subr.mxu0 0.0
      %2140 = vmatpush1.msra.mxu0 0.0
      %2141 = vmatprep.subr.mxu0 0.0
      %2142 = vmatpush1.msra.mxu0 0.0
      %2143 = vmatprep.subr.mxu0 0.0
      %2144 = vmatpush1.msra.mxu0 0.0
      %2145 = vmatprep.subr.mxu0 0.0
      %2146 = vmatpush1.msra.mxu0 0.0
      %2147 = vmatprep.subr.mxu0 0.0
      %2148 = vmatpush1.msra.mxu0 0.0
      %2149 = vmatprep.subr.mxu0 0.0
      %2150 = vmatpush1.msra.mxu0 0.0
      %2151 = vmatprep.subr.mxu0 0.0
      %2152 = vmatpush1.msra.mxu0 0.0
      %2153 = vmatprep.subr.mxu0 0.0
      %2154 = vmatpush1.msra.mxu0 0.0
      %2155 = vmatprep.subr.mxu0 0.0
      %2156 = vmatpush1.msra.mxu0 0.0
      %2157 = vmatprep.subr.mxu0 0.0
      %2158 = vmatpush1.msra.mxu0 0.0
      %2159 = vmatprep.subr.mxu0 0.0
      %2160 = vmatpush1.msra.mxu0 0.0
      %2161 = vmatprep.subr.mxu0 0.0
      %2162 = vmatpush1.msra.mxu0 0.0
      %2163 = vmatprep.subr.mxu0 0.0
      %2164 = vmatpush1.msra.mxu0 0.0
      %2165 = vmatprep.subr.mxu0 0.0
      %2166 = vmatpush1.msra.mxu0 0.0
      %2167 = vmatprep.subr.mxu0 0.0
      %2168 = vmatpush1.msra.mxu0 0.0
      %2169 = vmatprep.subr.mxu0 0.0
      %2170 = vmatpush1.msra.mxu0 0.0
      %2171 = vmatprep.subr.mxu0 0.0
      %2172 = vmatpush1.msra.mxu0 0.0
      %2173 = vmatprep.subr.mxu0 0.0
      %2174 = vmatpush1.msra.mxu0 0.0
      %2175 = vmatprep.subr.mxu0 0.0
      %2176 = vmatpush1.msra.mxu0 0.0
      %2177 = vmatprep.subr.mxu0 0.0
      %2178 = vmatpush1.msra.mxu0 0.0
      %2179 = vmatprep.subr.mxu0 0.0
      %2180 = vmatpush1.msra.mxu0 0.0
      %2181 = vmatprep.subr.mxu0 0.0
      %2182 = vmatpush1.msra.mxu0 0.0
      %2183 = vmatprep.subr.mxu0 0.0
      %2184 = vmatpush1.msra.mxu0 0.0
      %2185 = vmatprep.subr.mxu0 0.0
      %2186 = vmatpush1.msra.mxu0 0.0
      %2187 = vmatprep.subr.mxu0 0.0
      %2188 = vmatpush1.msra.mxu0 0.0
      %2189 = vmatprep.subr.mxu0 0.0
      %2190 = vmatpush1.msra.mxu0 0.0
      %2191 = vmatprep.subr.mxu0 0.0
      %2192 = vmatpush1.msra.mxu0 0.0
      %2193 = vmatprep.subr.mxu0 0.0
      %2194 = vmatpush1.msra.mxu0 0.0
      %2195 = vmatprep.subr.mxu0 0.0
      %2196 = vmatpush1.msra.mxu0 0.0
      %2197 = vmatprep.subr.mxu0 0.0
      %2198 = vmatpush1.msra.mxu0 0.0
      %2199 = vmatprep.subr.mxu0 0.0
      %2200 = vmatpush1.msra.mxu0 0.0
      %2201 = vmatprep.mubr.f32.mxu0 0.0
      %2202 = vmatmul.mubr.f32.gmra.mrb[0].mxu0 %v2135
      %v2203 = vpop.f32.mrb[0].mxu0
      %v2204 = vadd.f32 0.0, %v2203
      %v2205 = vpop.f32.mrb[0].mxu0
      %2206 = vdwg.mxu0
      %v2208 = vsel %vm847, %v2059, 0
      %2210 = vmatprep.subr.mxu0 0.0
      %2211 = vmatpush1.msra.mxu0 %v1707
      %2212 = vmatprep.subr.mxu0 0.0
      %2213 = vmatpush1.msra.mxu0 0.0
      %2214 = vmatprep.subr.mxu0 0.0
      %2215 = vmatpush1.msra.mxu0 0.0
      %2216 = vmatprep.subr.mxu0 0.0
      %2217 = vmatpush1.msra.mxu0 0.0
      %2218 = vmatprep.subr.mxu0 0.0
      %2219 = vmatpush1.msra.mxu0 0.0
      %2220 = vmatprep.subr.mxu0 0.0
      %2221 = vmatpush1.msra.mxu0 0.0
      %2222 = vmatprep.subr.mxu0 0.0
      %2223 = vmatpush1.msra.mxu0 0.0
      %2224 = vmatprep.subr.mxu0 0.0
      %2225 = vmatpush1.msra.mxu0 0.0
      %2226 = vmatprep.subr.mxu0 0.0
      %2227 = vmatpush1.msra.mxu0 0.0
      %2228 = vmatprep.subr.mxu0 0.0
      %2229 = vmatpush1.msra.mxu0 0.0
      %2230 = vmatprep.subr.mxu0 0.0
      %2231 = vmatpush1.msra.mxu0 0.0
      %2232 = vmatprep.subr.mxu0 0.0
      %2233 = vmatpush1.msra.mxu0 0.0
      %2234 = vmatprep.subr.mxu0 0.0
      %2235 = vmatpush1.msra.mxu0 0.0
      %2236 = vmatprep.subr.mxu0 0.0
      %2237 = vmatpush1.msra.mxu0 0.0
      %2238 = vmatprep.subr.mxu0 0.0
      %2239 = vmatpush1.msra.mxu0 0.0
      %2240 = vmatprep.subr.mxu0 0.0
      %2241 = vmatpush1.msra.mxu0 0.0
      %2242 = vmatprep.subr.mxu0 0.0
      %2243 = vmatpush1.msra.mxu0 0.0
      %2244 = vmatprep.subr.mxu0 0.0
      %2245 = vmatpush1.msra.mxu0 0.0
      %2246 = vmatprep.subr.mxu0 0.0
      %2247 = vmatpush1.msra.mxu0 0.0
      %2248 = vmatprep.subr.mxu0 0.0
      %2249 = vmatpush1.msra.mxu0 0.0
      %2250 = vmatprep.subr.mxu0 0.0
      %2251 = vmatpush1.msra.mxu0 0.0
      %2252 = vmatprep.subr.mxu0 0.0
      %2253 = vmatpush1.msra.mxu0 0.0
      %2254 = vmatprep.subr.mxu0 0.0
      %2255 = vmatpush1.msra.mxu0 0.0
      %2256 = vmatprep.subr.mxu0 0.0
      %2257 = vmatpush1.msra.mxu0 0.0
      %2258 = vmatprep.subr.mxu0 0.0
      %2259 = vmatpush1.msra.mxu0 0.0
      %2260 = vmatprep.subr.mxu0 0.0
      %2261 = vmatpush1.msra.mxu0 0.0
      %2262 = vmatprep.subr.mxu0 0.0
      %2263 = vmatpush1.msra.mxu0 0.0
      %2264 = vmatprep.subr.mxu0 0.0
      %2265 = vmatpush1.msra.mxu0 0.0
      %2266 = vmatprep.subr.mxu0 0.0
      %2267 = vmatpush1.msra.mxu0 0.0
      %2268 = vmatprep.subr.mxu0 0.0
      %2269 = vmatpush1.msra.mxu0 0.0
      %2270 = vmatprep.subr.mxu0 0.0
      %2271 = vmatpush1.msra.mxu0 0.0
      %2272 = vmatprep.subr.mxu0 0.0
      %2273 = vmatpush1.msra.mxu0 0.0
      %2274 = vmatprep.mubr.f32.mxu0 0.0
      %2275 = vmatmul.mubr.f32.gmra.mrb[0].mxu0 %v2208
      %v2276 = vpop.f32.mrb[0].mxu0
      %v2277 = vadd.f32 0.0, %v2276
      %v2278 = vpop.f32.mrb[0].mxu0
      %2279 = vdwg.mxu0
      %v2281 = vsel %vm847, %v2060, 0
      %2283 = vmatprep.subr.mxu0 0.0
      %2284 = vmatpush1.msra.mxu0 %v1710
      %2285 = vmatprep.subr.mxu0 0.0
      %2286 = vmatpush1.msra.mxu0 0.0
      %2287 = vmatprep.subr.mxu0 0.0
      %2288 = vmatpush1.msra.mxu0 0.0
      %2289 = vmatprep.subr.mxu0 0.0
      %2290 = vmatpush1.msra.mxu0 0.0
      %2291 = vmatprep.subr.mxu0 0.0
      %2292 = vmatpush1.msra.mxu0 0.0
      %2293 = vmatprep.subr.mxu0 0.0
      %2294 = vmatpush1.msra.mxu0 0.0
      %2295 = vmatprep.subr.mxu0 0.0
      %2296 = vmatpush1.msra.mxu0 0.0
      %2297 = vmatprep.subr.mxu0 0.0
      %2298 = vmatpush1.msra.mxu0 0.0
      %2299 = vmatprep.subr.mxu0 0.0
      %2300 = vmatpush1.msra.mxu0 0.0
      %2301 = vmatprep.subr.mxu0 0.0
      %2302 = vmatpush1.msra.mxu0 0.0
      %2303 = vmatprep.subr.mxu0 0.0
      %2304 = vmatpush1.msra.mxu0 0.0
      %2305 = vmatprep.subr.mxu0 0.0
      %2306 = vmatpush1.msra.mxu0 0.0
      %2307 = vmatprep.subr.mxu0 0.0
      %2308 = vmatpush1.msra.mxu0 0.0
      %2309 = vmatprep.subr.mxu0 0.0
      %2310 = vmatpush1.msra.mxu0 0.0
      %2311 = vmatprep.subr.mxu0 0.0
      %2312 = vmatpush1.msra.mxu0 0.0
      %2313 = vmatprep.subr.mxu0 0.0
      %2314 = vmatpush1.msra.mxu0 0.0
      %2315 = vmatprep.subr.mxu0 0.0
      %2316 = vmatpush1.msra.mxu0 0.0
      %2317 = vmatprep.subr.mxu0 0.0
      %2318 = vmatpush1.msra.mxu0 0.0
      %2319 = vmatprep.subr.mxu0 0.0
      %2320 = vmatpush1.msra.mxu0 0.0
      %2321 = vmatprep.subr.mxu0 0.0
      %2322 = vmatpush1.msra.mxu0 0.0
      %2323 = vmatprep.subr.mxu0 0.0
      %2324 = vmatpush1.msra.mxu0 0.0
      %2325 = vmatprep.subr.mxu0 0.0
      %2326 = vmatpush1.msra.mxu0 0.0
      %2327 = vmatprep.subr.mxu0 0.0
      %2328 = vmatpush1.msra.mxu0 0.0
      %2329 = vmatprep.subr.mxu0 0.0
      %2330 = vmatpush1.msra.mxu0 0.0
      %2331 = vmatprep.subr.mxu0 0.0
      %2332 = vmatpush1.msra.mxu0 0.0
      %2333 = vmatprep.subr.mxu0 0.0
      %2334 = vmatpush1.msra.mxu0 0.0
      %2335 = vmatprep.subr.mxu0 0.0
      %2336 = vmatpush1.msra.mxu0 0.0
      %2337 = vmatprep.subr.mxu0 0.0
      %2338 = vmatpush1.msra.mxu0 0.0
      %2339 = vmatprep.subr.mxu0 0.0
      %2340 = vmatpush1.msra.mxu0 0.0
      %2341 = vmatprep.subr.mxu0 0.0
      %2342 = vmatpush1.msra.mxu0 0.0
      %2343 = vmatprep.subr.mxu0 0.0
      %2344 = vmatpush1.msra.mxu0 0.0
      %2345 = vmatprep.subr.mxu0 0.0
      %2346 = vmatpush1.msra.mxu0 0.0
      %2347 = vmatprep.mubr.f32.mxu0 0.0
      %2348 = vmatmul.mubr.f32.gmra.mrb[0].mxu0 %v2281
      %v2349 = vpop.f32.mrb[0].mxu0
      %v2350 = vadd.f32 0.0, %v2349
      %v2351 = vpop.f32.mrb[0].mxu0
      %2352 = vdwg.mxu0
      %v2353 = vpack.c.bf16 %v2204, %v2131
      %v2354 = vpack.c.bf16 %v2350, %v2277
      %s2355 = scalar_lea.vmem %s8, 4
      %v2356 = vld [vmem:[%s2355] sm:$0xf]
      %v2358 = vsel %vm847, %v2353, 0
      %v2361 = vsel %vm847, %v2354, 0
      %vm2363 = vcmask 1043456
      %v2365 = vsel %vm2363, %v2356, 0
      %2367 = vmatprep.subr.bf16.mxu0 0
      %2368 = vmatpush1.bf16.msra.mxu0 %v2365
      %2369 = vmatprep.subr.bf16.mxu0 0
      %2370 = vmatpush1.bf16.msra.mxu0 0
      %2371 = vmatprep.subr.bf16.mxu0 0
      %2372 = vmatpush1.bf16.msra.mxu0 0
      %2373 = vmatprep.subr.bf16.mxu0 0
      %2374 = vmatpush1.bf16.msra.mxu0 0
      %2375 = vmatprep.subr.bf16.mxu0 0
      %2376 = vmatpush1.bf16.msra.mxu0 0
      %2377 = vmatprep.subr.bf16.mxu0 0
      %2378 = vmatpush1.bf16.msra.mxu0 0
      %2379 = vmatprep.subr.bf16.mxu0 0
      %2380 = vmatpush1.bf16.msra.mxu0 0
      %2381 = vmatprep.subr.bf16.mxu0 0
      %2382 = vmatpush1.bf16.msra.mxu0 0
      %2383 = vmatprep.subr.bf16.mxu0 0
      %2384 = vmatpush1.bf16.msra.mxu0 0
      %2385 = vmatprep.subr.bf16.mxu0 0
      %2386 = vmatpush1.bf16.msra.mxu0 0
      %2387 = vmatprep.subr.bf16.mxu0 0
      %2388 = vmatpush1.bf16.msra.mxu0 0
      %2389 = vmatprep.subr.bf16.mxu0 0
      %2390 = vmatpush1.bf16.msra.mxu0 0
      %2391 = vmatprep.subr.bf16.mxu0 0
      %2392 = vmatpush1.bf16.msra.mxu0 0
      %2393 = vmatprep.subr.bf16.mxu0 0
      %2394 = vmatpush1.bf16.msra.mxu0 0
      %2395 = vmatprep.subr.bf16.mxu0 0
      %2396 = vmatpush1.bf16.msra.mxu0 0
      %2397 = vmatprep.subr.bf16.mxu0 0
      %2398 = vmatpush1.bf16.msra.mxu0 0
      %2399 = vmatprep.mubr.bf16.mxu0 0
      %2400 = vmatmul.mubr.bf16.gmra.mrb[0].mxu0 %v2358
      %v2401 = vpop.f32.mrb[0].mxu0
      %v2402 = vadd.f32 0.0, %v2401
      %v2403 = vpop.f32.mrb[0].mxu0
      %v2404 = vpop.f32.mrb[0].mxu0
      %v2405 = vadd.f32 0.0, %v2404
      %v2406 = vpop.f32.mrb[0].mxu0
      %2407 = vmatprep.mubr.bf16.mxu0 0
      %2408 = vmatmul.mubr.bf16.gmra.mrb[0].mxu0 %v2361
      %v2409 = vpop.f32.mrb[0].mxu0
      %v2410 = vadd.f32 0.0, %v2409
      %v2411 = vpop.f32.mrb[0].mxu0
      %v2412 = vpop.f32.mrb[0].mxu0
      %v2413 = vadd.f32 0.0, %v2412
      %v2414 = vpop.f32.mrb[0].mxu0
      %2415 = vdwg.mxu0
      %v2417 = vsel %vm847, %v1488, 0
      %v2420 = vsel %vm847, %v1489, 0
      %v2423 = vsel %vm2363, %v1490, 0
      %2425 = vmatprep.subr.bf16.mxu0 0
      %2426 = vmatpush1.bf16.msra.mxu0 %v2423
      %2427 = vmatprep.subr.bf16.mxu0 0
      %2428 = vmatpush1.bf16.msra.mxu0 0
      %2429 = vmatprep.subr.bf16.mxu0 0
      %2430 = vmatpush1.bf16.msra.mxu0 0
      %2431 = vmatprep.subr.bf16.mxu0 0
      %2432 = vmatpush1.bf16.msra.mxu0 0
      %2433 = vmatprep.subr.bf16.mxu0 0
      %2434 = vmatpush1.bf16.msra.mxu0 0
      %2435 = vmatprep.subr.bf16.mxu0 0
      %2436 = vmatpush1.bf16.msra.mxu0 0
      %2437 = vmatprep.subr.bf16.mxu0 0
      %2438 = vmatpush1.bf16.msra.mxu0 0
      %2439 = vmatprep.subr.bf16.mxu0 0
      %2440 = vmatpush1.bf16.msra.mxu0 0
      %2441 = vmatprep.subr.bf16.mxu0 0
      %2442 = vmatpush1.bf16.msra.mxu0 0
      %2443 = vmatprep.subr.bf16.mxu0 0
      %2444 = vmatpush1.bf16.msra.mxu0 0
      %2445 = vmatprep.subr.bf16.mxu0 0
      %2446 = vmatpush1.bf16.msra.mxu0 0
      %2447 = vmatprep.subr.bf16.mxu0 0
      %2448 = vmatpush1.bf16.msra.mxu0 0
      %2449 = vmatprep.subr.bf16.mxu0 0
      %2450 = vmatpush1.bf16.msra.mxu0 0
      %2451 = vmatprep.subr.bf16.mxu0 0
      %2452 = vmatpush1.bf16.msra.mxu0 0
      %2453 = vmatprep.subr.bf16.mxu0 0
      %2454 = vmatpush1.bf16.msra.mxu0 0
      %2455 = vmatprep.subr.bf16.mxu0 0
      %2456 = vmatpush1.bf16.msra.mxu0 0
      %2457 = vmatprep.mubr.bf16.mxu0 0
      %2458 = vmatmul.mubr.bf16.gmra.mrb[0].mxu0 %v2417
      %v2459 = vpop.f32.mrb[0].mxu0
      %v2460 = vadd.f32 %v2402, %v2459
      %v2461 = vpop.f32.mrb[0].mxu0
      %v2462 = vpop.f32.mrb[0].mxu0
      %v2463 = vadd.f32 %v2405, %v2462
      %v2464 = vpop.f32.mrb[0].mxu0
      %2465 = vmatprep.mubr.bf16.mxu0 0
      %2466 = vmatmul.mubr.bf16.gmra.mrb[0].mxu0 %v2420
      %v2467 = vpop.f32.mrb[0].mxu0
      %v2468 = vadd.f32 %v2410, %v2467
      %v2469 = vpop.f32.mrb[0].mxu0
      %v2470 = vpop.f32.mrb[0].mxu0
      %v2471 = vadd.f32 %v2413, %v2470
      %v2472 = vpop.f32.mrb[0].mxu0
      %2473 = vdwg.mxu0
      %s2474 = scalar_lea.vmem %s2, 32
      %v2475 = vld [vmem:[%s2474] sm:$0xf]
      %v2476 = vld [vmem:[%s2474 + $0x4] sm:$0xf]
      %v2477 = vld [vmem:[%s2474 + $0x8] sm:$0xf]
      %v2478 = vld [vmem:[%s2474 + $0xc] sm:$0xf]
      %s2479 = scalar_lea.vmem %s5, 2
      %v2480 = vld [vmem:[%s2479] sm:$0x1]
      %v2482 = vlaneseq
      %v2483 = vshrl.u32 %v2482, 7
      %v2484 = vsub.s32 0, %v2483
      %v2485 = vrot.slane %v2480, %v2484
      %v2491 = vunpack.c.l.b16 %v2475
      %v2492 = vunpack.c.l.b16 %v2476
      %v2493 = vunpack.c.l.b16 %v2477
      %v2494 = vunpack.c.l.b16 %v2478
      %v2495 = vpack.c.b16 %v2492, %v2491
      %v2496 = vpack.c.b16 %v2494, %v2493
      %2499 = vmatprep.subr.bf16.mxu0 0
      %2500 = vmatpush1.bf16.msra.mxu0 %v2495
      %2501 = vmatprep.subr.bf16.mxu0 0
      %2502 = vmatpush1.bf16.msra.mxu0 %v2496
      %2503 = vmatprep.subr.bf16.mxu0 0
      %2504 = vmatpush1.bf16.msra.mxu0 0
      %2505 = vmatprep.subr.bf16.mxu0 0
      %2506 = vmatpush1.bf16.msra.mxu0 0
      %2507 = vmatprep.subr.bf16.mxu0 0
      %2508 = vmatpush1.bf16.msra.mxu0 0
      %2509 = vmatprep.subr.bf16.mxu0 0
      %2510 = vmatpush1.bf16.msra.mxu0 0
      %2511 = vmatprep.subr.bf16.mxu0 0
      %2512 = vmatpush1.bf16.msra.mxu0 0
      %2513 = vmatprep.subr.bf16.mxu0 0
      %2514 = vmatpush1.bf16.msra.mxu0 0
      %2515 = vmatprep.subr.bf16.mxu0 0
      %2516 = vmatpush1.bf16.msra.mxu0 0
      %2517 = vmatprep.subr.bf16.mxu0 0
      %2518 = vmatpush1.bf16.msra.mxu0 0
      %2519 = vmatprep.subr.bf16.mxu0 0
      %2520 = vmatpush1.bf16.msra.mxu0 0
      %2521 = vmatprep.subr.bf16.mxu0 0
      %2522 = vmatpush1.bf16.msra.mxu0 0
      %2523 = vmatprep.subr.bf16.mxu0 0
      %2524 = vmatpush1.bf16.msra.mxu0 0
      %2525 = vmatprep.subr.bf16.mxu0 0
      %2526 = vmatpush1.bf16.msra.mxu0 0
      %2527 = vmatprep.subr.bf16.mxu0 0
      %2528 = vmatpush1.bf16.msra.mxu0 0
      %2529 = vmatprep.subr.bf16.mxu0 0
      %2530 = vmatpush1.bf16.msra.mxu0 0
      %2531 = vmatprep.mubr.bf16.mxu0 0
      %2532 = vmatmul.mubr.bf16.gmra.mrb[0].mxu0 %v643
      %v2533 = vpop.f32.mrb[0].mxu0
      %v2534 = vadd.f32 %v2485, %v2533
      %v2535 = vpop.f32.mrb[0].mxu0
      %v2536 = vpop.f32.mrb[0].mxu0
      %v2537 = vadd.f32 %v2485, %v2536
      %v2538 = vpop.f32.mrb[0].mxu0
      %2539 = vmatprep.mubr.bf16.mxu0 0
      %2540 = vmatmul.mubr.bf16.gmra.mrb[0].mxu0 %v646
      %v2541 = vpop.f32.mrb[0].mxu0
      %v2542 = vadd.f32 %v2485, %v2541
      %v2543 = vpop.f32.mrb[0].mxu0
      %v2544 = vpop.f32.mrb[0].mxu0
      %v2545 = vadd.f32 %v2485, %v2544
      %v2546 = vpop.f32.mrb[0].mxu0
      %2547 = vdwg.mxu0
      %s2548 = scalar_lea.vmem %s3, 32
      %v2549 = vld [vmem:[%s2548] sm:$0xf]
      %v2550 = vld [vmem:[%s2548 + $0x4] sm:$0xf]
      %v2551 = vld [vmem:[%s2548 + $0x8] sm:$0xf]
      %v2552 = vld [vmem:[%s2548 + $0xc] sm:$0xf]
      %s2553 = scalar_lea.vmem %s6, 2
      %v2554 = vld [vmem:[%s2553] sm:$0x1]
      %v2556 = vlaneseq
      %v2557 = vshrl.u32 %v2556, 7
      %v2558 = vsub.s32 0, %v2557
      %v2559 = vrot.slane %v2554, %v2558
      %v2565 = vunpack.c.l.b16 %v2549
      %v2566 = vunpack.c.l.b16 %v2550
      %v2567 = vunpack.c.l.b16 %v2551
      %v2568 = vunpack.c.l.b16 %v2552
      %v2569 = vpack.c.b16 %v2566, %v2565
      %v2570 = vpack.c.b16 %v2568, %v2567
      %2573 = vmatprep.subr.bf16.mxu0 0
      %2574 = vmatpush1.bf16.msra.mxu0 %v2569
      %2575 = vmatprep.subr.bf16.mxu0 0
      %2576 = vmatpush1.bf16.msra.mxu0 %v2570
      %2577 = vmatprep.subr.bf16.mxu0 0
      %2578 = vmatpush1.bf16.msra.mxu0 0
      %2579 = vmatprep.subr.bf16.mxu0 0
      %2580 = vmatpush1.bf16.msra.mxu0 0
      %2581 = vmatprep.subr.bf16.mxu0 0
      %2582 = vmatpush1.bf16.msra.mxu0 0
      %2583 = vmatprep.subr.bf16.mxu0 0
      %2584 = vmatpush1.bf16.msra.mxu0 0
      %2585 = vmatprep.subr.bf16.mxu0 0
      %2586 = vmatpush1.bf16.msra.mxu0 0
      %2587 = vmatprep.subr.bf16.mxu0 0
      %2588 = vmatpush1.bf16.msra.mxu0 0
      %2589 = vmatprep.subr.bf16.mxu0 0
      %2590 = vmatpush1.bf16.msra.mxu0 0
      %2591 = vmatprep.subr.bf16.mxu0 0
      %2592 = vmatpush1.bf16.msra.mxu0 0
      %2593 = vmatprep.subr.bf16.mxu0 0
      %2594 = vmatpush1.bf16.msra.mxu0 0
      %2595 = vmatprep.subr.bf16.mxu0 0
      %2596 = vmatpush1.bf16.msra.mxu0 0
      %2597 = vmatprep.subr.bf16.mxu0 0
      %2598 = vmatpush1.bf16.msra.mxu0 0
      %2599 = vmatprep.subr.bf16.mxu0 0
      %2600 = vmatpush1.bf16.msra.mxu0 0
      %2601 = vmatprep.subr.bf16.mxu0 0
      %2602 = vmatpush1.bf16.msra.mxu0 0
      %2603 = vmatprep.subr.bf16.mxu0 0
      %2604 = vmatpush1.bf16.msra.mxu0 0
      %2605 = vmatprep.mubr.bf16.mxu0 0
      %2606 = vmatmul.mubr.bf16.gmra.mrb[0].mxu0 %v643
      %v2607 = vpop.f32.mrb[0].mxu0
      %v2608 = vadd.f32 %v2559, %v2607
      %v2609 = vpop.f32.mrb[0].mxu0
      %v2610 = vpop.f32.mrb[0].mxu0
      %v2611 = vadd.f32 %v2559, %v2610
      %v2612 = vpop.f32.mrb[0].mxu0
      %2613 = vmatprep.mubr.bf16.mxu0 0
      %2614 = vmatmul.mubr.bf16.gmra.mrb[0].mxu0 %v646
      %v2615 = vpop.f32.mrb[0].mxu0
      %v2616 = vadd.f32 %v2559, %v2615
      %v2617 = vpop.f32.mrb[0].mxu0
      %v2618 = vpop.f32.mrb[0].mxu0
      %v2619 = vadd.f32 %v2559, %v2618
      %v2620 = vpop.f32.mrb[0].mxu0
      %2621 = vdwg.mxu0
      %s2622 = scalar_lea.vmem %s4, 32
      %v2623 = vld [vmem:[%s2622] sm:$0xf]
      %v2624 = vld [vmem:[%s2622 + $0x4] sm:$0xf]
      %v2625 = vld [vmem:[%s2622 + $0x8] sm:$0xf]
      %v2626 = vld [vmem:[%s2622 + $0xc] sm:$0xf]
      %s2627 = scalar_lea.vmem %s7, 2
      %v2628 = vld [vmem:[%s2627] sm:$0x1]
      %v2630 = vlaneseq
      %v2631 = vshrl.u32 %v2630, 7
      %v2632 = vsub.s32 0, %v2631
      %v2633 = vrot.slane %v2628, %v2632
      %v2639 = vunpack.c.l.b16 %v2623
      %v2640 = vunpack.c.l.b16 %v2624
      %v2641 = vunpack.c.l.b16 %v2625
      %v2642 = vunpack.c.l.b16 %v2626
      %v2643 = vpack.c.b16 %v2640, %v2639
      %v2644 = vpack.c.b16 %v2642, %v2641
      %2647 = vmatprep.subr.bf16.mxu0 0
      %2648 = vmatpush1.bf16.msra.mxu0 %v2643
      %2649 = vmatprep.subr.bf16.mxu0 0
      %2650 = vmatpush1.bf16.msra.mxu0 %v2644
      %2651 = vmatprep.subr.bf16.mxu0 0
      %2652 = vmatpush1.bf16.msra.mxu0 0
      %2653 = vmatprep.subr.bf16.mxu0 0
      %2654 = vmatpush1.bf16.msra.mxu0 0
      %2655 = vmatprep.subr.bf16.mxu0 0
      %2656 = vmatpush1.bf16.msra.mxu0 0
      %2657 = vmatprep.subr.bf16.mxu0 0
      %2658 = vmatpush1.bf16.msra.mxu0 0
      %2659 = vmatprep.subr.bf16.mxu0 0
      %2660 = vmatpush1.bf16.msra.mxu0 0
      %2661 = vmatprep.subr.bf16.mxu0 0
      %2662 = vmatpush1.bf16.msra.mxu0 0
      %2663 = vmatprep.subr.bf16.mxu0 0
      %2664 = vmatpush1.bf16.msra.mxu0 0
      %2665 = vmatprep.subr.bf16.mxu0 0
      %2666 = vmatpush1.bf16.msra.mxu0 0
      %2667 = vmatprep.subr.bf16.mxu0 0
      %2668 = vmatpush1.bf16.msra.mxu0 0
      %2669 = vmatprep.subr.bf16.mxu0 0
      %2670 = vmatpush1.bf16.msra.mxu0 0
      %2671 = vmatprep.subr.bf16.mxu0 0
      %2672 = vmatpush1.bf16.msra.mxu0 0
      %2673 = vmatprep.subr.bf16.mxu0 0
      %2674 = vmatpush1.bf16.msra.mxu0 0
      %2675 = vmatprep.subr.bf16.mxu0 0
      %2676 = vmatpush1.bf16.msra.mxu0 0
      %2677 = vmatprep.subr.bf16.mxu0 0
      %2678 = vmatpush1.bf16.msra.mxu0 0
      %2679 = vmatprep.mubr.bf16.mxu0 0
      %2680 = vmatmul.mubr.bf16.gmra.mrb[0].mxu0 %v793
      %v2681 = vpop.f32.mrb[0].mxu0
      %v2682 = vadd.f32 %v2633, %v2681
      %v2683 = vpop.f32.mrb[0].mxu0
      %v2684 = vpop.f32.mrb[0].mxu0
      %v2685 = vadd.f32 %v2633, %v2684
      %v2686 = vpop.f32.mrb[0].mxu0
      %2687 = vmatprep.mubr.bf16.mxu0 0
      %2688 = vmatmul.mubr.bf16.gmra.mrb[0].mxu0 %v796
      %v2689 = vpop.f32.mrb[0].mxu0
      %v2690 = vadd.f32 %v2633, %v2689
      %v2691 = vpop.f32.mrb[0].mxu0
      %v2692 = vpop.f32.mrb[0].mxu0
      %v2693 = vadd.f32 %v2633, %v2692
      %v2694 = vpop.f32.mrb[0].mxu0
      %2695 = vdwg.mxu0
      %v2697 = vsel %vm847, %v2534, 0
      %v2700 = vsel %vm847, %v2608, 0
      %2702 = vmatprep.subr.mxu0 0.0
      %2703 = vmatpush1.xpose.msra.mxu0 %v2700
      %2704 = vmatprep.subr.mxu0 0.0
      %2705 = vmatpush1.xpose.msra.mxu0 0.0
      %2706 = vmatprep.subr.mxu0 0.0
      %2707 = vmatpush1.xpose.msra.mxu0 0.0
      %2708 = vmatprep.subr.mxu0 0.0
      %2709 = vmatpush1.xpose.msra.mxu0 0.0
      %2710 = vmatprep.subr.mxu0 0.0
      %2711 = vmatpush1.xpose.msra.mxu0 0.0
      %2712 = vmatprep.subr.mxu0 0.0
      %2713 = vmatpush1.xpose.msra.mxu0 0.0
      %2714 = vmatprep.subr.mxu0 0.0
      %2715 = vmatpush1.xpose.msra.mxu0 0.0
      %2716 = vmatprep.subr.mxu0 0.0
      %2717 = vmatpush1.xpose.msra.mxu0 0.0
      %2718 = vmatprep.subr.mxu0 0.0
      %2719 = vmatpush1.xpose.msra.mxu0 0.0
      %2720 = vmatprep.subr.mxu0 0.0
      %2721 = vmatpush1.xpose.msra.mxu0 0.0
      %2722 = vmatprep.subr.mxu0 0.0
      %2723 = vmatpush1.xpose.msra.mxu0 0.0
      %2724 = vmatprep.subr.mxu0 0.0
      %2725 = vmatpush1.xpose.msra.mxu0 0.0
      %2726 = vmatprep.subr.mxu0 0.0
      %2727 = vmatpush1.xpose.msra.mxu0 0.0
      %2728 = vmatprep.subr.mxu0 0.0
      %2729 = vmatpush1.xpose.msra.mxu0 0.0
      %2730 = vmatprep.subr.mxu0 0.0
      %2731 = vmatpush1.xpose.msra.mxu0 0.0
      %2732 = vmatprep.subr.mxu0 0.0
      %2733 = vmatpush1.xpose.msra.mxu0 0.0
      %2734 = vmatprep.subr.mxu0 0.0
      %2735 = vmatpush1.xpose.msra.mxu0 0.0
      %2736 = vmatprep.subr.mxu0 0.0
      %2737 = vmatpush1.xpose.msra.mxu0 0.0
      %2738 = vmatprep.subr.mxu0 0.0
      %2739 = vmatpush1.xpose.msra.mxu0 0.0
      %2740 = vmatprep.subr.mxu0 0.0
      %2741 = vmatpush1.xpose.msra.mxu0 0.0
      %2742 = vmatprep.subr.mxu0 0.0
      %2743 = vmatpush1.xpose.msra.mxu0 0.0
      %2744 = vmatprep.subr.mxu0 0.0
      %2745 = vmatpush1.xpose.msra.mxu0 0.0
      %2746 = vmatprep.subr.mxu0 0.0
      %2747 = vmatpush1.xpose.msra.mxu0 0.0
      %2748 = vmatprep.subr.mxu0 0.0
      %2749 = vmatpush1.xpose.msra.mxu0 0.0
      %2750 = vmatprep.subr.mxu0 0.0
      %2751 = vmatpush1.xpose.msra.mxu0 0.0
      %2752 = vmatprep.subr.mxu0 0.0
      %2753 = vmatpush1.xpose.msra.mxu0 0.0
      %2754 = vmatprep.subr.mxu0 0.0
      %2755 = vmatpush1.xpose.msra.mxu0 0.0
      %2756 = vmatprep.subr.mxu0 0.0
      %2757 = vmatpush1.xpose.msra.mxu0 0.0
      %2758 = vmatprep.subr.mxu0 0.0
      %2759 = vmatpush1.xpose.msra.mxu0 0.0
      %2760 = vmatprep.subr.mxu0 0.0
      %2761 = vmatpush1.xpose.msra.mxu0 0.0
      %2762 = vmatprep.subr.mxu0 0.0
      %2763 = vmatpush1.xpose.msra.mxu0 0.0
      %2764 = vmatprep.subr.mxu0 0.0
      %2765 = vmatpush1.xpose.msra.mxu0 0.0
      %2766 = vmatprep.mubr.f32.mxu0 0.0
      %2767 = vmatmul.mubr.f32.gmra.mrb[0].mxu0 %v2697
      %v2768 = vpop.f32.mrb[0].mxu0
      %v2769 = vadd.f32 0.0, %v2768
      %v2770 = vpop.f32.mrb[0].mxu0
      %2771 = vdwg.mxu0
      %v2773 = vsel %vm847, %v2537, 0
      %v2776 = vsel %vm847, %v2611, 0
      %2778 = vmatprep.subr.mxu0 0.0
      %2779 = vmatpush1.xpose.msra.mxu0 %v2776
      %2780 = vmatprep.subr.mxu0 0.0
      %2781 = vmatpush1.xpose.msra.mxu0 0.0
      %2782 = vmatprep.subr.mxu0 0.0
      %2783 = vmatpush1.xpose.msra.mxu0 0.0
      %2784 = vmatprep.subr.mxu0 0.0
      %2785 = vmatpush1.xpose.msra.mxu0 0.0
      %2786 = vmatprep.subr.mxu0 0.0
      %2787 = vmatpush1.xpose.msra.mxu0 0.0
      %2788 = vmatprep.subr.mxu0 0.0
      %2789 = vmatpush1.xpose.msra.mxu0 0.0
      %2790 = vmatprep.subr.mxu0 0.0
      %2791 = vmatpush1.xpose.msra.mxu0 0.0
      %2792 = vmatprep.subr.mxu0 0.0
      %2793 = vmatpush1.xpose.msra.mxu0 0.0
      %2794 = vmatprep.subr.mxu0 0.0
      %2795 = vmatpush1.xpose.msra.mxu0 0.0
      %2796 = vmatprep.subr.mxu0 0.0
      %2797 = vmatpush1.xpose.msra.mxu0 0.0
      %2798 = vmatprep.subr.mxu0 0.0
      %2799 = vmatpush1.xpose.msra.mxu0 0.0
      %2800 = vmatprep.subr.mxu0 0.0
      %2801 = vmatpush1.xpose.msra.mxu0 0.0
      %2802 = vmatprep.subr.mxu0 0.0
      %2803 = vmatpush1.xpose.msra.mxu0 0.0
      %2804 = vmatprep.subr.mxu0 0.0
      %2805 = vmatpush1.xpose.msra.mxu0 0.0
      %2806 = vmatprep.subr.mxu0 0.0
      %2807 = vmatpush1.xpose.msra.mxu0 0.0
      %2808 = vmatprep.subr.mxu0 0.0
      %2809 = vmatpush1.xpose.msra.mxu0 0.0
      %2810 = vmatprep.subr.mxu0 0.0
      %2811 = vmatpush1.xpose.msra.mxu0 0.0
      %2812 = vmatprep.subr.mxu0 0.0
      %2813 = vmatpush1.xpose.msra.mxu0 0.0
      %2814 = vmatprep.subr.mxu0 0.0
      %2815 = vmatpush1.xpose.msra.mxu0 0.0
      %2816 = vmatprep.subr.mxu0 0.0
      %2817 = vmatpush1.xpose.msra.mxu0 0.0
      %2818 = vmatprep.subr.mxu0 0.0
      %2819 = vmatpush1.xpose.msra.mxu0 0.0
      %2820 = vmatprep.subr.mxu0 0.0
      %2821 = vmatpush1.xpose.msra.mxu0 0.0
      %2822 = vmatprep.subr.mxu0 0.0
      %2823 = vmatpush1.xpose.msra.mxu0 0.0
      %2824 = vmatprep.subr.mxu0 0.0
      %2825 = vmatpush1.xpose.msra.mxu0 0.0
      %2826 = vmatprep.subr.mxu0 0.0
      %2827 = vmatpush1.xpose.msra.mxu0 0.0
      %2828 = vmatprep.subr.mxu0 0.0
      %2829 = vmatpush1.xpose.msra.mxu0 0.0
      %2830 = vmatprep.subr.mxu0 0.0
      %2831 = vmatpush1.xpose.msra.mxu0 0.0
      %2832 = vmatprep.subr.mxu0 0.0
      %2833 = vmatpush1.xpose.msra.mxu0 0.0
      %2834 = vmatprep.subr.mxu0 0.0
      %2835 = vmatpush1.xpose.msra.mxu0 0.0
      %2836 = vmatprep.subr.mxu0 0.0
      %2837 = vmatpush1.xpose.msra.mxu0 0.0
      %2838 = vmatprep.subr.mxu0 0.0
      %2839 = vmatpush1.xpose.msra.mxu0 0.0
      %2840 = vmatprep.subr.mxu0 0.0
      %2841 = vmatpush1.xpose.msra.mxu0 0.0
      %2842 = vmatprep.mubr.f32.mxu0 0.0
      %2843 = vmatmul.mubr.f32.gmra.mrb[0].mxu0 %v2773
      %v2844 = vpop.f32.mrb[0].mxu0
      %v2845 = vadd.f32 0.0, %v2844
      %v2846 = vpop.f32.mrb[0].mxu0
      %2847 = vdwg.mxu0
      %v2849 = vsel %vm847, %v2542, 0
      %v2852 = vsel %vm847, %v2616, 0
      %2854 = vmatprep.subr.mxu0 0.0
      %2855 = vmatpush1.xpose.msra.mxu0 %v2852
      %2856 = vmatprep.subr.mxu0 0.0
      %2857 = vmatpush1.xpose.msra.mxu0 0.0
      %2858 = vmatprep.subr.mxu0 0.0
      %2859 = vmatpush1.xpose.msra.mxu0 0.0
      %2860 = vmatprep.subr.mxu0 0.0
      %2861 = vmatpush1.xpose.msra.mxu0 0.0
      %2862 = vmatprep.subr.mxu0 0.0
      %2863 = vmatpush1.xpose.msra.mxu0 0.0
      %2864 = vmatprep.subr.mxu0 0.0
      %2865 = vmatpush1.xpose.msra.mxu0 0.0
      %2866 = vmatprep.subr.mxu0 0.0
      %2867 = vmatpush1.xpose.msra.mxu0 0.0
      %2868 = vmatprep.subr.mxu0 0.0
      %2869 = vmatpush1.xpose.msra.mxu0 0.0
      %2870 = vmatprep.subr.mxu0 0.0
      %2871 = vmatpush1.xpose.msra.mxu0 0.0
      %2872 = vmatprep.subr.mxu0 0.0
      %2873 = vmatpush1.xpose.msra.mxu0 0.0
      %2874 = vmatprep.subr.mxu0 0.0
      %2875 = vmatpush1.xpose.msra.mxu0 0.0
      %2876 = vmatprep.subr.mxu0 0.0
      %2877 = vmatpush1.xpose.msra.mxu0 0.0
      %2878 = vmatprep.subr.mxu0 0.0
      %2879 = vmatpush1.xpose.msra.mxu0 0.0
      %2880 = vmatprep.subr.mxu0 0.0
      %2881 = vmatpush1.xpose.msra.mxu0 0.0
      %2882 = vmatprep.subr.mxu0 0.0
      %2883 = vmatpush1.xpose.msra.mxu0 0.0
      %2884 = vmatprep.subr.mxu0 0.0
      %2885 = vmatpush1.xpose.msra.mxu0 0.0
      %2886 = vmatprep.subr.mxu0 0.0
      %2887 = vmatpush1.xpose.msra.mxu0 0.0
      %2888 = vmatprep.subr.mxu0 0.0
      %2889 = vmatpush1.xpose.msra.mxu0 0.0
      %2890 = vmatprep.subr.mxu0 0.0
      %2891 = vmatpush1.xpose.msra.mxu0 0.0
      %2892 = vmatprep.subr.mxu0 0.0
      %2893 = vmatpush1.xpose.msra.mxu0 0.0
      %2894 = vmatprep.subr.mxu0 0.0
      %2895 = vmatpush1.xpose.msra.mxu0 0.0
      %2896 = vmatprep.subr.mxu0 0.0
      %2897 = vmatpush1.xpose.msra.mxu0 0.0
      %2898 = vmatprep.subr.mxu0 0.0
      %2899 = vmatpush1.xpose.msra.mxu0 0.0
      %2900 = vmatprep.subr.mxu0 0.0
      %2901 = vmatpush1.xpose.msra.mxu0 0.0
      %2902 = vmatprep.subr.mxu0 0.0
      %2903 = vmatpush1.xpose.msra.mxu0 0.0
      %2904 = vmatprep.subr.mxu0 0.0
      %2905 = vmatpush1.xpose.msra.mxu0 0.0
      %2906 = vmatprep.subr.mxu0 0.0
      %2907 = vmatpush1.xpose.msra.mxu0 0.0
      %2908 = vmatprep.subr.mxu0 0.0
      %2909 = vmatpush1.xpose.msra.mxu0 0.0
      %2910 = vmatprep.subr.mxu0 0.0
      %2911 = vmatpush1.xpose.msra.mxu0 0.0
      %2912 = vmatprep.subr.mxu0 0.0
      %2913 = vmatpush1.xpose.msra.mxu0 0.0
      %2914 = vmatprep.subr.mxu0 0.0
      %2915 = vmatpush1.xpose.msra.mxu0 0.0
      %2916 = vmatprep.subr.mxu0 0.0
      %2917 = vmatpush1.xpose.msra.mxu0 0.0
      %2918 = vmatprep.mubr.f32.mxu0 0.0
      %2919 = vmatmul.mubr.f32.gmra.mrb[0].mxu0 %v2849
      %v2920 = vpop.f32.mrb[0].mxu0
      %v2921 = vadd.f32 0.0, %v2920
      %v2922 = vpop.f32.mrb[0].mxu0
      %2923 = vdwg.mxu0
      %v2925 = vsel %vm847, %v2545, 0
      %v2928 = vsel %vm847, %v2619, 0
      %2930 = vmatprep.subr.mxu0 0.0
      %2931 = vmatpush1.xpose.msra.mxu0 %v2928
      %2932 = vmatprep.subr.mxu0 0.0
      %2933 = vmatpush1.xpose.msra.mxu0 0.0
      %2934 = vmatprep.subr.mxu0 0.0
      %2935 = vmatpush1.xpose.msra.mxu0 0.0
      %2936 = vmatprep.subr.mxu0 0.0
      %2937 = vmatpush1.xpose.msra.mxu0 0.0
      %2938 = vmatprep.subr.mxu0 0.0
      %2939 = vmatpush1.xpose.msra.mxu0 0.0
      %2940 = vmatprep.subr.mxu0 0.0
      %2941 = vmatpush1.xpose.msra.mxu0 0.0
      %2942 = vmatprep.subr.mxu0 0.0
      %2943 = vmatpush1.xpose.msra.mxu0 0.0
      %2944 = vmatprep.subr.mxu0 0.0
      %2945 = vmatpush1.xpose.msra.mxu0 0.0
      %2946 = vmatprep.subr.mxu0 0.0
      %2947 = vmatpush1.xpose.msra.mxu0 0.0
      %2948 = vmatprep.subr.mxu0 0.0
      %2949 = vmatpush1.xpose.msra.mxu0 0.0
      %2950 = vmatprep.subr.mxu0 0.0
      %2951 = vmatpush1.xpose.msra.mxu0 0.0
      %2952 = vmatprep.subr.mxu0 0.0
      %2953 = vmatpush1.xpose.msra.mxu0 0.0
      %2954 = vmatprep.subr.mxu0 0.0
      %2955 = vmatpush1.xpose.msra.mxu0 0.0
      %2956 = vmatprep.subr.mxu0 0.0
      %2957 = vmatpush1.xpose.msra.mxu0 0.0
      %2958 = vmatprep.subr.mxu0 0.0
      %2959 = vmatpush1.xpose.msra.mxu0 0.0
      %2960 = vmatprep.subr.mxu0 0.0
      %2961 = vmatpush1.xpose.msra.mxu0 0.0
      %2962 = vmatprep.subr.mxu0 0.0
      %2963 = vmatpush1.xpose.msra.mxu0 0.0
      %2964 = vmatprep.subr.mxu0 0.0
      %2965 = vmatpush1.xpose.msra.mxu0 0.0
      %2966 = vmatprep.subr.mxu0 0.0
      %2967 = vmatpush1.xpose.msra.mxu0 0.0
      %2968 = vmatprep.subr.mxu0 0.0
      %2969 = vmatpush1.xpose.msra.mxu0 0.0
      %2970 = vmatprep.subr.mxu0 0.0
      %2971 = vmatpush1.xpose.msra.mxu0 0.0
      %2972 = vmatprep.subr.mxu0 0.0
      %2973 = vmatpush1.xpose.msra.mxu0 0.0
      %2974 = vmatprep.subr.mxu0 0.0
      %2975 = vmatpush1.xpose.msra.mxu0 0.0
      %2976 = vmatprep.subr.mxu0 0.0
      %2977 = vmatpush1.xpose.msra.mxu0 0.0
      %2978 = vmatprep.subr.mxu0 0.0
      %2979 = vmatpush1.xpose.msra.mxu0 0.0
      %2980 = vmatprep.subr.mxu0 0.0
      %2981 = vmatpush1.xpose.msra.mxu0 0.0
      %2982 = vmatprep.subr.mxu0 0.0
      %2983 = vmatpush1.xpose.msra.mxu0 0.0
      %2984 = vmatprep.subr.mxu0 0.0
      %2985 = vmatpush1.xpose.msra.mxu0 0.0
      %2986 = vmatprep.subr.mxu0 0.0
      %2987 = vmatpush1.xpose.msra.mxu0 0.0
      %2988 = vmatprep.subr.mxu0 0.0
      %2989 = vmatpush1.xpose.msra.mxu0 0.0
      %2990 = vmatprep.subr.mxu0 0.0
      %2991 = vmatpush1.xpose.msra.mxu0 0.0
      %2992 = vmatprep.subr.mxu0 0.0
      %2993 = vmatpush1.xpose.msra.mxu0 0.0
      %2994 = vmatprep.mubr.f32.mxu0 0.0
      %2995 = vmatmul.mubr.f32.gmra.mrb[0].mxu0 %v2925
      %v2996 = vpop.f32.mrb[0].mxu0
      %v2997 = vadd.f32 0.0, %v2996
      %v2998 = vpop.f32.mrb[0].mxu0
      %2999 = vdwg.mxu0
      %v3000 = vsel %vm847, %v2769, -inf
      %3001 = vmax.xlane.f32.xlu0 %v3000
      %v3002 = vpop.xlane.xlu0 %3001
      %v3003 = vsel %vm847, %v2845, -inf
      %3004 = vmax.xlane.f32.xlu0 %v3003
      %v3005 = vpop.xlane.xlu0 %3004
      %v3006 = vsel %vm847, %v2921, -inf
      %3007 = vmax.xlane.f32.xlu0 %v3006
      %v3008 = vpop.xlane.xlu0 %3007
      %v3009 = vsel %vm847, %v2997, -inf
      %3010 = vmax.xlane.f32.xlu0 %v3009
      %v3011 = vpop.xlane.xlu0 %3010
      %v3012 = vsub.f32 %v2769, %v3002
      %v3013 = vsub.f32 %v2845, %v3005
      %v3014 = vsub.f32 %v2921, %v3008
      %v3015 = vsub.f32 %v2997, %v3011
      %v3016 = vmul.f32 %v3012, 1.442695
      %v3017 = vpow.pop %v3016
      %v3018 = vmul.f32 %v3013, 1.442695
      %v3019 = vpow.pop %v3018
      %v3020 = vmul.f32 %v3014, 1.442695
      %v3021 = vpow.pop %v3020
      %v3022 = vmul.f32 %v3015, 1.442695
      %v3023 = vpow.pop %v3022
      %v3024 = vsel %vm847, %v3017, 0.0
      %3025 = vadd.xlane.f32.xlu0 %v3024
      %v3026 = vpop.xlane.xlu0 %3025
      %v3027 = vsel %vm847, %v3019, 0.0
      %3028 = vadd.xlane.f32.xlu0 %v3027
      %v3029 = vpop.xlane.xlu0 %3028
      %v3030 = vsel %vm847, %v3021, 0.0
      %3031 = vadd.xlane.f32.xlu0 %v3030
      %v3032 = vpop.xlane.xlu0 %3031
      %v3033 = vsel %vm847, %v3023, 0.0
      %3034 = vadd.xlane.f32.xlu0 %v3033
      %v3035 = vpop.xlane.xlu0 %3034
      %v3036 = vrcp.pop %v3026
      %v3037 = vrcp.pop %v3029
      %v3038 = vrcp.pop %v3032
      %v3039 = vrcp.pop %v3035
      %v3040 = vmul.f32 %v3017, %v3036
      %v3041 = vmul.f32 %v3019, %v3037
      %v3042 = vmul.f32 %v3021, %v3038
      %v3043 = vmul.f32 %v3023, %v3039
      %v3045 = vsel %vm847, %v3040, 0
      %3047 = vmatprep.subr.mxu0 0.0
      %3048 = vmatpush1.msra.mxu0 %v2682
      %3049 = vmatprep.subr.mxu0 0.0
      %3050 = vmatpush1.msra.mxu0 0.0
      %3051 = vmatprep.subr.mxu0 0.0
      %3052 = vmatpush1.msra.mxu0 0.0
      %3053 = vmatprep.subr.mxu0 0.0
      %3054 = vmatpush1.msra.mxu0 0.0
      %3055 = vmatprep.subr.mxu0 0.0
      %3056 = vmatpush1.msra.mxu0 0.0
      %3057 = vmatprep.subr.mxu0 0.0
      %3058 = vmatpush1.msra.mxu0 0.0
      %3059 = vmatprep.subr.mxu0 0.0
      %3060 = vmatpush1.msra.mxu0 0.0
      %3061 = vmatprep.subr.mxu0 0.0
      %3062 = vmatpush1.msra.mxu0 0.0
      %3063 = vmatprep.subr.mxu0 0.0
      %3064 = vmatpush1.msra.mxu0 0.0
      %3065 = vmatprep.subr.mxu0 0.0
      %3066 = vmatpush1.msra.mxu0 0.0
      %3067 = vmatprep.subr.mxu0 0.0
      %3068 = vmatpush1.msra.mxu0 0.0
      %3069 = vmatprep.subr.mxu0 0.0
      %3070 = vmatpush1.msra.mxu0 0.0
      %3071 = vmatprep.subr.mxu0 0.0
      %3072 = vmatpush1.msra.mxu0 0.0
      %3073 = vmatprep.subr.mxu0 0.0
      %3074 = vmatpush1.msra.mxu0 0.0
      %3075 = vmatprep.subr.mxu0 0.0
      %3076 = vmatpush1.msra.mxu0 0.0
      %3077 = vmatprep.subr.mxu0 0.0
      %3078 = vmatpush1.msra.mxu0 0.0
      %3079 = vmatprep.subr.mxu0 0.0
      %3080 = vmatpush1.msra.mxu0 0.0
      %3081 = vmatprep.subr.mxu0 0.0
      %3082 = vmatpush1.msra.mxu0 0.0
      %3083 = vmatprep.subr.mxu0 0.0
      %3084 = vmatpush1.msra.mxu0 0.0
      %3085 = vmatprep.subr.mxu0 0.0
      %3086 = vmatpush1.msra.mxu0 0.0
      %3087 = vmatprep.subr.mxu0 0.0
      %3088 = vmatpush1.msra.mxu0 0.0
      %3089 = vmatprep.subr.mxu0 0.0
      %3090 = vmatpush1.msra.mxu0 0.0
      %3091 = vmatprep.subr.mxu0 0.0
      %3092 = vmatpush1.msra.mxu0 0.0
      %3093 = vmatprep.subr.mxu0 0.0
      %3094 = vmatpush1.msra.mxu0 0.0
      %3095 = vmatprep.subr.mxu0 0.0
      %3096 = vmatpush1.msra.mxu0 0.0
      %3097 = vmatprep.subr.mxu0 0.0
      %3098 = vmatpush1.msra.mxu0 0.0
      %3099 = vmatprep.subr.mxu0 0.0
      %3100 = vmatpush1.msra.mxu0 0.0
      %3101 = vmatprep.subr.mxu0 0.0
      %3102 = vmatpush1.msra.mxu0 0.0
      %3103 = vmatprep.subr.mxu0 0.0
      %3104 = vmatpush1.msra.mxu0 0.0
      %3105 = vmatprep.subr.mxu0 0.0
      %3106 = vmatpush1.msra.mxu0 0.0
      %3107 = vmatprep.subr.mxu0 0.0
      %3108 = vmatpush1.msra.mxu0 0.0
      %3109 = vmatprep.subr.mxu0 0.0
      %3110 = vmatpush1.msra.mxu0 0.0
      %3111 = vmatprep.mubr.f32.mxu0 0.0
      %3112 = vmatmul.mubr.f32.gmra.mrb[0].mxu0 %v3045
      %v3113 = vpop.f32.mrb[0].mxu0
      %v3114 = vadd.f32 0.0, %v3113
      %v3115 = vpop.f32.mrb[0].mxu0
      %3116 = vdwg.mxu0
      %v3118 = vsel %vm847, %v3041, 0
      %3120 = vmatprep.subr.mxu0 0.0
      %3121 = vmatpush1.msra.mxu0 %v2685
      %3122 = vmatprep.subr.mxu0 0.0
      %3123 = vmatpush1.msra.mxu0 0.0
      %3124 = vmatprep.subr.mxu0 0.0
      %3125 = vmatpush1.msra.mxu0 0.0
      %3126 = vmatprep.subr.mxu0 0.0
      %3127 = vmatpush1.msra.mxu0 0.0
      %3128 = vmatprep.subr.mxu0 0.0
      %3129 = vmatpush1.msra.mxu0 0.0
      %3130 = vmatprep.subr.mxu0 0.0
      %3131 = vmatpush1.msra.mxu0 0.0
      %3132 = vmatprep.subr.mxu0 0.0
      %3133 = vmatpush1.msra.mxu0 0.0
      %3134 = vmatprep.subr.mxu0 0.0
      %3135 = vmatpush1.msra.mxu0 0.0
      %3136 = vmatprep.subr.mxu0 0.0
      %3137 = vmatpush1.msra.mxu0 0.0
      %3138 = vmatprep.subr.mxu0 0.0
      %3139 = vmatpush1.msra.mxu0 0.0
      %3140 = vmatprep.subr.mxu0 0.0
      %3141 = vmatpush1.msra.mxu0 0.0
      %3142 = vmatprep.subr.mxu0 0.0
      %3143 = vmatpush1.msra.mxu0 0.0
      %3144 = vmatprep.subr.mxu0 0.0
      %3145 = vmatpush1.msra.mxu0 0.0
      %3146 = vmatprep.subr.mxu0 0.0
      %3147 = vmatpush1.msra.mxu0 0.0
      %3148 = vmatprep.subr.mxu0 0.0
      %3149 = vmatpush1.msra.mxu0 0.0
      %3150 = vmatprep.subr.mxu0 0.0
      %3151 = vmatpush1.msra.mxu0 0.0
      %3152 = vmatprep.subr.mxu0 0.0
      %3153 = vmatpush1.msra.mxu0 0.0
      %3154 = vmatprep.subr.mxu0 0.0
      %3155 = vmatpush1.msra.mxu0 0.0
      %3156 = vmatprep.subr.mxu0 0.0
      %3157 = vmatpush1.msra.mxu0 0.0
      %3158 = vmatprep.subr.mxu0 0.0
      %3159 = vmatpush1.msra.mxu0 0.0
      %3160 = vmatprep.subr.mxu0 0.0
      %3161 = vmatpush1.msra.mxu0 0.0
      %3162 = vmatprep.subr.mxu0 0.0
      %3163 = vmatpush1.msra.mxu0 0.0
      %3164 = vmatprep.subr.mxu0 0.0
      %3165 = vmatpush1.msra.mxu0 0.0
      %3166 = vmatprep.subr.mxu0 0.0
      %3167 = vmatpush1.msra.mxu0 0.0
      %3168 = vmatprep.subr.mxu0 0.0
      %3169 = vmatpush1.msra.mxu0 0.0
      %3170 = vmatprep.subr.mxu0 0.0
      %3171 = vmatpush1.msra.mxu0 0.0
      %3172 = vmatprep.subr.mxu0 0.0
      %3173 = vmatpush1.msra.mxu0 0.0
      %3174 = vmatprep.subr.mxu0 0.0
      %3175 = vmatpush1.msra.mxu0 0.0
      %3176 = vmatprep.subr.mxu0 0.0
      %3177 = vmatpush1.msra.mxu0 0.0
      %3178 = vmatprep.subr.mxu0 0.0
      %3179 = vmatpush1.msra.mxu0 0.0
      %3180 = vmatprep.subr.mxu0 0.0
      %3181 = vmatpush1.msra.mxu0 0.0
      %3182 = vmatprep.subr.mxu0 0.0
      %3183 = vmatpush1.msra.mxu0 0.0
      %3184 = vmatprep.mubr.f32.mxu0 0.0
      %3185 = vmatmul.mubr.f32.gmra.mrb[0].mxu0 %v3118
      %v3186 = vpop.f32.mrb[0].mxu0
      %v3187 = vadd.f32 0.0, %v3186
      %v3188 = vpop.f32.mrb[0].mxu0
      %3189 = vdwg.mxu0
      %v3191 = vsel %vm847, %v3042, 0
      %3193 = vmatprep.subr.mxu0 0.0
      %3194 = vmatpush1.msra.mxu0 %v2690
      %3195 = vmatprep.subr.mxu0 0.0
      %3196 = vmatpush1.msra.mxu0 0.0
      %3197 = vmatprep.subr.mxu0 0.0
      %3198 = vmatpush1.msra.mxu0 0.0
      %3199 = vmatprep.subr.mxu0 0.0
      %3200 = vmatpush1.msra.mxu0 0.0
      %3201 = vmatprep.subr.mxu0 0.0
      %3202 = vmatpush1.msra.mxu0 0.0
      %3203 = vmatprep.subr.mxu0 0.0
      %3204 = vmatpush1.msra.mxu0 0.0
      %3205 = vmatprep.subr.mxu0 0.0
      %3206 = vmatpush1.msra.mxu0 0.0
      %3207 = vmatprep.subr.mxu0 0.0
      %3208 = vmatpush1.msra.mxu0 0.0
      %3209 = vmatprep.subr.mxu0 0.0
      %3210 = vmatpush1.msra.mxu0 0.0
      %3211 = vmatprep.subr.mxu0 0.0
      %3212 = vmatpush1.msra.mxu0 0.0
      %3213 = vmatprep.subr.mxu0 0.0
      %3214 = vmatpush1.msra.mxu0 0.0
      %3215 = vmatprep.subr.mxu0 0.0
      %3216 = vmatpush1.msra.mxu0 0.0
      %3217 = vmatprep.subr.mxu0 0.0
      %3218 = vmatpush1.msra.mxu0 0.0
      %3219 = vmatprep.subr.mxu0 0.0
      %3220 = vmatpush1.msra.mxu0 0.0
      %3221 = vmatprep.subr.mxu0 0.0
      %3222 = vmatpush1.msra.mxu0 0.0
      %3223 = vmatprep.subr.mxu0 0.0
      %3224 = vmatpush1.msra.mxu0 0.0
      %3225 = vmatprep.subr.mxu0 0.0
      %3226 = vmatpush1.msra.mxu0 0.0
      %3227 = vmatprep.subr.mxu0 0.0
      %3228 = vmatpush1.msra.mxu0 0.0
      %3229 = vmatprep.subr.mxu0 0.0
      %3230 = vmatpush1.msra.mxu0 0.0
      %3231 = vmatprep.subr.mxu0 0.0
      %3232 = vmatpush1.msra.mxu0 0.0
      %3233 = vmatprep.subr.mxu0 0.0
      %3234 = vmatpush1.msra.mxu0 0.0
      %3235 = vmatprep.subr.mxu0 0.0
      %3236 = vmatpush1.msra.mxu0 0.0
      %3237 = vmatprep.subr.mxu0 0.0
      %3238 = vmatpush1.msra.mxu0 0.0
      %3239 = vmatprep.subr.mxu0 0.0
      %3240 = vmatpush1.msra.mxu0 0.0
      %3241 = vmatprep.subr.mxu0 0.0
      %3242 = vmatpush1.msra.mxu0 0.0
      %3243 = vmatprep.subr.mxu0 0.0
      %3244 = vmatpush1.msra.mxu0 0.0
      %3245 = vmatprep.subr.mxu0 0.0
      %3246 = vmatpush1.msra.mxu0 0.0
      %3247 = vmatprep.subr.mxu0 0.0
      %3248 = vmatpush1.msra.mxu0 0.0
      %3249 = vmatprep.subr.mxu0 0.0
      %3250 = vmatpush1.msra.mxu0 0.0
      %3251 = vmatprep.subr.mxu0 0.0
      %3252 = vmatpush1.msra.mxu0 0.0
      %3253 = vmatprep.subr.mxu0 0.0
      %3254 = vmatpush1.msra.mxu0 0.0
      %3255 = vmatprep.subr.mxu0 0.0
      %3256 = vmatpush1.msra.mxu0 0.0
      %3257 = vmatprep.mubr.f32.mxu0 0.0
      %3258 = vmatmul.mubr.f32.gmra.mrb[0].mxu0 %v3191
      %v3259 = vpop.f32.mrb[0].mxu0
      %v3260 = vadd.f32 0.0, %v3259
      %v3261 = vpop.f32.mrb[0].mxu0
      %3262 = vdwg.mxu0
      %v3264 = vsel %vm847, %v3043, 0
      %3266 = vmatprep.subr.mxu0 0.0
      %3267 = vmatpush1.msra.mxu0 %v2693
      %3268 = vmatprep.subr.mxu0 0.0
      %3269 = vmatpush1.msra.mxu0 0.0
      %3270 = vmatprep.subr.mxu0 0.0
      %3271 = vmatpush1.msra.mxu0 0.0
      %3272 = vmatprep.subr.mxu0 0.0
      %3273 = vmatpush1.msra.mxu0 0.0
      %3274 = vmatprep.subr.mxu0 0.0
      %3275 = vmatpush1.msra.mxu0 0.0
      %3276 = vmatprep.subr.mxu0 0.0
      %3277 = vmatpush1.msra.mxu0 0.0
      %3278 = vmatprep.subr.mxu0 0.0
      %3279 = vmatpush1.msra.mxu0 0.0
      %3280 = vmatprep.subr.mxu0 0.0
      %3281 = vmatpush1.msra.mxu0 0.0
      %3282 = vmatprep.subr.mxu0 0.0
      %3283 = vmatpush1.msra.mxu0 0.0
      %3284 = vmatprep.subr.mxu0 0.0
      %3285 = vmatpush1.msra.mxu0 0.0
      %3286 = vmatprep.subr.mxu0 0.0
      %3287 = vmatpush1.msra.mxu0 0.0
      %3288 = vmatprep.subr.mxu0 0.0
      %3289 = vmatpush1.msra.mxu0 0.0
      %3290 = vmatprep.subr.mxu0 0.0
      %3291 = vmatpush1.msra.mxu0 0.0
      %3292 = vmatprep.subr.mxu0 0.0
      %3293 = vmatpush1.msra.mxu0 0.0
      %3294 = vmatprep.subr.mxu0 0.0
      %3295 = vmatpush1.msra.mxu0 0.0
      %3296 = vmatprep.subr.mxu0 0.0
      %3297 = vmatpush1.msra.mxu0 0.0
      %3298 = vmatprep.subr.mxu0 0.0
      %3299 = vmatpush1.msra.mxu0 0.0
      %3300 = vmatprep.subr.mxu0 0.0
      %3301 = vmatpush1.msra.mxu0 0.0
      %3302 = vmatprep.subr.mxu0 0.0
      %3303 = vmatpush1.msra.mxu0 0.0
      %3304 = vmatprep.subr.mxu0 0.0
      %3305 = vmatpush1.msra.mxu0 0.0
      %3306 = vmatprep.subr.mxu0 0.0
      %3307 = vmatpush1.msra.mxu0 0.0
      %3308 = vmatprep.subr.mxu0 0.0
      %3309 = vmatpush1.msra.mxu0 0.0
      %3310 = vmatprep.subr.mxu0 0.0
      %3311 = vmatpush1.msra.mxu0 0.0
      %3312 = vmatprep.subr.mxu0 0.0
      %3313 = vmatpush1.msra.mxu0 0.0
      %3314 = vmatprep.subr.mxu0 0.0
      %3315 = vmatpush1.msra.mxu0 0.0
      %3316 = vmatprep.subr.mxu0 0.0
      %3317 = vmatpush1.msra.mxu0 0.0
      %3318 = vmatprep.subr.mxu0 0.0
      %3319 = vmatpush1.msra.mxu0 0.0
      %3320 = vmatprep.subr.mxu0 0.0
      %3321 = vmatpush1.msra.mxu0 0.0
      %3322 = vmatprep.subr.mxu0 0.0
      %3323 = vmatpush1.msra.mxu0 0.0
      %3324 = vmatprep.subr.mxu0 0.0
      %3325 = vmatpush1.msra.mxu0 0.0
      %3326 = vmatprep.subr.mxu0 0.0
      %3327 = vmatpush1.msra.mxu0 0.0
      %3328 = vmatprep.subr.mxu0 0.0
      %3329 = vmatpush1.msra.mxu0 0.0
      %3330 = vmatprep.mubr.f32.mxu0 0.0
      %3331 = vmatmul.mubr.f32.gmra.mrb[0].mxu0 %v3264
      %v3332 = vpop.f32.mrb[0].mxu0
      %v3333 = vadd.f32 0.0, %v3332
      %v3334 = vpop.f32.mrb[0].mxu0
      %3335 = vdwg.mxu0
      %v3336 = vpack.c.bf16 %v3187, %v3114
      %v3337 = vpack.c.bf16 %v3333, %v3260
      %s3338 = scalar_lea.vmem %s8, 8
      %v3339 = vld [vmem:[%s3338] sm:$0xf]
      %v3341 = vsel %vm847, %v3336, 0
      %v3344 = vsel %vm847, %v3337, 0
      %v3347 = vsel %vm2363, %v3339, 0
      %3349 = vmatprep.subr.bf16.mxu0 0
      %3350 = vmatpush1.bf16.msra.mxu0 %v3347
      %3351 = vmatprep.subr.bf16.mxu0 0
      %3352 = vmatpush1.bf16.msra.mxu0 0
      %3353 = vmatprep.subr.bf16.mxu0 0
      %3354 = vmatpush1.bf16.msra.mxu0 0
      %3355 = vmatprep.subr.bf16.mxu0 0
      %3356 = vmatpush1.bf16.msra.mxu0 0
      %3357 = vmatprep.subr.bf16.mxu0 0
      %3358 = vmatpush1.bf16.msra.mxu0 0
      %3359 = vmatprep.subr.bf16.mxu0 0
      %3360 = vmatpush1.bf16.msra.mxu0 0
      %3361 = vmatprep.subr.bf16.mxu0 0
      %3362 = vmatpush1.bf16.msra.mxu0 0
      %3363 = vmatprep.subr.bf16.mxu0 0
      %3364 = vmatpush1.bf16.msra.mxu0 0
      %3365 = vmatprep.subr.bf16.mxu0 0
      %3366 = vmatpush1.bf16.msra.mxu0 0
      %3367 = vmatprep.subr.bf16.mxu0 0
      %3368 = vmatpush1.bf16.msra.mxu0 0
      %3369 = vmatprep.subr.bf16.mxu0 0
      %3370 = vmatpush1.bf16.msra.mxu0 0
      %3371 = vmatprep.subr.bf16.mxu0 0
      %3372 = vmatpush1.bf16.msra.mxu0 0
      %3373 = vmatprep.subr.bf16.mxu0 0
      %3374 = vmatpush1.bf16.msra.mxu0 0
      %3375 = vmatprep.subr.bf16.mxu0 0
      %3376 = vmatpush1.bf16.msra.mxu0 0
      %3377 = vmatprep.subr.bf16.mxu0 0
      %3378 = vmatpush1.bf16.msra.mxu0 0
      %3379 = vmatprep.subr.bf16.mxu0 0
      %3380 = vmatpush1.bf16.msra.mxu0 0
      %3381 = vmatprep.mubr.bf16.mxu0 0
      %3382 = vmatmul.mubr.bf16.gmra.mrb[0].mxu0 %v3341
      %v3383 = vpop.f32.mrb[0].mxu0
      %v3384 = vadd.f32 0.0, %v3383
      %v3385 = vpop.f32.mrb[0].mxu0
      %v3386 = vpop.f32.mrb[0].mxu0
      %v3387 = vadd.f32 0.0, %v3386
      %v3388 = vpop.f32.mrb[0].mxu0
      %3389 = vmatprep.mubr.bf16.mxu0 0
      %3390 = vmatmul.mubr.bf16.gmra.mrb[0].mxu0 %v3344
      %v3391 = vpop.f32.mrb[0].mxu0
      %v3392 = vadd.f32 0.0, %v3391
      %v3393 = vpop.f32.mrb[0].mxu0
      %v3394 = vpop.f32.mrb[0].mxu0
      %v3395 = vadd.f32 0.0, %v3394
      %v3396 = vpop.f32.mrb[0].mxu0
      %3397 = vdwg.mxu0
      %v3398 = vadd.f32 %v2460, %v3384
      %v3399 = vadd.f32 %v2463, %v3387
      %v3400 = vadd.f32 %v2468, %v3392
      %v3401 = vadd.f32 %v2471, %v3395
      %s3402 = scalar_lea.vmem %s2, 48
      %v3403 = vld [vmem:[%s3402] sm:$0xf]
      %v3404 = vld [vmem:[%s3402 + $0x4] sm:$0xf]
      %v3405 = vld [vmem:[%s3402 + $0x8] sm:$0xf]
      %v3406 = vld [vmem:[%s3402 + $0xc] sm:$0xf]
      %s3407 = scalar_lea.vmem %s5, 3
      %v3408 = vld [vmem:[%s3407] sm:$0x1]
      %v3410 = vlaneseq
      %v3411 = vshrl.u32 %v3410, 7
      %v3412 = vsub.s32 0, %v3411
      %v3413 = vrot.slane %v3408, %v3412
      %v3419 = vunpack.c.l.b16 %v3403
      %v3420 = vunpack.c.l.b16 %v3404
      %v3421 = vunpack.c.l.b16 %v3405
      %v3422 = vunpack.c.l.b16 %v3406
      %v3423 = vpack.c.b16 %v3420, %v3419
      %v3424 = vpack.c.b16 %v3422, %v3421
      %3427 = vmatprep.subr.bf16.mxu0 0
      %3428 = vmatpush1.bf16.msra.mxu0 %v3423
      %3429 = vmatprep.subr.bf16.mxu0 0
      %3430 = vmatpush1.bf16.msra.mxu0 %v3424
      %3431 = vmatprep.subr.bf16.mxu0 0
      %3432 = vmatpush1.bf16.msra.mxu0 0
      %3433 = vmatprep.subr.bf16.mxu0 0
      %3434 = vmatpush1.bf16.msra.mxu0 0
      %3435 = vmatprep.subr.bf16.mxu0 0
      %3436 = vmatpush1.bf16.msra.mxu0 0
      %3437 = vmatprep.subr.bf16.mxu0 0
      %3438 = vmatpush1.bf16.msra.mxu0 0
      %3439 = vmatprep.subr.bf16.mxu0 0
      %3440 = vmatpush1.bf16.msra.mxu0 0
      %3441 = vmatprep.subr.bf16.mxu0 0
      %3442 = vmatpush1.bf16.msra.mxu0 0
      %3443 = vmatprep.subr.bf16.mxu0 0
      %3444 = vmatpush1.bf16.msra.mxu0 0
      %3445 = vmatprep.subr.bf16.mxu0 0
      %3446 = vmatpush1.bf16.msra.mxu0 0
      %3447 = vmatprep.subr.bf16.mxu0 0
      %3448 = vmatpush1.bf16.msra.mxu0 0
      %3449 = vmatprep.subr.bf16.mxu0 0
      %3450 = vmatpush1.bf16.msra.mxu0 0
      %3451 = vmatprep.subr.bf16.mxu0 0
      %3452 = vmatpush1.bf16.msra.mxu0 0
      %3453 = vmatprep.subr.bf16.mxu0 0
      %3454 = vmatpush1.bf16.msra.mxu0 0
      %3455 = vmatprep.subr.bf16.mxu0 0
      %3456 = vmatpush1.bf16.msra.mxu0 0
      %3457 = vmatprep.subr.bf16.mxu0 0
      %3458 = vmatpush1.bf16.msra.mxu0 0
      %3459 = vmatprep.mubr.bf16.mxu0 0
      %3460 = vmatmul.mubr.bf16.gmra.mrb[0].mxu0 %v643
      %v3461 = vpop.f32.mrb[0].mxu0
      %v3462 = vadd.f32 %v3413, %v3461
      %v3463 = vpop.f32.mrb[0].mxu0
      %v3464 = vpop.f32.mrb[0].mxu0
      %v3465 = vadd.f32 %v3413, %v3464
      %v3466 = vpop.f32.mrb[0].mxu0
      %3467 = vmatprep.mubr.bf16.mxu0 0
      %3468 = vmatmul.mubr.bf16.gmra.mrb[0].mxu0 %v646
      %v3469 = vpop.f32.mrb[0].mxu0
      %v3470 = vadd.f32 %v3413, %v3469
      %v3471 = vpop.f32.mrb[0].mxu0
      %v3472 = vpop.f32.mrb[0].mxu0
      %v3473 = vadd.f32 %v3413, %v3472
      %v3474 = vpop.f32.mrb[0].mxu0
      %3475 = vdwg.mxu0
      %s3476 = scalar_lea.vmem %s3, 48
      %v3477 = vld [vmem:[%s3476] sm:$0xf]
      %v3478 = vld [vmem:[%s3476 + $0x4] sm:$0xf]
      %v3479 = vld [vmem:[%s3476 + $0x8] sm:$0xf]
      %v3480 = vld [vmem:[%s3476 + $0xc] sm:$0xf]
      %s3481 = scalar_lea.vmem %s6, 3
      %v3482 = vld [vmem:[%s3481] sm:$0x1]
      %v3484 = vlaneseq
      %v3485 = vshrl.u32 %v3484, 7
      %v3486 = vsub.s32 0, %v3485
      %v3487 = vrot.slane %v3482, %v3486
      %v3493 = vunpack.c.l.b16 %v3477
      %v3494 = vunpack.c.l.b16 %v3478
      %v3495 = vunpack.c.l.b16 %v3479
      %v3496 = vunpack.c.l.b16 %v3480
      %v3497 = vpack.c.b16 %v3494, %v3493
      %v3498 = vpack.c.b16 %v3496, %v3495
      %3501 = vmatprep.subr.bf16.mxu0 0
      %3502 = vmatpush1.bf16.msra.mxu0 %v3497
      %3503 = vmatprep.subr.bf16.mxu0 0
      %3504 = vmatpush1.bf16.msra.mxu0 %v3498
      %3505 = vmatprep.subr.bf16.mxu0 0
      %3506 = vmatpush1.bf16.msra.mxu0 0
      %3507 = vmatprep.subr.bf16.mxu0 0
      %3508 = vmatpush1.bf16.msra.mxu0 0
      %3509 = vmatprep.subr.bf16.mxu0 0
      %3510 = vmatpush1.bf16.msra.mxu0 0
      %3511 = vmatprep.subr.bf16.mxu0 0
      %3512 = vmatpush1.bf16.msra.mxu0 0
      %3513 = vmatprep.subr.bf16.mxu0 0
      %3514 = vmatpush1.bf16.msra.mxu0 0
      %3515 = vmatprep.subr.bf16.mxu0 0
      %3516 = vmatpush1.bf16.msra.mxu0 0
      %3517 = vmatprep.subr.bf16.mxu0 0
      %3518 = vmatpush1.bf16.msra.mxu0 0
      %3519 = vmatprep.subr.bf16.mxu0 0
      %3520 = vmatpush1.bf16.msra.mxu0 0
      %3521 = vmatprep.subr.bf16.mxu0 0
      %3522 = vmatpush1.bf16.msra.mxu0 0
      %3523 = vmatprep.subr.bf16.mxu0 0
      %3524 = vmatpush1.bf16.msra.mxu0 0
      %3525 = vmatprep.subr.bf16.mxu0 0
      %3526 = vmatpush1.bf16.msra.mxu0 0
      %3527 = vmatprep.subr.bf16.mxu0 0
      %3528 = vmatpush1.bf16.msra.mxu0 0
      %3529 = vmatprep.subr.bf16.mxu0 0
      %3530 = vmatpush1.bf16.msra.mxu0 0
      %3531 = vmatprep.subr.bf16.mxu0 0
      %3532 = vmatpush1.bf16.msra.mxu0 0
      %3533 = vmatprep.mubr.bf16.mxu0 0
      %3534 = vmatmul.mubr.bf16.gmra.mrb[0].mxu0 %v643
      %v3535 = vpop.f32.mrb[0].mxu0
      %v3536 = vadd.f32 %v3487, %v3535
      %v3537 = vpop.f32.mrb[0].mxu0
      %v3538 = vpop.f32.mrb[0].mxu0
      %v3539 = vadd.f32 %v3487, %v3538
      %v3540 = vpop.f32.mrb[0].mxu0
      %3541 = vmatprep.mubr.bf16.mxu0 0
      %3542 = vmatmul.mubr.bf16.gmra.mrb[0].mxu0 %v646
      %v3543 = vpop.f32.mrb[0].mxu0
      %v3544 = vadd.f32 %v3487, %v3543
      %v3545 = vpop.f32.mrb[0].mxu0
      %v3546 = vpop.f32.mrb[0].mxu0
      %v3547 = vadd.f32 %v3487, %v3546
      %v3548 = vpop.f32.mrb[0].mxu0
      %3549 = vdwg.mxu0
      %s3550 = scalar_lea.vmem %s4, 48
      %v3551 = vld [vmem:[%s3550] sm:$0xf]
      %v3552 = vld [vmem:[%s3550 + $0x4] sm:$0xf]
      %v3553 = vld [vmem:[%s3550 + $0x8] sm:$0xf]
      %v3554 = vld [vmem:[%s3550 + $0xc] sm:$0xf]
      %s3555 = scalar_lea.vmem %s7, 3
      %v3556 = vld [vmem:[%s3555] sm:$0x1]
      %v3558 = vlaneseq
      %v3559 = vshrl.u32 %v3558, 7
      %v3560 = vsub.s32 0, %v3559
      %v3561 = vrot.slane %v3556, %v3560
      %v3567 = vunpack.c.l.b16 %v3551
      %v3568 = vunpack.c.l.b16 %v3552
      %v3569 = vunpack.c.l.b16 %v3553
      %v3570 = vunpack.c.l.b16 %v3554
      %v3571 = vpack.c.b16 %v3568, %v3567
      %v3572 = vpack.c.b16 %v3570, %v3569
      %3575 = vmatprep.subr.bf16.mxu0 0
      %3576 = vmatpush1.bf16.msra.mxu0 %v3571
      %3577 = vmatprep.subr.bf16.mxu0 0
      %3578 = vmatpush1.bf16.msra.mxu0 %v3572
      %3579 = vmatprep.subr.bf16.mxu0 0
      %3580 = vmatpush1.bf16.msra.mxu0 0
      %3581 = vmatprep.subr.bf16.mxu0 0
      %3582 = vmatpush1.bf16.msra.mxu0 0
      %3583 = vmatprep.subr.bf16.mxu0 0
      %3584 = vmatpush1.bf16.msra.mxu0 0
      %3585 = vmatprep.subr.bf16.mxu0 0
      %3586 = vmatpush1.bf16.msra.mxu0 0
      %3587 = vmatprep.subr.bf16.mxu0 0
      %3588 = vmatpush1.bf16.msra.mxu0 0
      %3589 = vmatprep.subr.bf16.mxu0 0
      %3590 = vmatpush1.bf16.msra.mxu0 0
      %3591 = vmatprep.subr.bf16.mxu0 0
      %3592 = vmatpush1.bf16.msra.mxu0 0
      %3593 = vmatprep.subr.bf16.mxu0 0
      %3594 = vmatpush1.bf16.msra.mxu0 0
      %3595 = vmatprep.subr.bf16.mxu0 0
      %3596 = vmatpush1.bf16.msra.mxu0 0
      %3597 = vmatprep.subr.bf16.mxu0 0
      %3598 = vmatpush1.bf16.msra.mxu0 0
      %3599 = vmatprep.subr.bf16.mxu0 0
      %3600 = vmatpush1.bf16.msra.mxu0 0
      %3601 = vmatprep.subr.bf16.mxu0 0
      %3602 = vmatpush1.bf16.msra.mxu0 0
      %3603 = vmatprep.subr.bf16.mxu0 0
      %3604 = vmatpush1.bf16.msra.mxu0 0
      %3605 = vmatprep.subr.bf16.mxu0 0
      %3606 = vmatpush1.bf16.msra.mxu0 0
      %3607 = vmatprep.mubr.bf16.mxu0 0
      %3608 = vmatmul.mubr.bf16.gmra.mrb[0].mxu0 %v793
      %v3609 = vpop.f32.mrb[0].mxu0
      %v3610 = vadd.f32 %v3561, %v3609
      %v3611 = vpop.f32.mrb[0].mxu0
      %v3612 = vpop.f32.mrb[0].mxu0
      %v3613 = vadd.f32 %v3561, %v3612
      %v3614 = vpop.f32.mrb[0].mxu0
      %3615 = vmatprep.mubr.bf16.mxu0 0
      %3616 = vmatmul.mubr.bf16.gmra.mrb[0].mxu0 %v796
      %v3617 = vpop.f32.mrb[0].mxu0
      %v3618 = vadd.f32 %v3561, %v3617
      %v3619 = vpop.f32.mrb[0].mxu0
      %v3620 = vpop.f32.mrb[0].mxu0
      %v3621 = vadd.f32 %v3561, %v3620
      %v3622 = vpop.f32.mrb[0].mxu0
      %3623 = vdwg.mxu0
      %v3625 = vsel %vm847, %v3462, 0
      %v3628 = vsel %vm847, %v3536, 0
      %3630 = vmatprep.subr.mxu0 0.0
      %3631 = vmatpush1.xpose.msra.mxu0 %v3628
      %3632 = vmatprep.subr.mxu0 0.0
      %3633 = vmatpush1.xpose.msra.mxu0 0.0
      %3634 = vmatprep.subr.mxu0 0.0
      %3635 = vmatpush1.xpose.msra.mxu0 0.0
      %3636 = vmatprep.subr.mxu0 0.0
      %3637 = vmatpush1.xpose.msra.mxu0 0.0
      %3638 = vmatprep.subr.mxu0 0.0
      %3639 = vmatpush1.xpose.msra.mxu0 0.0
      %3640 = vmatprep.subr.mxu0 0.0
      %3641 = vmatpush1.xpose.msra.mxu0 0.0
      %3642 = vmatprep.subr.mxu0 0.0
      %3643 = vmatpush1.xpose.msra.mxu0 0.0
      %3644 = vmatprep.subr.mxu0 0.0
      %3645 = vmatpush1.xpose.msra.mxu0 0.0
      %3646 = vmatprep.subr.mxu0 0.0
      %3647 = vmatpush1.xpose.msra.mxu0 0.0
      %3648 = vmatprep.subr.mxu0 0.0
      %3649 = vmatpush1.xpose.msra.mxu0 0.0
      %3650 = vmatprep.subr.mxu0 0.0
      %3651 = vmatpush1.xpose.msra.mxu0 0.0
      %3652 = vmatprep.subr.mxu0 0.0
      %3653 = vmatpush1.xpose.msra.mxu0 0.0
      %3654 = vmatprep.subr.mxu0 0.0
      %3655 = vmatpush1.xpose.msra.mxu0 0.0
      %3656 = vmatprep.subr.mxu0 0.0
      %3657 = vmatpush1.xpose.msra.mxu0 0.0
      %3658 = vmatprep.subr.mxu0 0.0
      %3659 = vmatpush1.xpose.msra.mxu0 0.0
      %3660 = vmatprep.subr.mxu0 0.0
      %3661 = vmatpush1.xpose.msra.mxu0 0.0
      %3662 = vmatprep.subr.mxu0 0.0
      %3663 = vmatpush1.xpose.msra.mxu0 0.0
      %3664 = vmatprep.subr.mxu0 0.0
      %3665 = vmatpush1.xpose.msra.mxu0 0.0
      %3666 = vmatprep.subr.mxu0 0.0
      %3667 = vmatpush1.xpose.msra.mxu0 0.0
      %3668 = vmatprep.subr.mxu0 0.0
      %3669 = vmatpush1.xpose.msra.mxu0 0.0
      %3670 = vmatprep.subr.mxu0 0.0
      %3671 = vmatpush1.xpose.msra.mxu0 0.0
      %3672 = vmatprep.subr.mxu0 0.0
      %3673 = vmatpush1.xpose.msra.mxu0 0.0
      %3674 = vmatprep.subr.mxu0 0.0
      %3675 = vmatpush1.xpose.msra.mxu0 0.0
      %3676 = vmatprep.subr.mxu0 0.0
      %3677 = vmatpush1.xpose.msra.mxu0 0.0
      %3678 = vmatprep.subr.mxu0 0.0
      %3679 = vmatpush1.xpose.msra.mxu0 0.0
      %3680 = vmatprep.subr.mxu0 0.0
      %3681 = vmatpush1.xpose.msra.mxu0 0.0
      %3682 = vmatprep.subr.mxu0 0.0
      %3683 = vmatpush1.xpose.msra.mxu0 0.0
      %3684 = vmatprep.subr.mxu0 0.0
      %3685 = vmatpush1.xpose.msra.mxu0 0.0
      %3686 = vmatprep.subr.mxu0 0.0
      %3687 = vmatpush1.xpose.msra.mxu0 0.0
      %3688 = vmatprep.subr.mxu0 0.0
      %3689 = vmatpush1.xpose.msra.mxu0 0.0
      %3690 = vmatprep.subr.mxu0 0.0
      %3691 = vmatpush1.xpose.msra.mxu0 0.0
      %3692 = vmatprep.subr.mxu0 0.0
      %3693 = vmatpush1.xpose.msra.mxu0 0.0
      %3694 = vmatprep.mubr.f32.mxu0 0.0
      %3695 = vmatmul.mubr.f32.gmra.mrb[0].mxu0 %v3625
      %v3696 = vpop.f32.mrb[0].mxu0
      %v3697 = vadd.f32 0.0, %v3696
      %v3698 = vpop.f32.mrb[0].mxu0
      %3699 = vdwg.mxu0
      %v3701 = vsel %vm847, %v3465, 0
      %v3704 = vsel %vm847, %v3539, 0
      %3706 = vmatprep.subr.mxu0 0.0
      %3707 = vmatpush1.xpose.msra.mxu0 %v3704
      %3708 = vmatprep.subr.mxu0 0.0
      %3709 = vmatpush1.xpose.msra.mxu0 0.0
      %3710 = vmatprep.subr.mxu0 0.0
      %3711 = vmatpush1.xpose.msra.mxu0 0.0
      %3712 = vmatprep.subr.mxu0 0.0
      %3713 = vmatpush1.xpose.msra.mxu0 0.0
      %3714 = vmatprep.subr.mxu0 0.0
      %3715 = vmatpush1.xpose.msra.mxu0 0.0
      %3716 = vmatprep.subr.mxu0 0.0
      %3717 = vmatpush1.xpose.msra.mxu0 0.0
      %3718 = vmatprep.subr.mxu0 0.0
      %3719 = vmatpush1.xpose.msra.mxu0 0.0
      %3720 = vmatprep.subr.mxu0 0.0
      %3721 = vmatpush1.xpose.msra.mxu0 0.0
      %3722 = vmatprep.subr.mxu0 0.0
      %3723 = vmatpush1.xpose.msra.mxu0 0.0
      %3724 = vmatprep.subr.mxu0 0.0
      %3725 = vmatpush1.xpose.msra.mxu0 0.0
      %3726 = vmatprep.subr.mxu0 0.0
      %3727 = vmatpush1.xpose.msra.mxu0 0.0
      %3728 = vmatprep.subr.mxu0 0.0
      %3729 = vmatpush1.xpose.msra.mxu0 0.0
      %3730 = vmatprep.subr.mxu0 0.0
      %3731 = vmatpush1.xpose.msra.mxu0 0.0
      %3732 = vmatprep.subr.mxu0 0.0
      %3733 = vmatpush1.xpose.msra.mxu0 0.0
      %3734 = vmatprep.subr.mxu0 0.0
      %3735 = vmatpush1.xpose.msra.mxu0 0.0
      %3736 = vmatprep.subr.mxu0 0.0
      %3737 = vmatpush1.xpose.msra.mxu0 0.0
      %3738 = vmatprep.subr.mxu0 0.0
      %3739 = vmatpush1.xpose.msra.mxu0 0.0
      %3740 = vmatprep.subr.mxu0 0.0
      %3741 = vmatpush1.xpose.msra.mxu0 0.0
      %3742 = vmatprep.subr.mxu0 0.0
      %3743 = vmatpush1.xpose.msra.mxu0 0.0
      %3744 = vmatprep.subr.mxu0 0.0
      %3745 = vmatpush1.xpose.msra.mxu0 0.0
      %3746 = vmatprep.subr.mxu0 0.0
      %3747 = vmatpush1.xpose.msra.mxu0 0.0
      %3748 = vmatprep.subr.mxu0 0.0
      %3749 = vmatpush1.xpose.msra.mxu0 0.0
      %3750 = vmatprep.subr.mxu0 0.0
      %3751 = vmatpush1.xpose.msra.mxu0 0.0
      %3752 = vmatprep.subr.mxu0 0.0
      %3753 = vmatpush1.xpose.msra.mxu0 0.0
      %3754 = vmatprep.subr.mxu0 0.0
      %3755 = vmatpush1.xpose.msra.mxu0 0.0
      %3756 = vmatprep.subr.mxu0 0.0
      %3757 = vmatpush1.xpose.msra.mxu0 0.0
      %3758 = vmatprep.subr.mxu0 0.0
      %3759 = vmatpush1.xpose.msra.mxu0 0.0
      %3760 = vmatprep.subr.mxu0 0.0
      %3761 = vmatpush1.xpose.msra.mxu0 0.0
      %3762 = vmatprep.subr.mxu0 0.0
      %3763 = vmatpush1.xpose.msra.mxu0 0.0
      %3764 = vmatprep.subr.mxu0 0.0
      %3765 = vmatpush1.xpose.msra.mxu0 0.0
      %3766 = vmatprep.subr.mxu0 0.0
      %3767 = vmatpush1.xpose.msra.mxu0 0.0
      %3768 = vmatprep.subr.mxu0 0.0
      %3769 = vmatpush1.xpose.msra.mxu0 0.0
      %3770 = vmatprep.mubr.f32.mxu0 0.0
      %3771 = vmatmul.mubr.f32.gmra.mrb[0].mxu0 %v3701
      %v3772 = vpop.f32.mrb[0].mxu0
      %v3773 = vadd.f32 0.0, %v3772
      %v3774 = vpop.f32.mrb[0].mxu0
      %3775 = vdwg.mxu0
      %v3777 = vsel %vm847, %v3470, 0
      %v3780 = vsel %vm847, %v3544, 0
      %3782 = vmatprep.subr.mxu0 0.0
      %3783 = vmatpush1.xpose.msra.mxu0 %v3780
      %3784 = vmatprep.subr.mxu0 0.0
      %3785 = vmatpush1.xpose.msra.mxu0 0.0
      %3786 = vmatprep.subr.mxu0 0.0
      %3787 = vmatpush1.xpose.msra.mxu0 0.0
      %3788 = vmatprep.subr.mxu0 0.0
      %3789 = vmatpush1.xpose.msra.mxu0 0.0
      %3790 = vmatprep.subr.mxu0 0.0
      %3791 = vmatpush1.xpose.msra.mxu0 0.0
      %3792 = vmatprep.subr.mxu0 0.0
      %3793 = vmatpush1.xpose.msra.mxu0 0.0
      %3794 = vmatprep.subr.mxu0 0.0
      %3795 = vmatpush1.xpose.msra.mxu0 0.0
      %3796 = vmatprep.subr.mxu0 0.0
      %3797 = vmatpush1.xpose.msra.mxu0 0.0
      %3798 = vmatprep.subr.mxu0 0.0
      %3799 = vmatpush1.xpose.msra.mxu0 0.0
      %3800 = vmatprep.subr.mxu0 0.0
      %3801 = vmatpush1.xpose.msra.mxu0 0.0
      %3802 = vmatprep.subr.mxu0 0.0
      %3803 = vmatpush1.xpose.msra.mxu0 0.0
      %3804 = vmatprep.subr.mxu0 0.0
      %3805 = vmatpush1.xpose.msra.mxu0 0.0
      %3806 = vmatprep.subr.mxu0 0.0
      %3807 = vmatpush1.xpose.msra.mxu0 0.0
      %3808 = vmatprep.subr.mxu0 0.0
      %3809 = vmatpush1.xpose.msra.mxu0 0.0
      %3810 = vmatprep.subr.mxu0 0.0
      %3811 = vmatpush1.xpose.msra.mxu0 0.0
      %3812 = vmatprep.subr.mxu0 0.0
      %3813 = vmatpush1.xpose.msra.mxu0 0.0
      %3814 = vmatprep.subr.mxu0 0.0
      %3815 = vmatpush1.xpose.msra.mxu0 0.0
      %3816 = vmatprep.subr.mxu0 0.0
      %3817 = vmatpush1.xpose.msra.mxu0 0.0
      %3818 = vmatprep.subr.mxu0 0.0
      %3819 = vmatpush1.xpose.msra.mxu0 0.0
      %3820 = vmatprep.subr.mxu0 0.0
      %3821 = vmatpush1.xpose.msra.mxu0 0.0
      %3822 = vmatprep.subr.mxu0 0.0
      %3823 = vmatpush1.xpose.msra.mxu0 0.0
      %3824 = vmatprep.subr.mxu0 0.0
      %3825 = vmatpush1.xpose.msra.mxu0 0.0
      %3826 = vmatprep.subr.mxu0 0.0
      %3827 = vmatpush1.xpose.msra.mxu0 0.0
      %3828 = vmatprep.subr.mxu0 0.0
      %3829 = vmatpush1.xpose.msra.mxu0 0.0
      %3830 = vmatprep.subr.mxu0 0.0
      %3831 = vmatpush1.xpose.msra.mxu0 0.0
      %3832 = vmatprep.subr.mxu0 0.0
      %3833 = vmatpush1.xpose.msra.mxu0 0.0
      %3834 = vmatprep.subr.mxu0 0.0
      %3835 = vmatpush1.xpose.msra.mxu0 0.0
      %3836 = vmatprep.subr.mxu0 0.0
      %3837 = vmatpush1.xpose.msra.mxu0 0.0
      %3838 = vmatprep.subr.mxu0 0.0
      %3839 = vmatpush1.xpose.msra.mxu0 0.0
      %3840 = vmatprep.subr.mxu0 0.0
      %3841 = vmatpush1.xpose.msra.mxu0 0.0
      %3842 = vmatprep.subr.mxu0 0.0
      %3843 = vmatpush1.xpose.msra.mxu0 0.0
      %3844 = vmatprep.subr.mxu0 0.0
      %3845 = vmatpush1.xpose.msra.mxu0 0.0
      %3846 = vmatprep.mubr.f32.mxu0 0.0
      %3847 = vmatmul.mubr.f32.gmra.mrb[0].mxu0 %v3777
      %v3848 = vpop.f32.mrb[0].mxu0
      %v3849 = vadd.f32 0.0, %v3848
      %v3850 = vpop.f32.mrb[0].mxu0
      %3851 = vdwg.mxu0
      %v3853 = vsel %vm847, %v3473, 0
      %v3856 = vsel %vm847, %v3547, 0
      %3858 = vmatprep.subr.mxu0 0.0
      %3859 = vmatpush1.xpose.msra.mxu0 %v3856
      %3860 = vmatprep.subr.mxu0 0.0
      %3861 = vmatpush1.xpose.msra.mxu0 0.0
      %3862 = vmatprep.subr.mxu0 0.0
      %3863 = vmatpush1.xpose.msra.mxu0 0.0
      %3864 = vmatprep.subr.mxu0 0.0
      %3865 = vmatpush1.xpose.msra.mxu0 0.0
      %3866 = vmatprep.subr.mxu0 0.0
      %3867 = vmatpush1.xpose.msra.mxu0 0.0
      %3868 = vmatprep.subr.mxu0 0.0
      %3869 = vmatpush1.xpose.msra.mxu0 0.0
      %3870 = vmatprep.subr.mxu0 0.0
      %3871 = vmatpush1.xpose.msra.mxu0 0.0
      %3872 = vmatprep.subr.mxu0 0.0
      %3873 = vmatpush1.xpose.msra.mxu0 0.0
      %3874 = vmatprep.subr.mxu0 0.0
      %3875 = vmatpush1.xpose.msra.mxu0 0.0
      %3876 = vmatprep.subr.mxu0 0.0
      %3877 = vmatpush1.xpose.msra.mxu0 0.0
      %3878 = vmatprep.subr.mxu0 0.0
      %3879 = vmatpush1.xpose.msra.mxu0 0.0
      %3880 = vmatprep.subr.mxu0 0.0
      %3881 = vmatpush1.xpose.msra.mxu0 0.0
      %3882 = vmatprep.subr.mxu0 0.0
      %3883 = vmatpush1.xpose.msra.mxu0 0.0
      %3884 = vmatprep.subr.mxu0 0.0
      %3885 = vmatpush1.xpose.msra.mxu0 0.0
      %3886 = vmatprep.subr.mxu0 0.0
      %3887 = vmatpush1.xpose.msra.mxu0 0.0
      %3888 = vmatprep.subr.mxu0 0.0
      %3889 = vmatpush1.xpose.msra.mxu0 0.0
      %3890 = vmatprep.subr.mxu0 0.0
      %3891 = vmatpush1.xpose.msra.mxu0 0.0
      %3892 = vmatprep.subr.mxu0 0.0
      %3893 = vmatpush1.xpose.msra.mxu0 0.0
      %3894 = vmatprep.subr.mxu0 0.0
      %3895 = vmatpush1.xpose.msra.mxu0 0.0
      %3896 = vmatprep.subr.mxu0 0.0
      %3897 = vmatpush1.xpose.msra.mxu0 0.0
      %3898 = vmatprep.subr.mxu0 0.0
      %3899 = vmatpush1.xpose.msra.mxu0 0.0
      %3900 = vmatprep.subr.mxu0 0.0
      %3901 = vmatpush1.xpose.msra.mxu0 0.0
      %3902 = vmatprep.subr.mxu0 0.0
      %3903 = vmatpush1.xpose.msra.mxu0 0.0
      %3904 = vmatprep.subr.mxu0 0.0
      %3905 = vmatpush1.xpose.msra.mxu0 0.0
      %3906 = vmatprep.subr.mxu0 0.0
      %3907 = vmatpush1.xpose.msra.mxu0 0.0
      %3908 = vmatprep.subr.mxu0 0.0
      %3909 = vmatpush1.xpose.msra.mxu0 0.0
      %3910 = vmatprep.subr.mxu0 0.0
      %3911 = vmatpush1.xpose.msra.mxu0 0.0
      %3912 = vmatprep.subr.mxu0 0.0
      %3913 = vmatpush1.xpose.msra.mxu0 0.0
      %3914 = vmatprep.subr.mxu0 0.0
      %3915 = vmatpush1.xpose.msra.mxu0 0.0
      %3916 = vmatprep.subr.mxu0 0.0
      %3917 = vmatpush1.xpose.msra.mxu0 0.0
      %3918 = vmatprep.subr.mxu0 0.0
      %3919 = vmatpush1.xpose.msra.mxu0 0.0
      %3920 = vmatprep.subr.mxu0 0.0
      %3921 = vmatpush1.xpose.msra.mxu0 0.0
      %3922 = vmatprep.mubr.f32.mxu0 0.0
      %3923 = vmatmul.mubr.f32.gmra.mrb[0].mxu0 %v3853
      %v3924 = vpop.f32.mrb[0].mxu0
      %v3925 = vadd.f32 0.0, %v3924
      %v3926 = vpop.f32.mrb[0].mxu0
      %3927 = vdwg.mxu0
      %v3928 = vsel %vm847, %v3697, -inf
      %3929 = vmax.xlane.f32.xlu0 %v3928
      %v3930 = vpop.xlane.xlu0 %3929
      %v3931 = vsel %vm847, %v3773, -inf
      %3932 = vmax.xlane.f32.xlu0 %v3931
      %v3933 = vpop.xlane.xlu0 %3932
      %v3934 = vsel %vm847, %v3849, -inf
      %3935 = vmax.xlane.f32.xlu0 %v3934
      %v3936 = vpop.xlane.xlu0 %3935
      %v3937 = vsel %vm847, %v3925, -inf
      %3938 = vmax.xlane.f32.xlu0 %v3937
      %v3939 = vpop.xlane.xlu0 %3938
      %v3940 = vsub.f32 %v3697, %v3930
      %v3941 = vsub.f32 %v3773, %v3933
      %v3942 = vsub.f32 %v3849, %v3936
      %v3943 = vsub.f32 %v3925, %v3939
      %v3944 = vmul.f32 %v3940, 1.442695
      %v3945 = vpow.pop %v3944
      %v3946 = vmul.f32 %v3941, 1.442695
      %v3947 = vpow.pop %v3946
      %v3948 = vmul.f32 %v3942, 1.442695
      %v3949 = vpow.pop %v3948
      %v3950 = vmul.f32 %v3943, 1.442695
      %v3951 = vpow.pop %v3950
      %v3952 = vsel %vm847, %v3945, 0.0
      %3953 = vadd.xlane.f32.xlu0 %v3952
      %v3954 = vpop.xlane.xlu0 %3953
      %v3955 = vsel %vm847, %v3947, 0.0
      %3956 = vadd.xlane.f32.xlu0 %v3955
      %v3957 = vpop.xlane.xlu0 %3956
      %v3958 = vsel %vm847, %v3949, 0.0
      %3959 = vadd.xlane.f32.xlu0 %v3958
      %v3960 = vpop.xlane.xlu0 %3959
      %v3961 = vsel %vm847, %v3951, 0.0
      %3962 = vadd.xlane.f32.xlu0 %v3961
      %v3963 = vpop.xlane.xlu0 %3962
      %v3964 = vrcp.pop %v3954
      %v3965 = vrcp.pop %v3957
      %v3966 = vrcp.pop %v3960
      %v3967 = vrcp.pop %v3963
      %v3968 = vmul.f32 %v3945, %v3964
      %v3969 = vmul.f32 %v3947, %v3965
      %v3970 = vmul.f32 %v3949, %v3966
      %v3971 = vmul.f32 %v3951, %v3967
      %v3973 = vsel %vm847, %v3968, 0
      %3975 = vmatprep.subr.mxu0 0.0
      %3976 = vmatpush1.msra.mxu0 %v3610
      %3977 = vmatprep.subr.mxu0 0.0
      %3978 = vmatpush1.msra.mxu0 0.0
      %3979 = vmatprep.subr.mxu0 0.0
      %3980 = vmatpush1.msra.mxu0 0.0
      %3981 = vmatprep.subr.mxu0 0.0
      %3982 = vmatpush1.msra.mxu0 0.0
      %3983 = vmatprep.subr.mxu0 0.0
      %3984 = vmatpush1.msra.mxu0 0.0
      %3985 = vmatprep.subr.mxu0 0.0
      %3986 = vmatpush1.msra.mxu0 0.0
      %3987 = vmatprep.subr.mxu0 0.0
      %3988 = vmatpush1.msra.mxu0 0.0
      %3989 = vmatprep.subr.mxu0 0.0
      %3990 = vmatpush1.msra.mxu0 0.0
      %3991 = vmatprep.subr.mxu0 0.0
      %3992 = vmatpush1.msra.mxu0 0.0
      %3993 = vmatprep.subr.mxu0 0.0
      %3994 = vmatpush1.msra.mxu0 0.0
      %3995 = vmatprep.subr.mxu0 0.0
      %3996 = vmatpush1.msra.mxu0 0.0
      %3997 = vmatprep.subr.mxu0 0.0
      %3998 = vmatpush1.msra.mxu0 0.0
      %3999 = vmatprep.subr.mxu0 0.0
      %4000 = vmatpush1.msra.mxu0 0.0
      %4001 = vmatprep.subr.mxu0 0.0
      %4002 = vmatpush1.msra.mxu0 0.0
      %4003 = vmatprep.subr.mxu0 0.0
      %4004 = vmatpush1.msra.mxu0 0.0
      %4005 = vmatprep.subr.mxu0 0.0
      %4006 = vmatpush1.msra.mxu0 0.0
      %4007 = vmatprep.subr.mxu0 0.0
      %4008 = vmatpush1.msra.mxu0 0.0
      %4009 = vmatprep.subr.mxu0 0.0
      %4010 = vmatpush1.msra.mxu0 0.0
      %4011 = vmatprep.subr.mxu0 0.0
      %4012 = vmatpush1.msra.mxu0 0.0
      %4013 = vmatprep.subr.mxu0 0.0
      %4014 = vmatpush1.msra.mxu0 0.0
      %4015 = vmatprep.subr.mxu0 0.0
      %4016 = vmatpush1.msra.mxu0 0.0
      %4017 = vmatprep.subr.mxu0 0.0
      %4018 = vmatpush1.msra.mxu0 0.0
      %4019 = vmatprep.subr.mxu0 0.0
      %4020 = vmatpush1.msra.mxu0 0.0
      %4021 = vmatprep.subr.mxu0 0.0
      %4022 = vmatpush1.msra.mxu0 0.0
      %4023 = vmatprep.subr.mxu0 0.0
      %4024 = vmatpush1.msra.mxu0 0.0
      %4025 = vmatprep.subr.mxu0 0.0
      %4026 = vmatpush1.msra.mxu0 0.0
      %4027 = vmatprep.subr.mxu0 0.0
      %4028 = vmatpush1.msra.mxu0 0.0
      %4029 = vmatprep.subr.mxu0 0.0
      %4030 = vmatpush1.msra.mxu0 0.0
      %4031 = vmatprep.subr.mxu0 0.0
      %4032 = vmatpush1.msra.mxu0 0.0
      %4033 = vmatprep.subr.mxu0 0.0
      %4034 = vmatpush1.msra.mxu0 0.0
      %4035 = vmatprep.subr.mxu0 0.0
      %4036 = vmatpush1.msra.mxu0 0.0
      %4037 = vmatprep.subr.mxu0 0.0
      %4038 = vmatpush1.msra.mxu0 0.0
      %4039 = vmatprep.mubr.f32.mxu0 0.0
      %4040 = vmatmul.mubr.f32.gmra.mrb[0].mxu0 %v3973
      %v4041 = vpop.f32.mrb[0].mxu0
      %v4042 = vadd.f32 0.0, %v4041
      %v4043 = vpop.f32.mrb[0].mxu0
      %4044 = vdwg.mxu0
      %v4046 = vsel %vm847, %v3969, 0
      %4048 = vmatprep.subr.mxu0 0.0
      %4049 = vmatpush1.msra.mxu0 %v3613
      %4050 = vmatprep.subr.mxu0 0.0
      %4051 = vmatpush1.msra.mxu0 0.0
      %4052 = vmatprep.subr.mxu0 0.0
      %4053 = vmatpush1.msra.mxu0 0.0
      %4054 = vmatprep.subr.mxu0 0.0
      %4055 = vmatpush1.msra.mxu0 0.0
      %4056 = vmatprep.subr.mxu0 0.0
      %4057 = vmatpush1.msra.mxu0 0.0
      %4058 = vmatprep.subr.mxu0 0.0
      %4059 = vmatpush1.msra.mxu0 0.0
      %4060 = vmatprep.subr.mxu0 0.0
      %4061 = vmatpush1.msra.mxu0 0.0
      %4062 = vmatprep.subr.mxu0 0.0
      %4063 = vmatpush1.msra.mxu0 0.0
      %4064 = vmatprep.subr.mxu0 0.0
      %4065 = vmatpush1.msra.mxu0 0.0
      %4066 = vmatprep.subr.mxu0 0.0
      %4067 = vmatpush1.msra.mxu0 0.0
      %4068 = vmatprep.subr.mxu0 0.0
      %4069 = vmatpush1.msra.mxu0 0.0
      %4070 = vmatprep.subr.mxu0 0.0
      %4071 = vmatpush1.msra.mxu0 0.0
      %4072 = vmatprep.subr.mxu0 0.0
      %4073 = vmatpush1.msra.mxu0 0.0
      %4074 = vmatprep.subr.mxu0 0.0
      %4075 = vmatpush1.msra.mxu0 0.0
      %4076 = vmatprep.subr.mxu0 0.0
      %4077 = vmatpush1.msra.mxu0 0.0
      %4078 = vmatprep.subr.mxu0 0.0
      %4079 = vmatpush1.msra.mxu0 0.0
      %4080 = vmatprep.subr.mxu0 0.0
      %4081 = vmatpush1.msra.mxu0 0.0
      %4082 = vmatprep.subr.mxu0 0.0
      %4083 = vmatpush1.msra.mxu0 0.0
      %4084 = vmatprep.subr.mxu0 0.0
      %4085 = vmatpush1.msra.mxu0 0.0
      %4086 = vmatprep.subr.mxu0 0.0
      %4087 = vmatpush1.msra.mxu0 0.0
      %4088 = vmatprep.subr.mxu0 0.0
      %4089 = vmatpush1.msra.mxu0 0.0
      %4090 = vmatprep.subr.mxu0 0.0
      %4091 = vmatpush1.msra.mxu0 0.0
      %4092 = vmatprep.subr.mxu0 0.0
      %4093 = vmatpush1.msra.mxu0 0.0
      %4094 = vmatprep.subr.mxu0 0.0
      %4095 = vmatpush1.msra.mxu0 0.0
      %4096 = vmatprep.subr.mxu0 0.0
      %4097 = vmatpush1.msra.mxu0 0.0
      %4098 = vmatprep.subr.mxu0 0.0
      %4099 = vmatpush1.msra.mxu0 0.0
      %4100 = vmatprep.subr.mxu0 0.0
      %4101 = vmatpush1.msra.mxu0 0.0
      %4102 = vmatprep.subr.mxu0 0.0
      %4103 = vmatpush1.msra.mxu0 0.0
      %4104 = vmatprep.subr.mxu0 0.0
      %4105 = vmatpush1.msra.mxu0 0.0
      %4106 = vmatprep.subr.mxu0 0.0
      %4107 = vmatpush1.msra.mxu0 0.0
      %4108 = vmatprep.subr.mxu0 0.0
      %4109 = vmatpush1.msra.mxu0 0.0
      %4110 = vmatprep.subr.mxu0 0.0
      %4111 = vmatpush1.msra.mxu0 0.0
      %4112 = vmatprep.mubr.f32.mxu0 0.0
      %4113 = vmatmul.mubr.f32.gmra.mrb[0].mxu0 %v4046
      %v4114 = vpop.f32.mrb[0].mxu0
      %v4115 = vadd.f32 0.0, %v4114
      %v4116 = vpop.f32.mrb[0].mxu0
      %4117 = vdwg.mxu0
      %v4119 = vsel %vm847, %v3970, 0
      %4121 = vmatprep.subr.mxu0 0.0
      %4122 = vmatpush1.msra.mxu0 %v3618
      %4123 = vmatprep.subr.mxu0 0.0
      %4124 = vmatpush1.msra.mxu0 0.0
      %4125 = vmatprep.subr.mxu0 0.0
      %4126 = vmatpush1.msra.mxu0 0.0
      %4127 = vmatprep.subr.mxu0 0.0
      %4128 = vmatpush1.msra.mxu0 0.0
      %4129 = vmatprep.subr.mxu0 0.0
      %4130 = vmatpush1.msra.mxu0 0.0
      %4131 = vmatprep.subr.mxu0 0.0
      %4132 = vmatpush1.msra.mxu0 0.0
      %4133 = vmatprep.subr.mxu0 0.0
      %4134 = vmatpush1.msra.mxu0 0.0
      %4135 = vmatprep.subr.mxu0 0.0
      %4136 = vmatpush1.msra.mxu0 0.0
      %4137 = vmatprep.subr.mxu0 0.0
      %4138 = vmatpush1.msra.mxu0 0.0
      %4139 = vmatprep.subr.mxu0 0.0
      %4140 = vmatpush1.msra.mxu0 0.0
      %4141 = vmatprep.subr.mxu0 0.0
      %4142 = vmatpush1.msra.mxu0 0.0
      %4143 = vmatprep.subr.mxu0 0.0
      %4144 = vmatpush1.msra.mxu0 0.0
      %4145 = vmatprep.subr.mxu0 0.0
      %4146 = vmatpush1.msra.mxu0 0.0
      %4147 = vmatprep.subr.mxu0 0.0
      %4148 = vmatpush1.msra.mxu0 0.0
      %4149 = vmatprep.subr.mxu0 0.0
      %4150 = vmatpush1.msra.mxu0 0.0
      %4151 = vmatprep.subr.mxu0 0.0
      %4152 = vmatpush1.msra.mxu0 0.0
      %4153 = vmatprep.subr.mxu0 0.0
      %4154 = vmatpush1.msra.mxu0 0.0
      %4155 = vmatprep.subr.mxu0 0.0
      %4156 = vmatpush1.msra.mxu0 0.0
      %4157 = vmatprep.subr.mxu0 0.0
      %4158 = vmatpush1.msra.mxu0 0.0
      %4159 = vmatprep.subr.mxu0 0.0
      %4160 = vmatpush1.msra.mxu0 0.0
      %4161 = vmatprep.subr.mxu0 0.0
      %4162 = vmatpush1.msra.mxu0 0.0
      %4163 = vmatprep.subr.mxu0 0.0
      %4164 = vmatpush1.msra.mxu0 0.0
      %4165 = vmatprep.subr.mxu0 0.0
      %4166 = vmatpush1.msra.mxu0 0.0
      %4167 = vmatprep.subr.mxu0 0.0
      %4168 = vmatpush1.msra.mxu0 0.0
      %4169 = vmatprep.subr.mxu0 0.0
      %4170 = vmatpush1.msra.mxu0 0.0
      %4171 = vmatprep.subr.mxu0 0.0
      %4172 = vmatpush1.msra.mxu0 0.0
      %4173 = vmatprep.subr.mxu0 0.0
      %4174 = vmatpush1.msra.mxu0 0.0
      %4175 = vmatprep.subr.mxu0 0.0
      %4176 = vmatpush1.msra.mxu0 0.0
      %4177 = vmatprep.subr.mxu0 0.0
      %4178 = vmatpush1.msra.mxu0 0.0
      %4179 = vmatprep.subr.mxu0 0.0
      %4180 = vmatpush1.msra.mxu0 0.0
      %4181 = vmatprep.subr.mxu0 0.0
      %4182 = vmatpush1.msra.mxu0 0.0
      %4183 = vmatprep.subr.mxu0 0.0
      %4184 = vmatpush1.msra.mxu0 0.0
      %4185 = vmatprep.mubr.f32.mxu0 0.0
      %4186 = vmatmul.mubr.f32.gmra.mrb[0].mxu0 %v4119
      %v4187 = vpop.f32.mrb[0].mxu0
      %v4188 = vadd.f32 0.0, %v4187
      %v4189 = vpop.f32.mrb[0].mxu0
      %4190 = vdwg.mxu0
      %v4192 = vsel %vm847, %v3971, 0
      %4194 = vmatprep.subr.mxu0 0.0
      %4195 = vmatpush1.msra.mxu0 %v3621
      %4196 = vmatprep.subr.mxu0 0.0
      %4197 = vmatpush1.msra.mxu0 0.0
      %4198 = vmatprep.subr.mxu0 0.0
      %4199 = vmatpush1.msra.mxu0 0.0
      %4200 = vmatprep.subr.mxu0 0.0
      %4201 = vmatpush1.msra.mxu0 0.0
      %4202 = vmatprep.subr.mxu0 0.0
      %4203 = vmatpush1.msra.mxu0 0.0
      %4204 = vmatprep.subr.mxu0 0.0
      %4205 = vmatpush1.msra.mxu0 0.0
      %4206 = vmatprep.subr.mxu0 0.0
      %4207 = vmatpush1.msra.mxu0 0.0
      %4208 = vmatprep.subr.mxu0 0.0
      %4209 = vmatpush1.msra.mxu0 0.0
      %4210 = vmatprep.subr.mxu0 0.0
      %4211 = vmatpush1.msra.mxu0 0.0
      %4212 = vmatprep.subr.mxu0 0.0
      %4213 = vmatpush1.msra.mxu0 0.0
      %4214 = vmatprep.subr.mxu0 0.0
      %4215 = vmatpush1.msra.mxu0 0.0
      %4216 = vmatprep.subr.mxu0 0.0
      %4217 = vmatpush1.msra.mxu0 0.0
      %4218 = vmatprep.subr.mxu0 0.0
      %4219 = vmatpush1.msra.mxu0 0.0
      %4220 = vmatprep.subr.mxu0 0.0
      %4221 = vmatpush1.msra.mxu0 0.0
      %4222 = vmatprep.subr.mxu0 0.0
      %4223 = vmatpush1.msra.mxu0 0.0
      %4224 = vmatprep.subr.mxu0 0.0
      %4225 = vmatpush1.msra.mxu0 0.0
      %4226 = vmatprep.subr.mxu0 0.0
      %4227 = vmatpush1.msra.mxu0 0.0
      %4228 = vmatprep.subr.mxu0 0.0
      %4229 = vmatpush1.msra.mxu0 0.0
      %4230 = vmatprep.subr.mxu0 0.0
      %4231 = vmatpush1.msra.mxu0 0.0
      %4232 = vmatprep.subr.mxu0 0.0
      %4233 = vmatpush1.msra.mxu0 0.0
      %4234 = vmatprep.subr.mxu0 0.0
      %4235 = vmatpush1.msra.mxu0 0.0
      %4236 = vmatprep.subr.mxu0 0.0
      %4237 = vmatpush1.msra.mxu0 0.0
      %4238 = vmatprep.subr.mxu0 0.0
      %4239 = vmatpush1.msra.mxu0 0.0
      %4240 = vmatprep.subr.mxu0 0.0
      %4241 = vmatpush1.msra.mxu0 0.0
      %4242 = vmatprep.subr.mxu0 0.0
      %4243 = vmatpush1.msra.mxu0 0.0
      %4244 = vmatprep.subr.mxu0 0.0
      %4245 = vmatpush1.msra.mxu0 0.0
      %4246 = vmatprep.subr.mxu0 0.0
      %4247 = vmatpush1.msra.mxu0 0.0
      %4248 = vmatprep.subr.mxu0 0.0
      %4249 = vmatpush1.msra.mxu0 0.0
      %4250 = vmatprep.subr.mxu0 0.0
      %4251 = vmatpush1.msra.mxu0 0.0
      %4252 = vmatprep.subr.mxu0 0.0
      %4253 = vmatpush1.msra.mxu0 0.0
      %4254 = vmatprep.subr.mxu0 0.0
      %4255 = vmatpush1.msra.mxu0 0.0
      %4256 = vmatprep.subr.mxu0 0.0
      %4257 = vmatpush1.msra.mxu0 0.0
      %4258 = vmatprep.mubr.f32.mxu0 0.0
      %4259 = vmatmul.mubr.f32.gmra.mrb[0].mxu0 %v4192
      %v4260 = vpop.f32.mrb[0].mxu0
      %v4261 = vadd.f32 0.0, %v4260
      %v4262 = vpop.f32.mrb[0].mxu0
      %4263 = vdwg.mxu0
      %v4264 = vpack.c.bf16 %v4115, %v4042
      %v4265 = vpack.c.bf16 %v4261, %v4188
      %s4266 = scalar_lea.vmem %s8, 12
      %v4267 = vld [vmem:[%s4266] sm:$0xf]
      %v4269 = vsel %vm847, %v4264, 0
      %v4272 = vsel %vm847, %v4265, 0
      %v4275 = vsel %vm2363, %v4267, 0
      %4277 = vmatprep.subr.bf16.mxu0 0
      %4278 = vmatpush1.bf16.msra.mxu0 %v4275
      %4279 = vmatprep.subr.bf16.mxu0 0
      %4280 = vmatpush1.bf16.msra.mxu0 0
      %4281 = vmatprep.subr.bf16.mxu0 0
      %4282 = vmatpush1.bf16.msra.mxu0 0
      %4283 = vmatprep.subr.bf16.mxu0 0
      %4284 = vmatpush1.bf16.msra.mxu0 0
      %4285 = vmatprep.subr.bf16.mxu0 0
      %4286 = vmatpush1.bf16.msra.mxu0 0
      %4287 = vmatprep.subr.bf16.mxu0 0
      %4288 = vmatpush1.bf16.msra.mxu0 0
      %4289 = vmatprep.subr.bf16.mxu0 0
      %4290 = vmatpush1.bf16.msra.mxu0 0
      %4291 = vmatprep.subr.bf16.mxu0 0
      %4292 = vmatpush1.bf16.msra.mxu0 0
      %4293 = vmatprep.subr.bf16.mxu0 0
      %4294 = vmatpush1.bf16.msra.mxu0 0
      %4295 = vmatprep.subr.bf16.mxu0 0
      %4296 = vmatpush1.bf16.msra.mxu0 0
      %4297 = vmatprep.subr.bf16.mxu0 0
      %4298 = vmatpush1.bf16.msra.mxu0 0
      %4299 = vmatprep.subr.bf16.mxu0 0
      %4300 = vmatpush1.bf16.msra.mxu0 0
      %4301 = vmatprep.subr.bf16.mxu0 0
      %4302 = vmatpush1.bf16.msra.mxu0 0
      %4303 = vmatprep.subr.bf16.mxu0 0
      %4304 = vmatpush1.bf16.msra.mxu0 0
      %4305 = vmatprep.subr.bf16.mxu0 0
      %4306 = vmatpush1.bf16.msra.mxu0 0
      %4307 = vmatprep.subr.bf16.mxu0 0
      %4308 = vmatpush1.bf16.msra.mxu0 0
      %4309 = vmatprep.mubr.bf16.mxu0 0
      %4310 = vmatmul.mubr.bf16.gmra.mrb[0].mxu0 %v4269
      %v4311 = vpop.f32.mrb[0].mxu0
      %v4312 = vadd.f32 0.0, %v4311
      %v4313 = vpop.f32.mrb[0].mxu0
      %v4314 = vpop.f32.mrb[0].mxu0
      %v4315 = vadd.f32 0.0, %v4314
      %v4316 = vpop.f32.mrb[0].mxu0
      %4317 = vmatprep.mubr.bf16.mxu0 0
      %4318 = vmatmul.mubr.bf16.gmra.mrb[0].mxu0 %v4272
      %v4319 = vpop.f32.mrb[0].mxu0
      %v4320 = vadd.f32 0.0, %v4319
      %v4321 = vpop.f32.mrb[0].mxu0
      %v4322 = vpop.f32.mrb[0].mxu0
      %v4323 = vadd.f32 0.0, %v4322
      %v4324 = vpop.f32.mrb[0].mxu0
      %4325 = vdwg.mxu0
      %v4326 = vadd.f32 %v3398, %v4312
      %v4327 = vadd.f32 %v3399, %v4315
      %v4328 = vadd.f32 %v3400, %v4320
      %v4329 = vadd.f32 %v3401, %v4323
      %v4330 = vld [vmem:[%s9] sm:$0x1]
      %v4332 = vlaneseq
      %v4333 = vshrl.u32 %v4332, 7
      %v4334 = vsub.s32 0, %v4333
      %v4335 = vrot.slane %v4330, %v4334
      %v4337 = vadd.f32 %v4326, %v4335
      %v4338 = vadd.f32 %v4327, %v4335
      %v4339 = vadd.f32 %v4328, %v4335
      %v4340 = vadd.f32 %v4329, %v4335
      %v4341 = vadd.f32 %v602, %v4337
      %v4342 = vadd.f32 %v603, %v4338
      %v4343 = vadd.f32 %v604, %v4339
      %v4344 = vadd.f32 %v605, %v4340
      %v4345 = vld [vmem:[%s10] sm:$0x1]
      %v4346 = vld [vmem:[%s11] sm:$0x1]
      %v4347 = vsel %vm641, %v4341, 0.0
      %4348 = vadd.xlane.f32.xlu0 %v4347
      %v4349 = vpop.xlane.xlu0 %4348
      %v4350 = vsel %vm641, %v4342, 0.0
      %4351 = vadd.xlane.f32.xlu0 %v4350
      %v4352 = vpop.xlane.xlu0 %4351
      %v4353 = vsel %vm641, %v4343, 0.0
      %4354 = vadd.xlane.f32.xlu0 %v4353
      %v4355 = vpop.xlane.xlu0 %4354
      %v4356 = vsel %vm641, %v4344, 0.0
      %4357 = vadd.xlane.f32.xlu0 %v4356
      %v4358 = vpop.xlane.xlu0 %4357
      %v4359 = vrcp.pop 32.0
      %v4360 = vmul.f32 %v4349, %v4359
      %v4361 = vmul.f32 %v4352, %v4359
      %v4362 = vmul.f32 %v4355, %v4359
      %v4363 = vmul.f32 %v4358, %v4359
      %v4364 = vsub.f32 %v4341, %v4360
      %v4365 = vsub.f32 %v4342, %v4361
      %v4366 = vsub.f32 %v4343, %v4362
      %v4367 = vsub.f32 %v4344, %v4363
      %v4368 = vmul.f32 %v4364, %v4364
      %v4369 = vmul.f32 %v4365, %v4365
      %v4370 = vmul.f32 %v4366, %v4366
      %v4371 = vmul.f32 %v4367, %v4367
      %v4372 = vsel %vm641, %v4368, 0.0
      %4373 = vadd.xlane.f32.xlu0 %v4372
      %v4374 = vpop.xlane.xlu0 %4373
      %v4375 = vsel %vm641, %v4369, 0.0
      %4376 = vadd.xlane.f32.xlu0 %v4375
      %v4377 = vpop.xlane.xlu0 %4376
      %v4378 = vsel %vm641, %v4370, 0.0
      %4379 = vadd.xlane.f32.xlu0 %v4378
      %v4380 = vpop.xlane.xlu0 %4379
      %v4381 = vsel %vm641, %v4371, 0.0
      %4382 = vadd.xlane.f32.xlu0 %v4381
      %v4383 = vpop.xlane.xlu0 %4382
      %v4384 = vmul.f32 %v4374, %v4359
      %v4385 = vmul.f32 %v4377, %v4359
      %v4386 = vmul.f32 %v4380, %v4359
      %v4387 = vmul.f32 %v4383, %v4359
      %v4388 = vadd.f32 %v4384, 1e-05
      %v4389 = vadd.f32 %v4385, 1e-05
      %v4390 = vadd.f32 %v4386, 1e-05
      %v4391 = vadd.f32 %v4387, 1e-05
      %v4392 = vrsqrt.pop %v4388
      %v4393 = vrsqrt.pop %v4389
      %v4394 = vrsqrt.pop %v4390
      %v4395 = vrsqrt.pop %v4391
      %v4396 = vmul.f32 %v4364, %v4392
      %v4397 = vmul.f32 %v4365, %v4393
      %v4398 = vmul.f32 %v4366, %v4394
      %v4399 = vmul.f32 %v4367, %v4395
      %v4401 = vlaneseq
      %v4402 = vshrl.u32 %v4401, 7
      %v4403 = vsub.s32 0, %v4402
      %v4404 = vrot.slane %v4345, %v4403
      %v4406 = vmul.f32 %v4396, %v4404
      %v4407 = vmul.f32 %v4397, %v4404
      %v4408 = vmul.f32 %v4398, %v4404
      %v4409 = vmul.f32 %v4399, %v4404
      %v4411 = vlaneseq
      %v4412 = vshrl.u32 %v4411, 7
      %v4413 = vsub.s32 0, %v4412
      %v4414 = vrot.slane %v4346, %v4413
      %v4416 = vadd.f32 %v4406, %v4414
      %v4417 = vadd.f32 %v4407, %v4414
      %v4418 = vadd.f32 %v4408, %v4414
      %v4419 = vadd.f32 %v4409, %v4414
      %v4420 = vpack.c.bf16 %v4417, %v4416
      %v4421 = vpack.c.bf16 %v4419, %v4418
      %v4422 = vld [vmem:[%s12] sm:$0xf]
      %v4423 = vld [vmem:[%s12 + $0x4] sm:$0xf]
      %v4424 = vld [vmem:[%s12 + $0x8] sm:$0xf]
      %v4425 = vld [vmem:[%s12 + $0xc] sm:$0xf]
      %v4426 = vld [vmem:[%s13] sm:$0x1]
      %v4428 = vlaneseq
      %v4429 = vshrl.u32 %v4428, 7
      %v4430 = vsub.s32 0, %v4429
      %v4431 = vrot.slane %v4426, %v4430
      %v4437 = vunpack.c.l.b16 %v4422
      %v4438 = vunpack.c.l.b16 %v4423
      %v4439 = vunpack.c.l.b16 %v4424
      %v4440 = vunpack.c.l.b16 %v4425
      %v4441 = vpack.c.b16 %v4438, %v4437
      %v4442 = vpack.c.b16 %v4440, %v4439
      %v4446 = vsel %vm641, %v4420, 0
      %v4449 = vsel %vm641, %v4421, 0
      %4451 = vmatprep.subr.bf16.mxu0 0
      %4452 = vmatpush1.bf16.msra.mxu0 %v4441
      %4453 = vmatprep.subr.bf16.mxu0 0
      %4454 = vmatpush1.bf16.msra.mxu0 %v4442
      %4455 = vmatprep.subr.bf16.mxu0 0
      %4456 = vmatpush1.bf16.msra.mxu0 0
      %4457 = vmatprep.subr.bf16.mxu0 0
      %4458 = vmatpush1.bf16.msra.mxu0 0
      %4459 = vmatprep.subr.bf16.mxu0 0
      %4460 = vmatpush1.bf16.msra.mxu0 0
      %4461 = vmatprep.subr.bf16.mxu0 0
      %4462 = vmatpush1.bf16.msra.mxu0 0
      %4463 = vmatprep.subr.bf16.mxu0 0
      %4464 = vmatpush1.bf16.msra.mxu0 0
      %4465 = vmatprep.subr.bf16.mxu0 0
      %4466 = vmatpush1.bf16.msra.mxu0 0
      %4467 = vmatprep.subr.bf16.mxu0 0
      %4468 = vmatpush1.bf16.msra.mxu0 0
      %4469 = vmatprep.subr.bf16.mxu0 0
      %4470 = vmatpush1.bf16.msra.mxu0 0
      %4471 = vmatprep.subr.bf16.mxu0 0
      %4472 = vmatpush1.bf16.msra.mxu0 0
      %4473 = vmatprep.subr.bf16.mxu0 0
      %4474 = vmatpush1.bf16.msra.mxu0 0
      %4475 = vmatprep.subr.bf16.mxu0 0
      %4476 = vmatpush1.bf16.msra.mxu0 0
      %4477 = vmatprep.subr.bf16.mxu0 0
      %4478 = vmatpush1.bf16.msra.mxu0 0
      %4479 = vmatprep.subr.bf16.mxu0 0
      %4480 = vmatpush1.bf16.msra.mxu0 0
      %4481 = vmatprep.subr.bf16.mxu0 0
      %4482 = vmatpush1.bf16.msra.mxu0 0
      %4483 = vmatprep.mubr.bf16.mxu0 0
      %4484 = vmatmul.mubr.bf16.gmra.mrb[0].mxu0 %v4446
      %v4485 = vpop.f32.mrb[0].mxu0
      %v4486 = vadd.f32 %v4431, %v4485
      %v4487 = vpop.f32.mrb[0].mxu0
      %v4488 = vpop.f32.mrb[0].mxu0
      %v4489 = vadd.f32 %v4431, %v4488
      %v4490 = vpop.f32.mrb[0].mxu0
      %4491 = vmatprep.mubr.bf16.mxu0 0
      %4492 = vmatmul.mubr.bf16.gmra.mrb[0].mxu0 %v4449
      %v4493 = vpop.f32.mrb[0].mxu0
      %v4494 = vadd.f32 %v4431, %v4493
      %v4495 = vpop.f32.mrb[0].mxu0
      %v4496 = vpop.f32.mrb[0].mxu0
      %v4497 = vadd.f32 %v4431, %v4496
      %v4498 = vpop.f32.mrb[0].mxu0
      %4499 = vdwg.mxu0
      %v4500 = vmax.f32 %v4486, 0.0
      %v4501 = vmax.f32 %v4489, 0.0
      %v4502 = vmax.f32 %v4494, 0.0
      %v4503 = vmax.f32 %v4497, 0.0
      %v4504 = vpack.c.bf16 %v4501, %v4500
      %v4505 = vpack.c.bf16 %v4503, %v4502
      %v4506 = vld [vmem:[%s14] sm:$0xf]
      %v4507 = vld [vmem:[%s14 + $0x4] sm:$0xf]
      %v4508 = vld [vmem:[%s14 + $0x8] sm:$0xf]
      %v4509 = vld [vmem:[%s14 + $0xc] sm:$0xf]
      %v4510 = vld [vmem:[%s14 + $0x10] sm:$0xf]
      %v4511 = vld [vmem:[%s14 + $0x14] sm:$0xf]
      %v4512 = vld [vmem:[%s14 + $0x18] sm:$0xf]
      %v4513 = vld [vmem:[%s14 + $0x1c] sm:$0xf]
      %v4514 = vld [vmem:[%s15] sm:$0x1]
      %v4516 = vlaneseq
      %v4517 = vshrl.u32 %v4516, 7
      %v4518 = vsub.s32 0, %v4517
      %v4519 = vrot.slane %v4514, %v4518
      %v4529 = vunpack.c.l.b16 %v4506
      %v4530 = vunpack.c.l.b16 %v4507
      %v4531 = vunpack.c.l.b16 %v4508
      %v4532 = vunpack.c.l.b16 %v4509
      %v4533 = vunpack.c.l.b16 %v4510
      %v4534 = vunpack.c.l.b16 %v4511
      %v4535 = vunpack.c.l.b16 %v4512
      %v4536 = vunpack.c.l.b16 %v4513
      %v4537 = vpack.c.b16 %v4530, %v4529
      %v4538 = vpack.c.b16 %v4532, %v4531
      %v4539 = vpack.c.b16 %v4534, %v4533
      %v4540 = vpack.c.b16 %v4536, %v4535
      %vm4545 = vcmask 523264
      %v4547 = vsel %vm4545, %v4504, 0
      %v4550 = vsel %vm4545, %v4505, 0
      %4552 = vmatprep.subr.bf16.mxu0 0
      %4553 = vmatpush1.bf16.msra.mxu0 %v4537
      %4554 = vmatprep.subr.bf16.mxu0 0
      %4555 = vmatpush1.bf16.msra.mxu0 %v4538
      %4556 = vmatprep.subr.bf16.mxu0 0
      %4557 = vmatpush1.bf16.msra.mxu0 %v4539
      %4558 = vmatprep.subr.bf16.mxu0 0
      %4559 = vmatpush1.bf16.msra.mxu0 %v4540
      %4560 = vmatprep.subr.bf16.mxu0 0
      %4561 = vmatpush1.bf16.msra.mxu0 0
      %4562 = vmatprep.subr.bf16.mxu0 0
      %4563 = vmatpush1.bf16.msra.mxu0 0
      %4564 = vmatprep.subr.bf16.mxu0 0
      %4565 = vmatpush1.bf16.msra.mxu0 0
      %4566 = vmatprep.subr.bf16.mxu0 0
      %4567 = vmatpush1.bf16.msra.mxu0 0
      %4568 = vmatprep.subr.bf16.mxu0 0
      %4569 = vmatpush1.bf16.msra.mxu0 0
      %4570 = vmatprep.subr.bf16.mxu0 0
      %4571 = vmatpush1.bf16.msra.mxu0 0
      %4572 = vmatprep.subr.bf16.mxu0 0
      %4573 = vmatpush1.bf16.msra.mxu0 0
      %4574 = vmatprep.subr.bf16.mxu0 0
      %4575 = vmatpush1.bf16.msra.mxu0 0
      %4576 = vmatprep.subr.bf16.mxu0 0
      %4577 = vmatpush1.bf16.msra.mxu0 0
      %4578 = vmatprep.subr.bf16.mxu0 0
      %4579 = vmatpush1.bf16.msra.mxu0 0
      %4580 = vmatprep.subr.bf16.mxu0 0
      %4581 = vmatpush1.bf16.msra.mxu0 0
      %4582 = vmatprep.subr.bf16.mxu0 0
      %4583 = vmatpush1.bf16.msra.mxu0 0
      %4584 = vmatprep.mubr.bf16.mxu0 0
      %4585 = vmatmul.mubr.bf16.gmra.mrb[0].mxu0 %v4547
      %v4586 = vpop.f32.mrb[0].mxu0
      %v4587 = vadd.f32 %v4519, %v4586
      %v4588 = vpop.f32.mrb[0].mxu0
      %v4589 = vpop.f32.mrb[0].mxu0
      %v4590 = vadd.f32 %v4519, %v4589
      %v4591 = vpop.f32.mrb[0].mxu0
      %4592 = vmatprep.mubr.bf16.mxu0 0
      %4593 = vmatmul.mubr.bf16.gmra.mrb[0].mxu0 %v4550
      %v4594 = vpop.f32.mrb[0].mxu0
      %v4595 = vadd.f32 %v4519, %v4594
      %v4596 = vpop.f32.mrb[0].mxu0
      %v4597 = vpop.f32.mrb[0].mxu0
      %v4598 = vadd.f32 %v4519, %v4597
      %v4599 = vpop.f32.mrb[0].mxu0
      %4600 = vdwg.mxu0
      %v4601 = vadd.f32 %v4416, %v4587
      %v4602 = vadd.f32 %v4417, %v4590
      %v4603 = vadd.f32 %v4418, %v4595
      %v4604 = vadd.f32 %v4419, %v4598
      %v4605 = vld [vmem:[%s16] sm:$0x1]
      %v4606 = vld [vmem:[%s17] sm:$0x1]
      %v4607 = vsel %vm641, %v4601, 0.0
      %4608 = vadd.xlane.f32.xlu0 %v4607
      %v4609 = vpop.xlane.xlu0 %4608
      %v4610 = vsel %vm641, %v4602, 0.0
      %4611 = vadd.xlane.f32.xlu0 %v4610
      %v4612 = vpop.xlane.xlu0 %4611
      %v4613 = vsel %vm641, %v4603, 0.0
      %4614 = vadd.xlane.f32.xlu0 %v4613
      %v4615 = vpop.xlane.xlu0 %4614
      %v4616 = vsel %vm641, %v4604, 0.0
      %4617 = vadd.xlane.f32.xlu0 %v4616
      %v4618 = vpop.xlane.xlu0 %4617
      %v4619 = vmul.f32 %v4609, %v4359
      %v4620 = vmul.f32 %v4612, %v4359
      %v4621 = vmul.f32 %v4615, %v4359
      %v4622 = vmul.f32 %v4618, %v4359
      %v4623 = vsub.f32 %v4601, %v4619
      %v4624 = vsub.f32 %v4602, %v4620
      %v4625 = vsub.f32 %v4603, %v4621
      %v4626 = vsub.f32 %v4604, %v4622
      %v4627 = vmul.f32 %v4623, %v4623
      %v4628 = vmul.f32 %v4624, %v4624
      %v4629 = vmul.f32 %v4625, %v4625
      %v4630 = vmul.f32 %v4626, %v4626
      %v4631 = vsel %vm641, %v4627, 0.0
      %4632 = vadd.xlane.f32.xlu0 %v4631
      %v4633 = vpop.xlane.xlu0 %4632
      %v4634 = vsel %vm641, %v4628, 0.0
      %4635 = vadd.xlane.f32.xlu0 %v4634
      %v4636 = vpop.xlane.xlu0 %4635
      %v4637 = vsel %vm641, %v4629, 0.0
      %4638 = vadd.xlane.f32.xlu0 %v4637
      %v4639 = vpop.xlane.xlu0 %4638
      %v4640 = vsel %vm641, %v4630, 0.0
      %4641 = vadd.xlane.f32.xlu0 %v4640
      %v4642 = vpop.xlane.xlu0 %4641
      %v4643 = vmul.f32 %v4633, %v4359
      %v4644 = vmul.f32 %v4636, %v4359
      %v4645 = vmul.f32 %v4639, %v4359
      %v4646 = vmul.f32 %v4642, %v4359
      %v4647 = vadd.f32 %v4643, 1e-05
      %v4648 = vadd.f32 %v4644, 1e-05
      %v4649 = vadd.f32 %v4645, 1e-05
      %v4650 = vadd.f32 %v4646, 1e-05
      %v4651 = vrsqrt.pop %v4647
      %v4652 = vrsqrt.pop %v4648
      %v4653 = vrsqrt.pop %v4649
      %v4654 = vrsqrt.pop %v4650
      %v4655 = vmul.f32 %v4623, %v4651
      %v4656 = vmul.f32 %v4624, %v4652
      %v4657 = vmul.f32 %v4625, %v4653
      %v4658 = vmul.f32 %v4626, %v4654
      %v4660 = vlaneseq
      %v4661 = vshrl.u32 %v4660, 7
      %v4662 = vsub.s32 0, %v4661
      %v4663 = vrot.slane %v4605, %v4662
      %v4665 = vmul.f32 %v4655, %v4663
      %v4666 = vmul.f32 %v4656, %v4663
      %v4667 = vmul.f32 %v4657, %v4663
      %v4668 = vmul.f32 %v4658, %v4663
      %v4670 = vlaneseq
      %v4671 = vshrl.u32 %v4670, 7
      %v4672 = vsub.s32 0, %v4671
      %v4673 = vrot.slane %v4606, %v4672
      %v4675 = vadd.f32 %v4665, %v4673
      %v4676 = vadd.f32 %v4666, %v4673
      %v4677 = vadd.f32 %v4667, %v4673
      %v4678 = vadd.f32 %v4668, %v4673
      %4679 = vst.msk [vmem:[%s599] sm:$0xff] %vm641, %v4675
      %4680 = vst.msk [vmem:[%s599 + $0x8] sm:$0xff] %vm641, %v4676
      %4681 = vst.msk [vmem:[%s599 + $0x10] sm:$0xff] %vm641, %v4677
      %4682 = vst.msk [vmem:[%s599 + $0x18] sm:$0xff] %vm641, %v4678
      %s4683 = smul.u32 4, %s29
      %p4684 = scmp.lt.s32.totalorder %s4683, 7
      %s4685 = scalar_select %p4684, %s4683, 7
      %s4686 = smul.addr %s4685, 8
      %s4687 = scalar_lea.vmem %s18, %s4686
      // Predicated region
      $region93: #{tpu_custom_call.1} parent=91 // pred_check
        %p4688 = pneg %p435
      $region94: #{tpu_custom_call.1} parent=91 // pred_check_branch
        %4690 = sbr.rel (%p4688) target = $region96
      $region95: #{tpu_custom_call.1} parent=91 // pred_region
        %s4691 = smul.u32 4, %s29
      $region96: #{tpu_custom_call.1} parent=91 // pred_fallthru
        _
    $region92: #{tpu_custom_call.1} parent=5 // pred_fallthru
      _
    %p4692 = scmp.le.s32.totalorder 2, %s24
    // Predicated region
    $region97: #{tpu_custom_call.1} parent=5 // pred_check
      %p4693 = pneg %p4692
    $region98: #{tpu_custom_call.1} parent=5 // pred_check_branch
      %4695 = sbr.rel (%p4693) target = $region100
    $region99: #{tpu_custom_call.1} parent=5 // pred_region
      %s4696 = ssub.s32 %s24, 2
      // Predicated region
      $region101: #{tpu_custom_call.1} parent=99 // pred_check
        %p4697 = pneg %p441
      $region102: #{tpu_custom_call.1} parent=99 // pred_check_branch
        %4699 = sbr.rel (%p4697) target = $region104
      $region103: #{tpu_custom_call.1} parent=99 // pred_region
        %s4700 = smul.u32 4, %s30
        %p4701 = scmp.lt.s32.totalorder %s4700, 7
        %s4702 = scalar_select %p4701, %s4700, 7
        %s4703 = smul.addr %s4702, 8
        %s4704 = scalar_lea.vmem %s18, %s4703
      $region104: #{tpu_custom_call.1} parent=99 // pred_fallthru
        _
    $region100: #{tpu_custom_call.1} parent=5 // pred_fallthru
      _
  $region6: #{tpu_custom_call.1} parent=0 // loop_footer
    %s28 = sadd.s32 1, %s24
  $region7: #{tpu_custom_call.1} parent=0 // loop_footer_branch
    %23 = sbr.rel target = $region3
  $region8: #{tpu_custom_call.1} parent=0 // loop_exit
    _

</llo_original>
